<compile_context>
chip_gen: v7x
topology: tpu7x:2x2x1
jax: 0.10.0
libtpu: 0.0.40
codegen_flags: <defaults>
</compile_context>

<pallas_src>
import jax
import jax.numpy as jnp
from jax.experimental import pallas as pl
from jax.experimental.pallas import tpu as pltpu


def _log_sigmoid(x):
    # Stable log(sigmoid(x)) = min(x, 0) - log(1 + exp(-|x|)); the argument of
    # the log stays in (1, 2], so no -inf for large |x|.
    return jnp.minimum(x, 0.0) - jnp.log(1.0 + jnp.exp(-jnp.abs(x)))


def _line_loss_kernel(inp_ref, rows_ref, w_ref, loss_ref, acc_ref):
    """Grid = (cores, batch_tiles).  Axis 1 is the reduction axis.

    inp_ref  : [TB, D]       f32  gathered in_node_emb rows for this tile
    rows_ref : [S+1, TB, D]  f32  gathered out_node_emb rows (col 0 = label,
                                  cols 1..S = negative samples)
    w_ref    : [TB, 1]       f32  per-row weights (0 for padded rows)
    loss_ref : [1, 1, 1]     f32  per-core partial loss (written on last step)
    acc_ref  : [TB, 1]       f32  VMEM accumulator (persists across the grid)
    """
    step = pl.program_id(1)

    @pl.when(step == 0)
    def _init():
        acc_ref[...] = jnp.zeros_like(acc_ref)

    inp = inp_ref[...]                          # [TB, D]
    n_cols = rows_ref.shape[0]                  # S + 1 (static, small)

    # Column 0: positive term  log(sigmoid(<in, out[label]>)).
    pos = jnp.sum(inp * rows_ref[0], axis=1, keepdims=True)       # [TB, 1]
    contrib = _log_sigmoid(pos)

    # Columns 1..S: the reference negates the gathered rows; fold the sign
    # into log_sigmoid(-score) here instead (no extra HBM pass).
    for j in range(1, n_cols):                  # static, fully unrolled
        neg = jnp.sum(inp * rows_ref[j], axis=1, keepdims=True)   # [TB, 1]
        contrib = contrib + _log_sigmoid(-neg)

    acc_ref[...] += contrib * w_ref[...]

    @pl.when(step == pl.num_programs(1) - 1)
    def _finalize():
        # Deferred full reduce: only once per core.
        loss_ref[0] = -jnp.sum(acc_ref[...], keepdims=True)


def line_loss_homo_forward(in_table, out_table, sample_weights,
                           input_labels, output_labels, input_weights,
                           num_sampled, key, *, tile_b=256):
    """Mirrors line_loss_homo.forward. Returns a scalar f32 loss."""
    B = int(input_labels.shape[0])
    S = int(num_sampled)
    N, D = out_table.shape
    S1 = S + 1

    # --- glue: in_node_emb lookup ([B, D]) ---
    # TODO(synk): fuse this row gather into the kernel (scalar-prefetch indices
    # + manual make_async_copy gather) to avoid the [B, D] HBM temp when B*D is
    # large enough to matter.
    inp = jnp.take(in_table, input_labels, axis=0).astype(jnp.float32)

    # --- glue: torch.multinomial(weights, B*S, replacement=True) ---
    # TODO(synk): torch.multinomial's exact RNG stream cannot be reproduced;
    # jax.random.categorical over log(weights) is an equivalent sampler.
    draw = jax.random.categorical(
        key, jnp.log(sample_weights), shape=(B * S,)).reshape(B, S)
    draw = draw.astype(jnp.int32)

    lbl = output_labels.reshape(B, 1).astype(jnp.int32)
    idx = jnp.concatenate([lbl, draw], axis=1)                    # [B, S+1]

    # Gather ONLY the 1+S needed out_node_emb rows per batch element, laid out
    # [S+1, B, D] so the kernel indexes the leading axis with zero relayout.
    rows = jnp.take(out_table.astype(jnp.float32), idx.T, axis=0)  # [S+1, B, D]

    w = input_weights.reshape(B, 1).astype(jnp.float32)

    # --- batch tiling (padded rows contribute 0 via zero weights) ---
    TB = min(tile_b, B)
    TB = max(8, -(-TB // 8) * 8)                 # sublane-aligned tile
    n_tiles = -(-B // TB)
    # 2 TensorCores on v7x-class parts; harmless serial outer loop on 1-TC
    # chips.  No even-tile-count gate: tail is absorbed by zero-weight padding.
    n_cores = 2 if n_tiles >= 2 else 1
    inner = -(-n_tiles // n_cores)
    n_tiles = n_cores * inner
    B_pad = n_tiles * TB
    if B_pad != B:
        pad = B_pad - B
        inp = jnp.pad(inp, ((0, pad), (0, 0)))
        rows = jnp.pad(rows, ((0, 0), (0, pad), (0, 0)))
        w = jnp.pad(w, ((0, pad), (0, 0)))

    def row_map(c, i):
        return (c * inner + i, 0)

    # Explicit VMEM budget: double-buffered input blocks + scratch + headroom,
    # clamped to stay under every chip's scoped/physical limits.
    block_bytes = 4 * (TB * D + S1 * TB * D + TB)
    vmem_limit = int(min(64 * 1024 * 1024,
                         max(16 * 1024 * 1024, 4 * block_bytes)))

    partials = pl.pallas_call(
        _line_loss_kernel,
        out_shape=jax.ShapeDtypeStruct((n_cores, 1, 1), jnp.float32),
        grid=(n_cores, inner),
        in_specs=[
            pl.BlockSpec((TB, D), row_map),                              # inp
            pl.BlockSpec((S1, TB, D), lambda c, i: (0, c * inner + i, 0)),  # gathered out rows
            pl.BlockSpec((TB, 1), row_map),                              # weights
        ],
        out_specs=pl.BlockSpec((1, 1, 1), lambda c, i: (c, 0, 0)),
        scratch_shapes=[pltpu.VMEM((TB, 1), jnp.float32)],
        compiler_params=pltpu.CompilerParams(
            dimension_semantics=("parallel", "arbitrary"),
            vmem_limit_bytes=vmem_limit),
    )(inp, rows, w)

    return jnp.sum(partials)


def _reference_forward(in_table, out_table, sample_weights,
                       input_labels, output_labels, input_weights,
                       num_sampled, key):
    """Pure-JAX reference (same sampling stream) for a sanity check."""
    B, S = input_labels.shape[0], num_sampled
    inp = jnp.take(in_table, input_labels, axis=0)
    out = jnp.take(out_table, output_labels, axis=0)
    draw = jax.random.categorical(
        key, jnp.log(sample_weights), shape=(B * S,)).reshape(B, S)
    noise = -jnp.take(out_table, draw, axis=0)                    # [B, S, D]
    log_target = jax.nn.log_sigmoid(jnp.sum(inp * out, axis=1))
    neg = jnp.sum(noise * inp[:, None, :], axis=-1)               # exact f32
    sum_log_sampled = jnp.sum(jax.nn.log_sigmoid(neg), axis=1)
    return -jnp.sum((log_target + sum_log_sampled) * input_weights)


if __name__ == "__main__":
    num_node = 128
    embed_dim = 32
    batch_x_window = 600        # 3 raw tiles of 256 -> exercises 2-core split,
                                # multi-step accumulation, and tail padding
    num_sampled = 4

    root = jax.random.PRNGKey(0)
    k_in, k_out, k_w, k_li, k_lo, k_iw, k_s = jax.random.split(root, 7)

    # nn.Embedding weights, uniform(-1, 1) as in __init__
    in_table = jax.random.uniform(k_in, (num_node, embed_dim), jnp.float32,
                                  minval=-1.0, maxval=1.0)
    out_table = jax.random.uniform(k_out, (num_node, embed_dim), jnp.float32,
                                   minval=-1.0, maxval=1.0)
    # positive class weights used by torch.multinomial
    sample_weights = jax.random.uniform(k_w, (num_node,), jnp.float32,
                                        minval=0.1, maxval=1.0)

    input_labels = jax.random.randint(k_li, (batch_x_window,), 0, num_node)
    output_labels = jax.random.randint(k_lo, (batch_x_window,), 0, num_node)
    input_weights = jax.random.uniform(k_iw, (batch_x_window,), jnp.float32,
                                       minval=0.5, maxval=1.5)

    loss = line_loss_homo_forward(in_table, out_table, sample_weights,
                                  input_labels, output_labels, input_weights,
                                  num_sampled, k_s, tile_b=256)
    loss = jax.block_until_ready(loss)

    ref = _reference_forward(in_table, out_table, sample_weights,
                             input_labels, output_labels, input_weights,
                             num_sampled, k_s)
    # Tolerance allows for summation-order differences only (all math is f32).
    assert jnp.allclose(loss, ref, rtol=1e-4, atol=1e-3), (loss, ref)

    print("KERNEL_OK")
</pallas_src>

<mosaic_0001>
module attributes {stable_mosaic.version = 11 : i64} {
  func.func @_line_loss_kernel(%arg0: i32, %arg1: i32, %arg2: memref<256x32xf32, #tpu.memory_space<vmem>>, %arg3: memref<5x256x32xf32, #tpu.memory_space<vmem>>, %arg4: memref<256x1xf32, #tpu.memory_space<vmem>>, %arg5: memref<1x1x1xf32, #tpu.memory_space<vmem>>, %arg6: memref<256x1xf32, #tpu.memory_space<vmem>>) attributes {dimension_semantics = [#tpu.dimension_semantics<parallel>, #tpu.dimension_semantics<arbitrary>], iteration_bounds = array<i64: 2, 2>, scalar_prefetch = 0 : i64, scratch_operands = 1 : i64, tpu.core_type = #tpu.core_type<tc>, window_params = [{transform_indices = @transform_0, window_bounds = array<i64: 256, 32>}, {transform_indices = @transform_1, window_bounds = array<i64: 5, 256, 32>}, {transform_indices = @transform_2, window_bounds = array<i64: 256, 1>}, {transform_indices = @transform_3, window_bounds = array<i64: 1, 1, 1>}]} {
    %c0_i32 = arith.constant 0 : i32
    %0 = arith.cmpi eq, %arg1, %c0_i32 : i32
    %1 = arith.extui %0 : i1 to i32
    %c0_i32_0 = arith.constant 0 : i32
    %2 = arith.cmpi ne, %1, %c0_i32_0 : i32
    scf.if %2 {
      %cst_43 = arith.constant 0.000000e+00 : f32
      %99 = vector.broadcast %cst_43 : f32 to vector<256x1xf32>
      %c0_44 = arith.constant 0 : index
      %c0_45 = arith.constant 0 : index
      %100 = vector.load %arg6[%c0_44, %c0_45] : memref<256x1xf32, #tpu.memory_space<vmem>>, vector<256x1xf32>
      tpu.vector_store %arg6[%c0_44, %c0_45], %99 {strides = array<i32>} : memref<256x1xf32, #tpu.memory_space<vmem>>, vector<256x1xf32>,
    } else {
    }
    %c0 = arith.constant 0 : index
    %c0_1 = arith.constant 0 : index
    %3 = vector.load %arg2[%c0, %c0_1] : memref<256x32xf32, #tpu.memory_space<vmem>>, vector<256x32xf32>
    %c0_2 = arith.constant 0 : index
    %c0_3 = arith.constant 0 : index
    %c0_4 = arith.constant 0 : index
    %4 = vector.load %arg3[%c0_2, %c0_3, %c0_4] : memref<5x256x32xf32, #tpu.memory_space<vmem>>, vector<1x256x32xf32>
    %5 = vector.shape_cast %4 : vector<1x256x32xf32> to vector<256x32xf32>
    %6 = arith.mulf %3, %5 : vector<256x32xf32>
    %cst = arith.constant dense<0.000000e+00> : vector<256xf32>
    %7 = vector.multi_reduction <add>, %6, %cst [1] : vector<256x32xf32> to vector<256xf32>
    %8 = vector.shape_cast %7 : vector<256xf32> to vector<256x1xf32>
    %cst_5 = arith.constant 0.000000e+00 : f32
    %9 = vector.broadcast %cst_5 : f32 to vector<256x1xf32>
    %10 = arith.minimumf %8, %9 : vector<256x1xf32>
    %11 = math.absf %8 : vector<256x1xf32>
    %cst_6 = arith.constant 0.000000e+00 : f32
    %12 = vector.broadcast %cst_6 : f32 to vector<256x1xf32>
    %13 = arith.subf %12, %11 : vector<256x1xf32>
    %14 = math.exp %13 : vector<256x1xf32>
    %cst_7 = arith.constant 1.000000e+00 : f32
    %15 = vector.broadcast %cst_7 : f32 to vector<256x1xf32>
    %16 = arith.addf %15, %14 : vector<256x1xf32>
    %17 = math.log %16 : vector<256x1xf32>
    %18 = arith.subf %10, %17 : vector<256x1xf32>
    %c1 = arith.constant 1 : index
    %c0_8 = arith.constant 0 : index
    %c0_9 = arith.constant 0 : index
    %19 = vector.load %arg3[%c1, %c0_8, %c0_9] : memref<5x256x32xf32, #tpu.memory_space<vmem>>, vector<1x256x32xf32>
    %20 = vector.shape_cast %19 : vector<1x256x32xf32> to vector<256x32xf32>
    %21 = arith.mulf %3, %20 : vector<256x32xf32>
    %cst_10 = arith.constant dense<0.000000e+00> : vector<256xf32>
    %22 = vector.multi_reduction <add>, %21, %cst_10 [1] : vector<256x32xf32> to vector<256xf32>
    %23 = vector.shape_cast %22 : vector<256xf32> to vector<256x1xf32>
    %cst_11 = arith.constant 0.000000e+00 : f32
    %24 = vector.broadcast %cst_11 : f32 to vector<256x1xf32>
    %25 = arith.subf %24, %23 : vector<256x1xf32>
    %cst_12 = arith.constant 0.000000e+00 : f32
    %26 = vector.broadcast %cst_12 : f32 to vector<256x1xf32>
    %27 = arith.minimumf %25, %26 : vector<256x1xf32>
    %28 = math.absf %25 : vector<256x1xf32>
    %cst_13 = arith.constant 0.000000e+00 : f32
    %29 = vector.broadcast %cst_13 : f32 to vector<256x1xf32>
    %30 = arith.subf %29, %28 : vector<256x1xf32>
    %31 = math.exp %30 : vector<256x1xf32>
    %cst_14 = arith.constant 1.000000e+00 : f32
    %32 = vector.broadcast %cst_14 : f32 to vector<256x1xf32>
    %33 = arith.addf %32, %31 : vector<256x1xf32>
    %34 = math.log %33 : vector<256x1xf32>
    %35 = arith.subf %27, %34 : vector<256x1xf32>
    %36 = arith.addf %18, %35 : vector<256x1xf32>
    %c2 = arith.constant 2 : index
    %c0_15 = arith.constant 0 : index
    %c0_16 = arith.constant 0 : index
    %37 = vector.load %arg3[%c2, %c0_15, %c0_16] : memref<5x256x32xf32, #tpu.memory_space<vmem>>, vector<1x256x32xf32>
    %38 = vector.shape_cast %37 : vector<1x256x32xf32> to vector<256x32xf32>
    %39 = arith.mulf %3, %38 : vector<256x32xf32>
    %cst_17 = arith.constant dense<0.000000e+00> : vector<256xf32>
    %40 = vector.multi_reduction <add>, %39, %cst_17 [1] : vector<256x32xf32> to vector<256xf32>
    %41 = vector.shape_cast %40 : vector<256xf32> to vector<256x1xf32>
    %cst_18 = arith.constant 0.000000e+00 : f32
    %42 = vector.broadcast %cst_18 : f32 to vector<256x1xf32>
    %43 = arith.subf %42, %41 : vector<256x1xf32>
    %cst_19 = arith.constant 0.000000e+00 : f32
    %44 = vector.broadcast %cst_19 : f32 to vector<256x1xf32>
    %45 = arith.minimumf %43, %44 : vector<256x1xf32>
    %46 = math.absf %43 : vector<256x1xf32>
    %cst_20 = arith.constant 0.000000e+00 : f32
    %47 = vector.broadcast %cst_20 : f32 to vector<256x1xf32>
    %48 = arith.subf %47, %46 : vector<256x1xf32>
    %49 = math.exp %48 : vector<256x1xf32>
    %cst_21 = arith.constant 1.000000e+00 : f32
    %50 = vector.broadcast %cst_21 : f32 to vector<256x1xf32>
    %51 = arith.addf %50, %49 : vector<256x1xf32>
    %52 = math.log %51 : vector<256x1xf32>
    %53 = arith.subf %45, %52 : vector<256x1xf32>
    %54 = arith.addf %36, %53 : vector<256x1xf32>
    %c3 = arith.constant 3 : index
    %c0_22 = arith.constant 0 : index
    %c0_23 = arith.constant 0 : index
    %55 = vector.load %arg3[%c3, %c0_22, %c0_23] : memref<5x256x32xf32, #tpu.memory_space<vmem>>, vector<1x256x32xf32>
    %56 = vector.shape_cast %55 : vector<1x256x32xf32> to vector<256x32xf32>
    %57 = arith.mulf %3, %56 : vector<256x32xf32>
    %cst_24 = arith.constant dense<0.000000e+00> : vector<256xf32>
    %58 = vector.multi_reduction <add>, %57, %cst_24 [1] : vector<256x32xf32> to vector<256xf32>
    %59 = vector.shape_cast %58 : vector<256xf32> to vector<256x1xf32>
    %cst_25 = arith.constant 0.000000e+00 : f32
    %60 = vector.broadcast %cst_25 : f32 to vector<256x1xf32>
    %61 = arith.subf %60, %59 : vector<256x1xf32>
    %cst_26 = arith.constant 0.000000e+00 : f32
    %62 = vector.broadcast %cst_26 : f32 to vector<256x1xf32>
    %63 = arith.minimumf %61, %62 : vector<256x1xf32>
    %64 = math.absf %61 : vector<256x1xf32>
    %cst_27 = arith.constant 0.000000e+00 : f32
    %65 = vector.broadcast %cst_27 : f32 to vector<256x1xf32>
    %66 = arith.subf %65, %64 : vector<256x1xf32>
    %67 = math.exp %66 : vector<256x1xf32>
    %cst_28 = arith.constant 1.000000e+00 : f32
    %68 = vector.broadcast %cst_28 : f32 to vector<256x1xf32>
    %69 = arith.addf %68, %67 : vector<256x1xf32>
    %70 = math.log %69 : vector<256x1xf32>
    %71 = arith.subf %63, %70 : vector<256x1xf32>
    %72 = arith.addf %54, %71 : vector<256x1xf32>
    %c4 = arith.constant 4 : index
    %c0_29 = arith.constant 0 : index
    %c0_30 = arith.constant 0 : index
    %73 = vector.load %arg3[%c4, %c0_29, %c0_30] : memref<5x256x32xf32, #tpu.memory_space<vmem>>, vector<1x256x32xf32>
    %74 = vector.shape_cast %73 : vector<1x256x32xf32> to vector<256x32xf32>
    %75 = arith.mulf %3, %74 : vector<256x32xf32>
    %cst_31 = arith.constant dense<0.000000e+00> : vector<256xf32>
    %76 = vector.multi_reduction <add>, %75, %cst_31 [1] : vector<256x32xf32> to vector<256xf32>
    %77 = vector.shape_cast %76 : vector<256xf32> to vector<256x1xf32>
    %cst_32 = arith.constant 0.000000e+00 : f32
    %78 = vector.broadcast %cst_32 : f32 to vector<256x1xf32>
    %79 = arith.subf %78, %77 : vector<256x1xf32>
    %cst_33 = arith.constant 0.000000e+00 : f32
    %80 = vector.broadcast %cst_33 : f32 to vector<256x1xf32>
    %81 = arith.minimumf %79, %80 : vector<256x1xf32>
    %82 = math.absf %79 : vector<256x1xf32>
    %cst_34 = arith.constant 0.000000e+00 : f32
    %83 = vector.broadcast %cst_34 : f32 to vector<256x1xf32>
    %84 = arith.subf %83, %82 : vector<256x1xf32>
    %85 = math.exp %84 : vector<256x1xf32>
    %cst_35 = arith.constant 1.000000e+00 : f32
    %86 = vector.broadcast %cst_35 : f32 to vector<256x1xf32>
    %87 = arith.addf %86, %85 : vector<256x1xf32>
    %88 = math.log %87 : vector<256x1xf32>
    %89 = arith.subf %81, %88 : vector<256x1xf32>
    %90 = arith.addf %72, %89 : vector<256x1xf32>
    %c0_36 = arith.constant 0 : index
    %c0_37 = arith.constant 0 : index
    %91 = vector.load %arg6[%c0_36, %c0_37] : memref<256x1xf32, #tpu.memory_space<vmem>>, vector<256x1xf32>
    %c0_38 = arith.constant 0 : index
    %c0_39 = arith.constant 0 : index
    %92 = vector.load %arg4[%c0_38, %c0_39] : memref<256x1xf32, #tpu.memory_space<vmem>>, vector<256x1xf32>
    %93 = arith.mulf %90, %92 : vector<256x1xf32>
    %94 = arith.addf %91, %93 : vector<256x1xf32>
    %c0_40 = arith.constant 0 : index
    %c0_41 = arith.constant 0 : index
    %95 = vector.load %arg6[%c0_40, %c0_41] : memref<256x1xf32, #tpu.memory_space<vmem>>, vector<256x1xf32>
    tpu.vector_store %arg6[%c0_40, %c0_41], %94 {strides = array<i32>} : memref<256x1xf32, #tpu.memory_space<vmem>>, vector<256x1xf32>,
    %c1_i32 = arith.constant 1 : i32
    %96 = arith.cmpi eq, %arg1, %c1_i32 : i32
    %97 = arith.extui %96 : i1 to i32
    %c0_i32_42 = arith.constant 0 : i32
    %98 = arith.cmpi ne, %97, %c0_i32_42 : i32
    scf.if %98 {
      %c0_43 = arith.constant 0 : index
      %c0_44 = arith.constant 0 : index
      %99 = vector.load %arg6[%c0_43, %c0_44] : memref<256x1xf32, #tpu.memory_space<vmem>>, vector<256x1xf32>
      %100 = vector.shape_cast %99 : vector<256x1xf32> to vector<1x256x1xf32>
      %cst_45 = arith.constant dense<0.000000e+00> : vector<1xf32>
      %101 = vector.multi_reduction <add>, %100, %cst_45 [1, 2] : vector<1x256x1xf32> to vector<1xf32>
      %102 = vector.shape_cast %101 : vector<1xf32> to vector<1x1x1xf32>
      %103 = vector.extract %102[0, 0, 0] : f32 from vector<1x1x1xf32>
      %104 = vector.broadcast %103 : f32 to vector<1x1xf32>
      %cst_46 = arith.constant 0.000000e+00 : f32
      %105 = vector.broadcast %cst_46 : f32 to vector<1x1xf32>
      %106 = arith.subf %105, %104 : vector<1x1xf32>
      %c0_47 = arith.constant 0 : index
      %c0_48 = arith.constant 0 : index
      %c0_49 = arith.constant 0 : index
      %107 = vector.load %arg5[%c0_47, %c0_48, %c0_49] : memref<1x1x1xf32, #tpu.memory_space<vmem>>, vector<1x1x1xf32>
      %108 = vector.shape_cast %107 : vector<1x1x1xf32> to vector<1x1xf32>
      %109 = vector.shape_cast %106 : vector<1x1xf32> to vector<1x1x1xf32>
      tpu.vector_store %arg5[%c0_47, %c0_48, %c0_49], %109 {strides = array<i32>} : memref<1x1x1xf32, #tpu.memory_space<vmem>>, vector<1x1x1xf32>,
    } else {
    }
    return
  }
  func.func @transform_0(%arg0: i32, %arg1: i32) -> (i32, i32) {
    %c2_i32 = arith.constant 2 : i32
    %0 = arith.muli %arg0, %c2_i32 : i32
    %1 = arith.addi %0, %arg1 : i32
    %c0_i32 = arith.constant 0 : i32
    %c0_i32_0 = arith.constant 0 : i32
    return %1, %c0_i32 : i32, i32
  }
  func.func @transform_1(%arg0: i32, %arg1: i32) -> (i32, i32, i32) {
    %c2_i32 = arith.constant 2 : i32
    %0 = arith.muli %arg0, %c2_i32 : i32
    %1 = arith.addi %0, %arg1 : i32
    %c0_i32 = arith.constant 0 : i32
    %c0_i32_0 = arith.constant 0 : i32
    %c0_i32_1 = arith.constant 0 : i32
    return %c0_i32, %1, %c0_i32_0 : i32, i32, i32
  }
  func.func @transform_2(%arg0: i32, %arg1: i32) -> (i32, i32) {
    %c2_i32 = arith.constant 2 : i32
    %0 = arith.muli %arg0, %c2_i32 : i32
    %1 = arith.addi %0, %arg1 : i32
    %c0_i32 = arith.constant 0 : i32
    %c0_i32_0 = arith.constant 0 : i32
    return %1, %c0_i32 : i32, i32
  }
  func.func @transform_3(%arg0: i32, %arg1: i32) -> (i32, i32, i32) {
    %c0_i32 = arith.constant 0 : i32
    %c0_i32_0 = arith.constant 0 : i32
    %c0_i32_1 = arith.constant 0 : i32
    return %arg0, %c0_i32, %c0_i32_0 : i32, i32, i32
  }
}

</mosaic_0001>

<llo_original>
// kernel: tpu_custom_call.1
$region0: #{tpu_custom_call.1}
  #allocation0 [shape = 'u32[]', space=smem, size = 0x4, offset = 0x4, fixed_abs, tag = 'smem constant byte address 0x4 - core index']
  #allocation1 [shape = 'u32[144,128]{1,0:T(1,128)}', space=vmem, size = 0x12000, scoped, tag = 'internal scratch']
  #allocation2 [shape = 'f32[256,1]{1,0:T(8,128)}', space=vmem, size = 0x20000, scoped, tag = 'scratch operand']
  %s0 = inlined_call_operand.vmem [shape: f32[1024,32], index: 0, kind: input, shape index: {}]
  %s1 = inlined_call_operand.vmem [shape: f32[5,1024,32], index: 1, kind: input, shape index: {}]
  %s2 = inlined_call_operand.vmem [shape: f32[1024,1], index: 2, kind: input, shape index: {}]
  %s3 = inlined_call_operand.vmem [shape: f32[2,1,1], index: 3, kind: output, shape index: {}]
  %s4 = sld [smem:[#allocation0]]
  $region91: #{tpu_custom_call.1} parent=0
    _
  %s6 = ssub.s32 1, %s4
  %s7 = scalar_select 0, %s6, %s4
  $region1: #{tpu_custom_call.1} parent=0
    #allocation3 [shape = 'u8[1310720]{0}', space=vmem, size = 0x140000, scoped, tag = 'input window, operand 1']
    loop: start=0, step=1, limit=6
    $region2: #{tpu_custom_call.1} parent=1 // loop_pre_header
      _
    $region3: #{tpu_custom_call.1} parent=1 // loop_header
      %s9 = sphi 0, %s13
      %p10 = scmp.ge.s32.totalorder %s9, 6
      %s16 = sphi 0, %s28
      %s17 = sphi 0, %s24
      %s18 = sphi 0, %s16
      %s19 = sphi 0, %s17
      %s20 = sphi 0, %s18
      %s21 = sphi 0, %s19
      %s35 = sphi 0, %s37
      %s38 = sphi 0, %s35
      %s39 = sphi 0, %s38
      %s55 = sphi 0, %s39
      %s65 = sphi 0, %s67
      %s68 = sphi 0, %s65
      %s69 = sphi 0, %s68
      %s85 = sphi 0, %s69
      %s95 = sphi 0, %s97
      %s98 = sphi 0, %s95
      %s99 = sphi 0, %s98
      %s115 = sphi 0, %s99
      %s121 = sphi 0, %s123
      %s124 = sphi 0, %s121
      %s125 = sphi 0, %s124
      %s141 = sphi 0, %s125
    $region4: #{tpu_custom_call.1} parent=1 // loop_header_branch
      %12 = sbr.rel (%p10) target = $region8
    $region5: #{tpu_custom_call.1} parent=1 // loop_body
      %s14 = ssub.s32 %s9, 1
      %s15 = ssub.s32 %s9, 2
      %s22 = sadd.s32 1, %s17
      %p23 = scmp.ge.s32.totalorder %s22, 2
      %s24 = scalar_select %p23, 0, %s22
      %s25 = sadd.s32 1, %s16
      %s26 = scalar_select %p23, %s25, %s16
      %p27 = scmp.ge.s32.totalorder %s26, 2
      %s28 = scalar_select %p27, 0, %s26
      %s29 = smul.u32 %s16, 2
      %s30 = sadd.s32 %s29, %s17
      %s31 = smul.u32 %s28, 2
      %s32 = sadd.s32 %s31, %s24
      %s33 = ssub.s32 %s30, %s32
      %p34 = scmp.eq.s32.totalorder %s33, 0
      %s36 = sadd.s32 %s35, 1
      %s37 = scalar_select %p34, %s35, %s36
      %p40 = pneg %p34
      %p41 = scmp.eq.s32.totalorder %s9, 3
      %p42 = por %p40, %p41
      %p43 = scmp.ne.s32.totalorder %s35, %s38
      %p44 = scmp.eq.s32.totalorder %s9, 0
      %p45 = por %p43, %p44
      %p46 = scmp.ne.s32.totalorder %s35, %s38
      %p47 = scmp.eq.s32.totalorder %s14, 3
      %p48 = por %p46, %p47
      %p49 = scmp.ne.s32.totalorder %s38, %s39
      %p50 = scmp.eq.s32.totalorder %s14, 0
      %p51 = por %p49, %p50
      %p52 = scmp.ne.s32.totalorder %s38, %s39
      %p53 = scmp.eq.s32.totalorder %s15, 3
      %p54 = por %p52, %p53
      %p56 = scmp.ne.s32.totalorder %s39, %s55
      %p57 = scmp.eq.s32.totalorder %s15, 0
      %p58 = por %p56, %p57
      %s59 = smul.u32 %s16, 2
      %s60 = sadd.s32 %s59, %s17
      %s61 = smul.u32 %s28, 2
      %s62 = sadd.s32 %s61, %s24
      %s63 = ssub.s32 %s60, %s62
      %p64 = scmp.eq.s32.totalorder %s63, 0
      %s66 = sadd.s32 %s65, 1
      %s67 = scalar_select %p64, %s65, %s66
      %p70 = pneg %p64
      %p71 = scmp.eq.s32.totalorder %s9, 3
      %p72 = por %p70, %p71
      %p73 = scmp.ne.s32.totalorder %s65, %s68
      %p74 = scmp.eq.s32.totalorder %s9, 0
      %p75 = por %p73, %p74
      %p76 = scmp.ne.s32.totalorder %s65, %s68
      %p77 = scmp.eq.s32.totalorder %s14, 3
      %p78 = por %p76, %p77
      %p79 = scmp.ne.s32.totalorder %s68, %s69
      %p80 = scmp.eq.s32.totalorder %s14, 0
      %p81 = por %p79, %p80
      %p82 = scmp.ne.s32.totalorder %s68, %s69
      %p83 = scmp.eq.s32.totalorder %s15, 3
      %p84 = por %p82, %p83
      %p86 = scmp.ne.s32.totalorder %s69, %s85
      %p87 = scmp.eq.s32.totalorder %s15, 0
      %p88 = por %p86, %p87
      %s89 = smul.u32 %s16, 2
      %s90 = sadd.s32 %s89, %s17
      %s91 = smul.u32 %s28, 2
      %s92 = sadd.s32 %s91, %s24
      %s93 = ssub.s32 %s90, %s92
      %p94 = scmp.eq.s32.totalorder %s93, 0
      %s96 = sadd.s32 %s95, 1
      %s97 = scalar_select %p94, %s95, %s96
      %p100 = pneg %p94
      %p101 = scmp.eq.s32.totalorder %s9, 3
      %p102 = por %p100, %p101
      %p103 = scmp.ne.s32.totalorder %s95, %s98
      %p104 = scmp.eq.s32.totalorder %s9, 0
      %p105 = por %p103, %p104
      %p106 = scmp.ne.s32.totalorder %s95, %s98
      %p107 = scmp.eq.s32.totalorder %s14, 3
      %p108 = por %p106, %p107
      %p109 = scmp.ne.s32.totalorder %s98, %s99
      %p110 = scmp.eq.s32.totalorder %s14, 0
      %p111 = por %p109, %p110
      %p112 = scmp.ne.s32.totalorder %s98, %s99
      %p113 = scmp.eq.s32.totalorder %s15, 3
      %p114 = por %p112, %p113
      %p116 = scmp.ne.s32.totalorder %s99, %s115
      %p117 = scmp.eq.s32.totalorder %s15, 0
      %p118 = por %p116, %p117
      %s119 = ssub.s32 %s16, %s28
      %p120 = scmp.eq.s32.totalorder %s119, 0
      %s122 = sadd.s32 %s121, 1
      %s123 = scalar_select %p120, %s121, %s122
      %p126 = pneg %p120
      %p127 = scmp.eq.s32.totalorder %s9, 3
      %p128 = por %p126, %p127
      %p129 = scmp.ne.s32.totalorder %s121, %s124
      %p130 = scmp.eq.s32.totalorder %s9, 0
      %p131 = por %p129, %p130
      %p132 = scmp.ne.s32.totalorder %s121, %s124
      %p133 = scmp.eq.s32.totalorder %s14, 3
      %p134 = por %p132, %p133
      %p135 = scmp.ne.s32.totalorder %s124, %s125
      %p136 = scmp.eq.s32.totalorder %s14, 0
      %p137 = por %p135, %p136
      %p138 = scmp.ne.s32.totalorder %s124, %s125
      %p139 = scmp.eq.s32.totalorder %s15, 3
      %p140 = por %p138, %p139
      %p142 = scmp.ne.s32.totalorder %s125, %s141
      %p143 = scmp.eq.s32.totalorder %s15, 0
      %p144 = por %p142, %p143
      %p145 = scmp.le.s32.totalorder 1, %s9
      %p146 = scmp.lt.s32.totalorder %s9, 5
      %p147 = pnand %p145, %p146
      %p148 = pneg %p147
      // Predicated region
      $region9: #{tpu_custom_call.1} parent=5 // pred_check
        _
      $region10: #{tpu_custom_call.1} parent=5 // pred_check_branch
        %150 = sbr.rel (%p147) target = $region12
      $region11: #{tpu_custom_call.1} parent=5 // pred_region
        %s151 = ssub.s32 %s9, 1
      $region12: #{tpu_custom_call.1} parent=5 // pred_fallthru
        _
      %p152 = scmp.lt.s32.totalorder %s9, 4
      // Predicated region
      $region13: #{tpu_custom_call.1} parent=5 // pred_check
        %p153 = pneg %p152
      $region14: #{tpu_custom_call.1} parent=5 // pred_check_branch
        %155 = sbr.rel (%p153) target = $region16
      $region15: #{tpu_custom_call.1} parent=5 // pred_region
        // Predicated region
        $region17: #{tpu_custom_call.1} parent=15 // pred_check
          %p156 = pneg %p45
        $region18: #{tpu_custom_call.1} parent=15 // pred_check_branch
          %158 = sbr.rel (%p156) target = $region20
        $region19: #{tpu_custom_call.1} parent=15 // pred_region
          %s159 = smul.u32 %s16, 2
          %s160 = sadd.s32 %s159, %s17
          %s161 = smul.u32 32, %s160
          %p162 = scmp.lt.s32.totalorder %s161, 127
          %s163 = scalar_select %p162, %s161, 127
          %s164 = smul.addr %s163, 8
          %s165 = scalar_lea.vmem %s0, %s164
          %s166 = smul.u32 %s16, 2
          %s167 = sadd.s32 %s166, %s17
          %s168 = smul.u32 32, %s167
        $region20: #{tpu_custom_call.1} parent=15 // pred_fallthru
          _
        // Predicated region
        $region21: #{tpu_custom_call.1} parent=15 // pred_check
          %p169 = pneg %p75
        $region22: #{tpu_custom_call.1} parent=15 // pred_check_branch
          %171 = sbr.rel (%p169) target = $region24
        $region23: #{tpu_custom_call.1} parent=15 // pred_region
          %s172 = sand.u32 %s65, 1
          %s173 = sand.u32 %s65, 1
          %s174 = smul.addr %s173, 1280
          %s175 = scalar_lea.vmem [#allocation3], %s174
          %s176 = smul.u32 %s16, 2
          %s177 = sadd.s32 %s176, %s17
          %s178 = smul.u32 32, %s177
          %s179 = smul.addr %s178, 8
          %s180 = scalar_lea.vmem %s1, %s179
          // Predicated region
          $region25: #{tpu_custom_call.1} parent=23 // pred_check
            _
          $region26: #{tpu_custom_call.1} parent=23 // pred_check_branch
            %182 = sbr.rel (0) target = $region28
          $region27: #{tpu_custom_call.1} parent=23 // pred_region
            // Predicated region
            $region29: #{tpu_custom_call.1} parent=27 // pred_check
              _
            $region30: #{tpu_custom_call.1} parent=27 // pred_check_branch
              %184 = sbr.rel (0) target = $region32
            $region31: #{tpu_custom_call.1} parent=27 // pred_region
              // Predicated region
              $region44: #{tpu_custom_call.1} parent=31 // pred_check
                _
              $region45: #{tpu_custom_call.1} parent=31 // pred_check_branch
                %517 = sbr.rel (0) target = $region47
              $region46: #{tpu_custom_call.1} parent=31 // pred_region
                loop: start=0, step=1, limit=1
                $region48: #{tpu_custom_call.1} parent=46 // loop_pre_header
                  _
                $region49: #{tpu_custom_call.1} parent=46 // loop_header
                  %s519 = sphi 0, %s523
                  %p520 = scmp.ge.s32.totalorder %s519, 1
                  %s524 = sphi %s180, %s180
                  %s525 = sphi %s175, %s175
                $region50: #{tpu_custom_call.1} parent=46 // loop_header_branch
                  %522 = sbr.rel (%p520) target = $region54
                $region51: #{tpu_custom_call.1} parent=46 // loop_body
                  %v526 = vld [vmem:[%s524] sm:$0xff]
                  %527 = vst [vmem:[%s525] sm:$0xff] %v526
                  %v528 = vld [vmem:[%s524 + $0x8] sm:$0xff]
                  %529 = vst [vmem:[%s525 + $0x8] sm:$0xff] %v528
                  %v530 = vld [vmem:[%s524 + $0x10] sm:$0xff]
                  %531 = vst [vmem:[%s525 + $0x10] sm:$0xff] %v530
                  %v532 = vld [vmem:[%s524 + $0x18] sm:$0xff]
                  %533 = vst [vmem:[%s525 + $0x18] sm:$0xff] %v532
                  %v534 = vld [vmem:[%s524 + $0x20] sm:$0xff]
                  %535 = vst [vmem:[%s525 + $0x20] sm:$0xff] %v534
                  %v536 = vld [vmem:[%s524 + $0x28] sm:$0xff]
                  %537 = vst [vmem:[%s525 + $0x28] sm:$0xff] %v536
                  %v538 = vld [vmem:[%s524 + $0x30] sm:$0xff]
                  %539 = vst [vmem:[%s525 + $0x30] sm:$0xff] %v538
                  %v540 = vld [vmem:[%s524 + $0x38] sm:$0xff]
                  %541 = vst [vmem:[%s525 + $0x38] sm:$0xff] %v540
                  %v542 = vld [vmem:[%s524 + $0x40] sm:$0xff]
                  %543 = vst [vmem:[%s525 + $0x40] sm:$0xff] %v542
                  %v544 = vld [vmem:[%s524 + $0x48] sm:$0xff]
                  %545 = vst [vmem:[%s525 + $0x48] sm:$0xff] %v544
                  %v546 = vld [vmem:[%s524 + $0x50] sm:$0xff]
                  %547 = vst [vmem:[%s525 + $0x50] sm:$0xff] %v546
                  %v548 = vld [vmem:[%s524 + $0x58] sm:$0xff]
                  %549 = vst [vmem:[%s525 + $0x58] sm:$0xff] %v548
                  %v550 = vld [vmem:[%s524 + $0x60] sm:$0xff]
                  %551 = vst [vmem:[%s525 + $0x60] sm:$0xff] %v550
                  %v552 = vld [vmem:[%s524 + $0x68] sm:$0xff]
                  %553 = vst [vmem:[%s525 + $0x68] sm:$0xff] %v552
                  %v554 = vld [vmem:[%s524 + $0x70] sm:$0xff]
                  %555 = vst [vmem:[%s525 + $0x70] sm:$0xff] %v554
                  %v556 = vld [vmem:[%s524 + $0x78] sm:$0xff]
                  %557 = vst [vmem:[%s525 + $0x78] sm:$0xff] %v556
                  %v558 = vld [vmem:[%s524 + $0x80] sm:$0xff]
                  %559 = vst [vmem:[%s525 + $0x80] sm:$0xff] %v558
                  %v560 = vld [vmem:[%s524 + $0x88] sm:$0xff]
                  %561 = vst [vmem:[%s525 + $0x88] sm:$0xff] %v560
                  %v562 = vld [vmem:[%s524 + $0x90] sm:$0xff]
                  %563 = vst [vmem:[%s525 + $0x90] sm:$0xff] %v562
                  %v564 = vld [vmem:[%s524 + $0x98] sm:$0xff]
                  %565 = vst [vmem:[%s525 + $0x98] sm:$0xff] %v564
                  %v566 = vld [vmem:[%s524 + $0xa0] sm:$0xff]
                  %567 = vst [vmem:[%s525 + $0xa0] sm:$0xff] %v566
                  %v568 = vld [vmem:[%s524 + $0xa8] sm:$0xff]
                  %569 = vst [vmem:[%s525 + $0xa8] sm:$0xff] %v568
                  %v570 = vld [vmem:[%s524 + $0xb0] sm:$0xff]
                  %571 = vst [vmem:[%s525 + $0xb0] sm:$0xff] %v570
                  %v572 = vld [vmem:[%s524 + $0xb8] sm:$0xff]
                  %573 = vst [vmem:[%s525 + $0xb8] sm:$0xff] %v572
                  %v574 = vld [vmem:[%s524 + $0xc0] sm:$0xff]
                  %575 = vst [vmem:[%s525 + $0xc0] sm:$0xff] %v574
                  %v576 = vld [vmem:[%s524 + $0xc8] sm:$0xff]
                  %577 = vst [vmem:[%s525 + $0xc8] sm:$0xff] %v576
                  %v578 = vld [vmem:[%s524 + $0xd0] sm:$0xff]
                  %579 = vst [vmem:[%s525 + $0xd0] sm:$0xff] %v578
                  %v580 = vld [vmem:[%s524 + $0xd8] sm:$0xff]
                  %581 = vst [vmem:[%s525 + $0xd8] sm:$0xff] %v580
                  %v582 = vld [vmem:[%s524 + $0xe0] sm:$0xff]
                  %583 = vst [vmem:[%s525 + $0xe0] sm:$0xff] %v582
                  %v584 = vld [vmem:[%s524 + $0xe8] sm:$0xff]
                  %585 = vst [vmem:[%s525 + $0xe8] sm:$0xff] %v584
                  %v586 = vld [vmem:[%s524 + $0xf0] sm:$0xff]
                  %587 = vst [vmem:[%s525 + $0xf0] sm:$0xff] %v586
                  %v588 = vld [vmem:[%s524 + $0xf8] sm:$0xff]
                  %589 = vst [vmem:[%s525 + $0xf8] sm:$0xff] %v588
                  %v590 = vld [vmem:[%s524 + $0x400] sm:$0xff]
                  %591 = vst [vmem:[%s525 + $0x100] sm:$0xff] %v590
                  %v592 = vld [vmem:[%s524 + $0x408] sm:$0xff]
                  %593 = vst [vmem:[%s525 + $0x108] sm:$0xff] %v592
                  %v594 = vld [vmem:[%s524 + $0x410] sm:$0xff]
                  %595 = vst [vmem:[%s525 + $0x110] sm:$0xff] %v594
                  %v596 = vld [vmem:[%s524 + $0x418] sm:$0xff]
                  %597 = vst [vmem:[%s525 + $0x118] sm:$0xff] %v596
                  %v598 = vld [vmem:[%s524 + $0x420] sm:$0xff]
                  %599 = vst [vmem:[%s525 + $0x120] sm:$0xff] %v598
                  %v600 = vld [vmem:[%s524 + $0x428] sm:$0xff]
                  %601 = vst [vmem:[%s525 + $0x128] sm:$0xff] %v600
                  %v602 = vld [vmem:[%s524 + $0x430] sm:$0xff]
                  %603 = vst [vmem:[%s525 + $0x130] sm:$0xff] %v602
                  %v604 = vld [vmem:[%s524 + $0x438] sm:$0xff]
                  %605 = vst [vmem:[%s525 + $0x138] sm:$0xff] %v604
                  %v606 = vld [vmem:[%s524 + $0x440] sm:$0xff]
                  %607 = vst [vmem:[%s525 + $0x140] sm:$0xff] %v606
                  %v608 = vld [vmem:[%s524 + $0x448] sm:$0xff]
                  %609 = vst [vmem:[%s525 + $0x148] sm:$0xff] %v608
                  %v610 = vld [vmem:[%s524 + $0x450] sm:$0xff]
                  %611 = vst [vmem:[%s525 + $0x150] sm:$0xff] %v610
                  %v612 = vld [vmem:[%s524 + $0x458] sm:$0xff]
                  %613 = vst [vmem:[%s525 + $0x158] sm:$0xff] %v612
                  %v614 = vld [vmem:[%s524 + $0x460] sm:$0xff]
                  %615 = vst [vmem:[%s525 + $0x160] sm:$0xff] %v614
                  %v616 = vld [vmem:[%s524 + $0x468] sm:$0xff]
                  %617 = vst [vmem:[%s525 + $0x168] sm:$0xff] %v616
                  %v618 = vld [vmem:[%s524 + $0x470] sm:$0xff]
                  %619 = vst [vmem:[%s525 + $0x170] sm:$0xff] %v618
                  %v620 = vld [vmem:[%s524 + $0x478] sm:$0xff]
                  %621 = vst [vmem:[%s525 + $0x178] sm:$0xff] %v620
                  %v622 = vld [vmem:[%s524 + $0x480] sm:$0xff]
                  %623 = vst [vmem:[%s525 + $0x180] sm:$0xff] %v622
                  %v624 = vld [vmem:[%s524 + $0x488] sm:$0xff]
                  %625 = vst [vmem:[%s525 + $0x188] sm:$0xff] %v624
                  %v626 = vld [vmem:[%s524 + $0x490] sm:$0xff]
                  %627 = vst [vmem:[%s525 + $0x190] sm:$0xff] %v626
                  %v628 = vld [vmem:[%s524 + $0x498] sm:$0xff]
                  %629 = vst [vmem:[%s525 + $0x198] sm:$0xff] %v628
                  %v630 = vld [vmem:[%s524 + $0x4a0] sm:$0xff]
                  %631 = vst [vmem:[%s525 + $0x1a0] sm:$0xff] %v630
                  %v632 = vld [vmem:[%s524 + $0x4a8] sm:$0xff]
                  %633 = vst [vmem:[%s525 + $0x1a8] sm:$0xff] %v632
                  %v634 = vld [vmem:[%s524 + $0x4b0] sm:$0xff]
                  %635 = vst [vmem:[%s525 + $0x1b0] sm:$0xff] %v634
                  %v636 = vld [vmem:[%s524 + $0x4b8] sm:$0xff]
                  %637 = vst [vmem:[%s525 + $0x1b8] sm:$0xff] %v636
                  %v638 = vld [vmem:[%s524 + $0x4c0] sm:$0xff]
                  %639 = vst [vmem:[%s525 + $0x1c0] sm:$0xff] %v638
                  %v640 = vld [vmem:[%s524 + $0x4c8] sm:$0xff]
                  %641 = vst [vmem:[%s525 + $0x1c8] sm:$0xff] %v640
                  %v642 = vld [vmem:[%s524 + $0x4d0] sm:$0xff]
                  %643 = vst [vmem:[%s525 + $0x1d0] sm:$0xff] %v642
                  %v644 = vld [vmem:[%s524 + $0x4d8] sm:$0xff]
                  %645 = vst [vmem:[%s525 + $0x1d8] sm:$0xff] %v644
                  %v646 = vld [vmem:[%s524 + $0x4e0] sm:$0xff]
                  %647 = vst [vmem:[%s525 + $0x1e0] sm:$0xff] %v646
                  %v648 = vld [vmem:[%s524 + $0x4e8] sm:$0xff]
                  %649 = vst [vmem:[%s525 + $0x1e8] sm:$0xff] %v648
                  %v650 = vld [vmem:[%s524 + $0x4f0] sm:$0xff]
                  %651 = vst [vmem:[%s525 + $0x1f0] sm:$0xff] %v650
                  %v652 = vld [vmem:[%s524 + $0x4f8] sm:$0xff]
                  %653 = vst [vmem:[%s525 + $0x1f8] sm:$0xff] %v652
                  %v654 = vld [vmem:[%s524 + $0x800] sm:$0xff]
                  %655 = vst [vmem:[%s525 + $0x200] sm:$0xff] %v654
                  %v656 = vld [vmem:[%s524 + $0x808] sm:$0xff]
                  %657 = vst [vmem:[%s525 + $0x208] sm:$0xff] %v656
                  %v658 = vld [vmem:[%s524 + $0x810] sm:$0xff]
                  %659 = vst [vmem:[%s525 + $0x210] sm:$0xff] %v658
                  %v660 = vld [vmem:[%s524 + $0x818] sm:$0xff]
                  %661 = vst [vmem:[%s525 + $0x218] sm:$0xff] %v660
                  %v662 = vld [vmem:[%s524 + $0x820] sm:$0xff]
                  %663 = vst [vmem:[%s525 + $0x220] sm:$0xff] %v662
                  %v664 = vld [vmem:[%s524 + $0x828] sm:$0xff]
                  %665 = vst [vmem:[%s525 + $0x228] sm:$0xff] %v664
                  %v666 = vld [vmem:[%s524 + $0x830] sm:$0xff]
                  %667 = vst [vmem:[%s525 + $0x230] sm:$0xff] %v666
                  %v668 = vld [vmem:[%s524 + $0x838] sm:$0xff]
                  %669 = vst [vmem:[%s525 + $0x238] sm:$0xff] %v668
                  %v670 = vld [vmem:[%s524 + $0x840] sm:$0xff]
                  %671 = vst [vmem:[%s525 + $0x240] sm:$0xff] %v670
                  %v672 = vld [vmem:[%s524 + $0x848] sm:$0xff]
                  %673 = vst [vmem:[%s525 + $0x248] sm:$0xff] %v672
                  %v674 = vld [vmem:[%s524 + $0x850] sm:$0xff]
                  %675 = vst [vmem:[%s525 + $0x250] sm:$0xff] %v674
                  %v676 = vld [vmem:[%s524 + $0x858] sm:$0xff]
                  %677 = vst [vmem:[%s525 + $0x258] sm:$0xff] %v676
                  %v678 = vld [vmem:[%s524 + $0x860] sm:$0xff]
                  %679 = vst [vmem:[%s525 + $0x260] sm:$0xff] %v678
                  %v680 = vld [vmem:[%s524 + $0x868] sm:$0xff]
                  %681 = vst [vmem:[%s525 + $0x268] sm:$0xff] %v680
                  %v682 = vld [vmem:[%s524 + $0x870] sm:$0xff]
                  %683 = vst [vmem:[%s525 + $0x270] sm:$0xff] %v682
                  %v684 = vld [vmem:[%s524 + $0x878] sm:$0xff]
                  %685 = vst [vmem:[%s525 + $0x278] sm:$0xff] %v684
                  %v686 = vld [vmem:[%s524 + $0x880] sm:$0xff]
                  %687 = vst [vmem:[%s525 + $0x280] sm:$0xff] %v686
                  %v688 = vld [vmem:[%s524 + $0x888] sm:$0xff]
                  %689 = vst [vmem:[%s525 + $0x288] sm:$0xff] %v688
                  %v690 = vld [vmem:[%s524 + $0x890] sm:$0xff]
                  %691 = vst [vmem:[%s525 + $0x290] sm:$0xff] %v690
                  %v692 = vld [vmem:[%s524 + $0x898] sm:$0xff]
                  %693 = vst [vmem:[%s525 + $0x298] sm:$0xff] %v692
                  %v694 = vld [vmem:[%s524 + $0x8a0] sm:$0xff]
                  %695 = vst [vmem:[%s525 + $0x2a0] sm:$0xff] %v694
                  %v696 = vld [vmem:[%s524 + $0x8a8] sm:$0xff]
                  %697 = vst [vmem:[%s525 + $0x2a8] sm:$0xff] %v696
                  %v698 = vld [vmem:[%s524 + $0x8b0] sm:$0xff]
                  %699 = vst [vmem:[%s525 + $0x2b0] sm:$0xff] %v698
                  %v700 = vld [vmem:[%s524 + $0x8b8] sm:$0xff]
                  %701 = vst [vmem:[%s525 + $0x2b8] sm:$0xff] %v700
                  %v702 = vld [vmem:[%s524 + $0x8c0] sm:$0xff]
                  %703 = vst [vmem:[%s525 + $0x2c0] sm:$0xff] %v702
                  %v704 = vld [vmem:[%s524 + $0x8c8] sm:$0xff]
                  %705 = vst [vmem:[%s525 + $0x2c8] sm:$0xff] %v704
                  %v706 = vld [vmem:[%s524 + $0x8d0] sm:$0xff]
                  %707 = vst [vmem:[%s525 + $0x2d0] sm:$0xff] %v706
                  %v708 = vld [vmem:[%s524 + $0x8d8] sm:$0xff]
                  %709 = vst [vmem:[%s525 + $0x2d8] sm:$0xff] %v708
                  %v710 = vld [vmem:[%s524 + $0x8e0] sm:$0xff]
                  %711 = vst [vmem:[%s525 + $0x2e0] sm:$0xff] %v710
                  %v712 = vld [vmem:[%s524 + $0x8e8] sm:$0xff]
                  %713 = vst [vmem:[%s525 + $0x2e8] sm:$0xff] %v712
                  %v714 = vld [vmem:[%s524 + $0x8f0] sm:$0xff]
                  %715 = vst [vmem:[%s525 + $0x2f0] sm:$0xff] %v714
                  %v716 = vld [vmem:[%s524 + $0x8f8] sm:$0xff]
                  %717 = vst [vmem:[%s525 + $0x2f8] sm:$0xff] %v716
                  %v718 = vld [vmem:[%s524 + $0xc00] sm:$0xff]
                  %719 = vst [vmem:[%s525 + $0x300] sm:$0xff] %v718
                  %v720 = vld [vmem:[%s524 + $0xc08] sm:$0xff]
                  %721 = vst [vmem:[%s525 + $0x308] sm:$0xff] %v720
                  %v722 = vld [vmem:[%s524 + $0xc10] sm:$0xff]
                  %723 = vst [vmem:[%s525 + $0x310] sm:$0xff] %v722
                  %v724 = vld [vmem:[%s524 + $0xc18] sm:$0xff]
                  %725 = vst [vmem:[%s525 + $0x318] sm:$0xff] %v724
                  %v726 = vld [vmem:[%s524 + $0xc20] sm:$0xff]
                  %727 = vst [vmem:[%s525 + $0x320] sm:$0xff] %v726
                  %v728 = vld [vmem:[%s524 + $0xc28] sm:$0xff]
                  %729 = vst [vmem:[%s525 + $0x328] sm:$0xff] %v728
                  %v730 = vld [vmem:[%s524 + $0xc30] sm:$0xff]
                  %731 = vst [vmem:[%s525 + $0x330] sm:$0xff] %v730
                  %v732 = vld [vmem:[%s524 + $0xc38] sm:$0xff]
                  %733 = vst [vmem:[%s525 + $0x338] sm:$0xff] %v732
                  %v734 = vld [vmem:[%s524 + $0xc40] sm:$0xff]
                  %735 = vst [vmem:[%s525 + $0x340] sm:$0xff] %v734
                  %v736 = vld [vmem:[%s524 + $0xc48] sm:$0xff]
                  %737 = vst [vmem:[%s525 + $0x348] sm:$0xff] %v736
                  %v738 = vld [vmem:[%s524 + $0xc50] sm:$0xff]
                  %739 = vst [vmem:[%s525 + $0x350] sm:$0xff] %v738
                  %v740 = vld [vmem:[%s524 + $0xc58] sm:$0xff]
                  %741 = vst [vmem:[%s525 + $0x358] sm:$0xff] %v740
                  %v742 = vld [vmem:[%s524 + $0xc60] sm:$0xff]
                  %743 = vst [vmem:[%s525 + $0x360] sm:$0xff] %v742
                  %v744 = vld [vmem:[%s524 + $0xc68] sm:$0xff]
                  %745 = vst [vmem:[%s525 + $0x368] sm:$0xff] %v744
                  %v746 = vld [vmem:[%s524 + $0xc70] sm:$0xff]
                  %747 = vst [vmem:[%s525 + $0x370] sm:$0xff] %v746
                  %v748 = vld [vmem:[%s524 + $0xc78] sm:$0xff]
                  %749 = vst [vmem:[%s525 + $0x378] sm:$0xff] %v748
                  %v750 = vld [vmem:[%s524 + $0xc80] sm:$0xff]
                  %751 = vst [vmem:[%s525 + $0x380] sm:$0xff] %v750
                  %v752 = vld [vmem:[%s524 + $0xc88] sm:$0xff]
                  %753 = vst [vmem:[%s525 + $0x388] sm:$0xff] %v752
                  %v754 = vld [vmem:[%s524 + $0xc90] sm:$0xff]
                  %755 = vst [vmem:[%s525 + $0x390] sm:$0xff] %v754
                  %v756 = vld [vmem:[%s524 + $0xc98] sm:$0xff]
                  %757 = vst [vmem:[%s525 + $0x398] sm:$0xff] %v756
                  %v758 = vld [vmem:[%s524 + $0xca0] sm:$0xff]
                  %759 = vst [vmem:[%s525 + $0x3a0] sm:$0xff] %v758
                  %v760 = vld [vmem:[%s524 + $0xca8] sm:$0xff]
                  %761 = vst [vmem:[%s525 + $0x3a8] sm:$0xff] %v760
                  %v762 = vld [vmem:[%s524 + $0xcb0] sm:$0xff]
                  %763 = vst [vmem:[%s525 + $0x3b0] sm:$0xff] %v762
                  %v764 = vld [vmem:[%s524 + $0xcb8] sm:$0xff]
                  %765 = vst [vmem:[%s525 + $0x3b8] sm:$0xff] %v764
                  %v766 = vld [vmem:[%s524 + $0xcc0] sm:$0xff]
                  %767 = vst [vmem:[%s525 + $0x3c0] sm:$0xff] %v766
                  %v768 = vld [vmem:[%s524 + $0xcc8] sm:$0xff]
                  %769 = vst [vmem:[%s525 + $0x3c8] sm:$0xff] %v768
                  %v770 = vld [vmem:[%s524 + $0xcd0] sm:$0xff]
                  %771 = vst [vmem:[%s525 + $0x3d0] sm:$0xff] %v770
                  %v772 = vld [vmem:[%s524 + $0xcd8] sm:$0xff]
                  %773 = vst [vmem:[%s525 + $0x3d8] sm:$0xff] %v772
                  %v774 = vld [vmem:[%s524 + $0xce0] sm:$0xff]
                  %775 = vst [vmem:[%s525 + $0x3e0] sm:$0xff] %v774
                  %v776 = vld [vmem:[%s524 + $0xce8] sm:$0xff]
                  %777 = vst [vmem:[%s525 + $0x3e8] sm:$0xff] %v776
                  %v778 = vld [vmem:[%s524 + $0xcf0] sm:$0xff]
                  %779 = vst [vmem:[%s525 + $0x3f0] sm:$0xff] %v778
                  %v780 = vld [vmem:[%s524 + $0xcf8] sm:$0xff]
                  %781 = vst [vmem:[%s525 + $0x3f8] sm:$0xff] %v780
                  %v782 = vld [vmem:[%s524 + $0x1000] sm:$0xff]
                  %783 = vst [vmem:[%s525 + $0x400] sm:$0xff] %v782
                  %v784 = vld [vmem:[%s524 + $0x1008] sm:$0xff]
                  %785 = vst [vmem:[%s525 + $0x408] sm:$0xff] %v784
                  %v786 = vld [vmem:[%s524 + $0x1010] sm:$0xff]
                  %787 = vst [vmem:[%s525 + $0x410] sm:$0xff] %v786
                  %v788 = vld [vmem:[%s524 + $0x1018] sm:$0xff]
                  %789 = vst [vmem:[%s525 + $0x418] sm:$0xff] %v788
                  %v790 = vld [vmem:[%s524 + $0x1020] sm:$0xff]
                  %791 = vst [vmem:[%s525 + $0x420] sm:$0xff] %v790
                  %v792 = vld [vmem:[%s524 + $0x1028] sm:$0xff]
                  %793 = vst [vmem:[%s525 + $0x428] sm:$0xff] %v792
                  %v794 = vld [vmem:[%s524 + $0x1030] sm:$0xff]
                  %795 = vst [vmem:[%s525 + $0x430] sm:$0xff] %v794
                  %v796 = vld [vmem:[%s524 + $0x1038] sm:$0xff]
                  %797 = vst [vmem:[%s525 + $0x438] sm:$0xff] %v796
                  %v798 = vld [vmem:[%s524 + $0x1040] sm:$0xff]
                  %799 = vst [vmem:[%s525 + $0x440] sm:$0xff] %v798
                  %v800 = vld [vmem:[%s524 + $0x1048] sm:$0xff]
                  %801 = vst [vmem:[%s525 + $0x448] sm:$0xff] %v800
                  %v802 = vld [vmem:[%s524 + $0x1050] sm:$0xff]
                  %803 = vst [vmem:[%s525 + $0x450] sm:$0xff] %v802
                  %v804 = vld [vmem:[%s524 + $0x1058] sm:$0xff]
                  %805 = vst [vmem:[%s525 + $0x458] sm:$0xff] %v804
                  %v806 = vld [vmem:[%s524 + $0x1060] sm:$0xff]
                  %807 = vst [vmem:[%s525 + $0x460] sm:$0xff] %v806
                  %v808 = vld [vmem:[%s524 + $0x1068] sm:$0xff]
                  %809 = vst [vmem:[%s525 + $0x468] sm:$0xff] %v808
                  %v810 = vld [vmem:[%s524 + $0x1070] sm:$0xff]
                  %811 = vst [vmem:[%s525 + $0x470] sm:$0xff] %v810
                  %v812 = vld [vmem:[%s524 + $0x1078] sm:$0xff]
                  %813 = vst [vmem:[%s525 + $0x478] sm:$0xff] %v812
                  %v814 = vld [vmem:[%s524 + $0x1080] sm:$0xff]
                  %815 = vst [vmem:[%s525 + $0x480] sm:$0xff] %v814
                  %v816 = vld [vmem:[%s524 + $0x1088] sm:$0xff]
                  %817 = vst [vmem:[%s525 + $0x488] sm:$0xff] %v816
                  %v818 = vld [vmem:[%s524 + $0x1090] sm:$0xff]
                  %819 = vst [vmem:[%s525 + $0x490] sm:$0xff] %v818
                  %v820 = vld [vmem:[%s524 + $0x1098] sm:$0xff]
                  %821 = vst [vmem:[%s525 + $0x498] sm:$0xff] %v820
                  %v822 = vld [vmem:[%s524 + $0x10a0] sm:$0xff]
                  %823 = vst [vmem:[%s525 + $0x4a0] sm:$0xff] %v822
                  %v824 = vld [vmem:[%s524 + $0x10a8] sm:$0xff]
                  %825 = vst [vmem:[%s525 + $0x4a8] sm:$0xff] %v824
                  %v826 = vld [vmem:[%s524 + $0x10b0] sm:$0xff]
                  %827 = vst [vmem:[%s525 + $0x4b0] sm:$0xff] %v826
                  %v828 = vld [vmem:[%s524 + $0x10b8] sm:$0xff]
                  %829 = vst [vmem:[%s525 + $0x4b8] sm:$0xff] %v828
                  %v830 = vld [vmem:[%s524 + $0x10c0] sm:$0xff]
                  %831 = vst [vmem:[%s525 + $0x4c0] sm:$0xff] %v830
                  %v832 = vld [vmem:[%s524 + $0x10c8] sm:$0xff]
                  %833 = vst [vmem:[%s525 + $0x4c8] sm:$0xff] %v832
                  %v834 = vld [vmem:[%s524 + $0x10d0] sm:$0xff]
                  %835 = vst [vmem:[%s525 + $0x4d0] sm:$0xff] %v834
                  %v836 = vld [vmem:[%s524 + $0x10d8] sm:$0xff]
                  %837 = vst [vmem:[%s525 + $0x4d8] sm:$0xff] %v836
                  %v838 = vld [vmem:[%s524 + $0x10e0] sm:$0xff]
                  %839 = vst [vmem:[%s525 + $0x4e0] sm:$0xff] %v838
                  %v840 = vld [vmem:[%s524 + $0x10e8] sm:$0xff]
                  %841 = vst [vmem:[%s525 + $0x4e8] sm:$0xff] %v840
                  %v842 = vld [vmem:[%s524 + $0x10f0] sm:$0xff]
                  %843 = vst [vmem:[%s525 + $0x4f0] sm:$0xff] %v842
                  %v844 = vld [vmem:[%s524 + $0x10f8] sm:$0xff]
                  %845 = vst [vmem:[%s525 + $0x4f8] sm:$0xff] %v844
                $region52: #{tpu_custom_call.1} parent=46 // loop_footer
                  %s523 = sadd.s32 1, %s519
                $region53: #{tpu_custom_call.1} parent=46 // loop_footer_branch
                  %518 = sbr.rel target = $region49
                $region54: #{tpu_custom_call.1} parent=46 // loop_exit
                  _
              $region47: #{tpu_custom_call.1} parent=31 // pred_fallthru
                _
              // Predicated region
              $region55: #{tpu_custom_call.1} parent=31 // pred_check
                _
              $region56: #{tpu_custom_call.1} parent=31 // pred_check_branch
                %847 = sbr.rel target = $region58
              $region57: #{tpu_custom_call.1} parent=31 // pred_region
                _
              $region58: #{tpu_custom_call.1} parent=31 // pred_fallthru
                _
            $region32: #{tpu_custom_call.1} parent=27 // pred_fallthru
              _
            // Predicated region
            $region33: #{tpu_custom_call.1} parent=27 // pred_check
              _
            $region34: #{tpu_custom_call.1} parent=27 // pred_check_branch
              %186 = sbr.rel target = $region36
            $region35: #{tpu_custom_call.1} parent=27 // pred_region
              loop: start=0, step=1, limit=1
              $region37: #{tpu_custom_call.1} parent=35 // loop_pre_header
                _
              $region38: #{tpu_custom_call.1} parent=35 // loop_header
                %s189 = sphi 0, %s193
                %p190 = scmp.ge.s32.totalorder %s189, 1
                %s194 = sphi %s180, %s180
                %s195 = sphi %s175, %s175
              $region39: #{tpu_custom_call.1} parent=35 // loop_header_branch
                %192 = sbr.rel (%p190) target = $region43
              $region40: #{tpu_custom_call.1} parent=35 // loop_body
                %v196 = vld [vmem:[%s194] sm:$0xff]
                %197 = vst [vmem:[%s195] sm:$0xff] %v196
                %v198 = vld [vmem:[%s194 + $0x8] sm:$0xff]
                %199 = vst [vmem:[%s195 + $0x8] sm:$0xff] %v198
                %v200 = vld [vmem:[%s194 + $0x10] sm:$0xff]
                %201 = vst [vmem:[%s195 + $0x10] sm:$0xff] %v200
                %v202 = vld [vmem:[%s194 + $0x18] sm:$0xff]
                %203 = vst [vmem:[%s195 + $0x18] sm:$0xff] %v202
                %v204 = vld [vmem:[%s194 + $0x20] sm:$0xff]
                %205 = vst [vmem:[%s195 + $0x20] sm:$0xff] %v204
                %v206 = vld [vmem:[%s194 + $0x28] sm:$0xff]
                %207 = vst [vmem:[%s195 + $0x28] sm:$0xff] %v206
                %v208 = vld [vmem:[%s194 + $0x30] sm:$0xff]
                %209 = vst [vmem:[%s195 + $0x30] sm:$0xff] %v208
                %v210 = vld [vmem:[%s194 + $0x38] sm:$0xff]
                %211 = vst [vmem:[%s195 + $0x38] sm:$0xff] %v210
                %v212 = vld [vmem:[%s194 + $0x40] sm:$0xff]
                %213 = vst [vmem:[%s195 + $0x40] sm:$0xff] %v212
                %v214 = vld [vmem:[%s194 + $0x48] sm:$0xff]
                %215 = vst [vmem:[%s195 + $0x48] sm:$0xff] %v214
                %v216 = vld [vmem:[%s194 + $0x50] sm:$0xff]
                %217 = vst [vmem:[%s195 + $0x50] sm:$0xff] %v216
                %v218 = vld [vmem:[%s194 + $0x58] sm:$0xff]
                %219 = vst [vmem:[%s195 + $0x58] sm:$0xff] %v218
                %v220 = vld [vmem:[%s194 + $0x60] sm:$0xff]
                %221 = vst [vmem:[%s195 + $0x60] sm:$0xff] %v220
                %v222 = vld [vmem:[%s194 + $0x68] sm:$0xff]
                %223 = vst [vmem:[%s195 + $0x68] sm:$0xff] %v222
                %v224 = vld [vmem:[%s194 + $0x70] sm:$0xff]
                %225 = vst [vmem:[%s195 + $0x70] sm:$0xff] %v224
                %v226 = vld [vmem:[%s194 + $0x78] sm:$0xff]
                %227 = vst [vmem:[%s195 + $0x78] sm:$0xff] %v226
                %v228 = vld [vmem:[%s194 + $0x80] sm:$0xff]
                %229 = vst [vmem:[%s195 + $0x80] sm:$0xff] %v228
                %v230 = vld [vmem:[%s194 + $0x88] sm:$0xff]
                %231 = vst [vmem:[%s195 + $0x88] sm:$0xff] %v230
                %v232 = vld [vmem:[%s194 + $0x90] sm:$0xff]
                %233 = vst [vmem:[%s195 + $0x90] sm:$0xff] %v232
                %v234 = vld [vmem:[%s194 + $0x98] sm:$0xff]
                %235 = vst [vmem:[%s195 + $0x98] sm:$0xff] %v234
                %v236 = vld [vmem:[%s194 + $0xa0] sm:$0xff]
                %237 = vst [vmem:[%s195 + $0xa0] sm:$0xff] %v236
                %v238 = vld [vmem:[%s194 + $0xa8] sm:$0xff]
                %239 = vst [vmem:[%s195 + $0xa8] sm:$0xff] %v238
                %v240 = vld [vmem:[%s194 + $0xb0] sm:$0xff]
                %241 = vst [vmem:[%s195 + $0xb0] sm:$0xff] %v240
                %v242 = vld [vmem:[%s194 + $0xb8] sm:$0xff]
                %243 = vst [vmem:[%s195 + $0xb8] sm:$0xff] %v242
                %v244 = vld [vmem:[%s194 + $0xc0] sm:$0xff]
                %245 = vst [vmem:[%s195 + $0xc0] sm:$0xff] %v244
                %v246 = vld [vmem:[%s194 + $0xc8] sm:$0xff]
                %247 = vst [vmem:[%s195 + $0xc8] sm:$0xff] %v246
                %v248 = vld [vmem:[%s194 + $0xd0] sm:$0xff]
                %249 = vst [vmem:[%s195 + $0xd0] sm:$0xff] %v248
                %v250 = vld [vmem:[%s194 + $0xd8] sm:$0xff]
                %251 = vst [vmem:[%s195 + $0xd8] sm:$0xff] %v250
                %v252 = vld [vmem:[%s194 + $0xe0] sm:$0xff]
                %253 = vst [vmem:[%s195 + $0xe0] sm:$0xff] %v252
                %v254 = vld [vmem:[%s194 + $0xe8] sm:$0xff]
                %255 = vst [vmem:[%s195 + $0xe8] sm:$0xff] %v254
                %v256 = vld [vmem:[%s194 + $0xf0] sm:$0xff]
                %257 = vst [vmem:[%s195 + $0xf0] sm:$0xff] %v256
                %v258 = vld [vmem:[%s194 + $0xf8] sm:$0xff]
                %259 = vst [vmem:[%s195 + $0xf8] sm:$0xff] %v258
                %v260 = vld [vmem:[%s194 + $0x400] sm:$0xff]
                %261 = vst [vmem:[%s195 + $0x100] sm:$0xff] %v260
                %v262 = vld [vmem:[%s194 + $0x408] sm:$0xff]
                %263 = vst [vmem:[%s195 + $0x108] sm:$0xff] %v262
                %v264 = vld [vmem:[%s194 + $0x410] sm:$0xff]
                %265 = vst [vmem:[%s195 + $0x110] sm:$0xff] %v264
                %v266 = vld [vmem:[%s194 + $0x418] sm:$0xff]
                %267 = vst [vmem:[%s195 + $0x118] sm:$0xff] %v266
                %v268 = vld [vmem:[%s194 + $0x420] sm:$0xff]
                %269 = vst [vmem:[%s195 + $0x120] sm:$0xff] %v268
                %v270 = vld [vmem:[%s194 + $0x428] sm:$0xff]
                %271 = vst [vmem:[%s195 + $0x128] sm:$0xff] %v270
                %v272 = vld [vmem:[%s194 + $0x430] sm:$0xff]
                %273 = vst [vmem:[%s195 + $0x130] sm:$0xff] %v272
                %v274 = vld [vmem:[%s194 + $0x438] sm:$0xff]
                %275 = vst [vmem:[%s195 + $0x138] sm:$0xff] %v274
                %v276 = vld [vmem:[%s194 + $0x440] sm:$0xff]
                %277 = vst [vmem:[%s195 + $0x140] sm:$0xff] %v276
                %v278 = vld [vmem:[%s194 + $0x448] sm:$0xff]
                %279 = vst [vmem:[%s195 + $0x148] sm:$0xff] %v278
                %v280 = vld [vmem:[%s194 + $0x450] sm:$0xff]
                %281 = vst [vmem:[%s195 + $0x150] sm:$0xff] %v280
                %v282 = vld [vmem:[%s194 + $0x458] sm:$0xff]
                %283 = vst [vmem:[%s195 + $0x158] sm:$0xff] %v282
                %v284 = vld [vmem:[%s194 + $0x460] sm:$0xff]
                %285 = vst [vmem:[%s195 + $0x160] sm:$0xff] %v284
                %v286 = vld [vmem:[%s194 + $0x468] sm:$0xff]
                %287 = vst [vmem:[%s195 + $0x168] sm:$0xff] %v286
                %v288 = vld [vmem:[%s194 + $0x470] sm:$0xff]
                %289 = vst [vmem:[%s195 + $0x170] sm:$0xff] %v288
                %v290 = vld [vmem:[%s194 + $0x478] sm:$0xff]
                %291 = vst [vmem:[%s195 + $0x178] sm:$0xff] %v290
                %v292 = vld [vmem:[%s194 + $0x480] sm:$0xff]
                %293 = vst [vmem:[%s195 + $0x180] sm:$0xff] %v292
                %v294 = vld [vmem:[%s194 + $0x488] sm:$0xff]
                %295 = vst [vmem:[%s195 + $0x188] sm:$0xff] %v294
                %v296 = vld [vmem:[%s194 + $0x490] sm:$0xff]
                %297 = vst [vmem:[%s195 + $0x190] sm:$0xff] %v296
                %v298 = vld [vmem:[%s194 + $0x498] sm:$0xff]
                %299 = vst [vmem:[%s195 + $0x198] sm:$0xff] %v298
                %v300 = vld [vmem:[%s194 + $0x4a0] sm:$0xff]
                %301 = vst [vmem:[%s195 + $0x1a0] sm:$0xff] %v300
                %v302 = vld [vmem:[%s194 + $0x4a8] sm:$0xff]
                %303 = vst [vmem:[%s195 + $0x1a8] sm:$0xff] %v302
                %v304 = vld [vmem:[%s194 + $0x4b0] sm:$0xff]
                %305 = vst [vmem:[%s195 + $0x1b0] sm:$0xff] %v304
                %v306 = vld [vmem:[%s194 + $0x4b8] sm:$0xff]
                %307 = vst [vmem:[%s195 + $0x1b8] sm:$0xff] %v306
                %v308 = vld [vmem:[%s194 + $0x4c0] sm:$0xff]
                %309 = vst [vmem:[%s195 + $0x1c0] sm:$0xff] %v308
                %v310 = vld [vmem:[%s194 + $0x4c8] sm:$0xff]
                %311 = vst [vmem:[%s195 + $0x1c8] sm:$0xff] %v310
                %v312 = vld [vmem:[%s194 + $0x4d0] sm:$0xff]
                %313 = vst [vmem:[%s195 + $0x1d0] sm:$0xff] %v312
                %v314 = vld [vmem:[%s194 + $0x4d8] sm:$0xff]
                %315 = vst [vmem:[%s195 + $0x1d8] sm:$0xff] %v314
                %v316 = vld [vmem:[%s194 + $0x4e0] sm:$0xff]
                %317 = vst [vmem:[%s195 + $0x1e0] sm:$0xff] %v316
                %v318 = vld [vmem:[%s194 + $0x4e8] sm:$0xff]
                %319 = vst [vmem:[%s195 + $0x1e8] sm:$0xff] %v318
                %v320 = vld [vmem:[%s194 + $0x4f0] sm:$0xff]
                %321 = vst [vmem:[%s195 + $0x1f0] sm:$0xff] %v320
                %v322 = vld [vmem:[%s194 + $0x4f8] sm:$0xff]
                %323 = vst [vmem:[%s195 + $0x1f8] sm:$0xff] %v322
                %v324 = vld [vmem:[%s194 + $0x800] sm:$0xff]
                %325 = vst [vmem:[%s195 + $0x200] sm:$0xff] %v324
                %v326 = vld [vmem:[%s194 + $0x808] sm:$0xff]
                %327 = vst [vmem:[%s195 + $0x208] sm:$0xff] %v326
                %v328 = vld [vmem:[%s194 + $0x810] sm:$0xff]
                %329 = vst [vmem:[%s195 + $0x210] sm:$0xff] %v328
                %v330 = vld [vmem:[%s194 + $0x818] sm:$0xff]
                %331 = vst [vmem:[%s195 + $0x218] sm:$0xff] %v330
                %v332 = vld [vmem:[%s194 + $0x820] sm:$0xff]
                %333 = vst [vmem:[%s195 + $0x220] sm:$0xff] %v332
                %v334 = vld [vmem:[%s194 + $0x828] sm:$0xff]
                %335 = vst [vmem:[%s195 + $0x228] sm:$0xff] %v334
                %v336 = vld [vmem:[%s194 + $0x830] sm:$0xff]
                %337 = vst [vmem:[%s195 + $0x230] sm:$0xff] %v336
                %v338 = vld [vmem:[%s194 + $0x838] sm:$0xff]
                %339 = vst [vmem:[%s195 + $0x238] sm:$0xff] %v338
                %v340 = vld [vmem:[%s194 + $0x840] sm:$0xff]
                %341 = vst [vmem:[%s195 + $0x240] sm:$0xff] %v340
                %v342 = vld [vmem:[%s194 + $0x848] sm:$0xff]
                %343 = vst [vmem:[%s195 + $0x248] sm:$0xff] %v342
                %v344 = vld [vmem:[%s194 + $0x850] sm:$0xff]
                %345 = vst [vmem:[%s195 + $0x250] sm:$0xff] %v344
                %v346 = vld [vmem:[%s194 + $0x858] sm:$0xff]
                %347 = vst [vmem:[%s195 + $0x258] sm:$0xff] %v346
                %v348 = vld [vmem:[%s194 + $0x860] sm:$0xff]
                %349 = vst [vmem:[%s195 + $0x260] sm:$0xff] %v348
                %v350 = vld [vmem:[%s194 + $0x868] sm:$0xff]
                %351 = vst [vmem:[%s195 + $0x268] sm:$0xff] %v350
                %v352 = vld [vmem:[%s194 + $0x870] sm:$0xff]
                %353 = vst [vmem:[%s195 + $0x270] sm:$0xff] %v352
                %v354 = vld [vmem:[%s194 + $0x878] sm:$0xff]
                %355 = vst [vmem:[%s195 + $0x278] sm:$0xff] %v354
                %v356 = vld [vmem:[%s194 + $0x880] sm:$0xff]
                %357 = vst [vmem:[%s195 + $0x280] sm:$0xff] %v356
                %v358 = vld [vmem:[%s194 + $0x888] sm:$0xff]
                %359 = vst [vmem:[%s195 + $0x288] sm:$0xff] %v358
                %v360 = vld [vmem:[%s194 + $0x890] sm:$0xff]
                %361 = vst [vmem:[%s195 + $0x290] sm:$0xff] %v360
                %v362 = vld [vmem:[%s194 + $0x898] sm:$0xff]
                %363 = vst [vmem:[%s195 + $0x298] sm:$0xff] %v362
                %v364 = vld [vmem:[%s194 + $0x8a0] sm:$0xff]
                %365 = vst [vmem:[%s195 + $0x2a0] sm:$0xff] %v364
                %v366 = vld [vmem:[%s194 + $0x8a8] sm:$0xff]
                %367 = vst [vmem:[%s195 + $0x2a8] sm:$0xff] %v366
                %v368 = vld [vmem:[%s194 + $0x8b0] sm:$0xff]
                %369 = vst [vmem:[%s195 + $0x2b0] sm:$0xff] %v368
                %v370 = vld [vmem:[%s194 + $0x8b8] sm:$0xff]
                %371 = vst [vmem:[%s195 + $0x2b8] sm:$0xff] %v370
                %v372 = vld [vmem:[%s194 + $0x8c0] sm:$0xff]
                %373 = vst [vmem:[%s195 + $0x2c0] sm:$0xff] %v372
                %v374 = vld [vmem:[%s194 + $0x8c8] sm:$0xff]
                %375 = vst [vmem:[%s195 + $0x2c8] sm:$0xff] %v374
                %v376 = vld [vmem:[%s194 + $0x8d0] sm:$0xff]
                %377 = vst [vmem:[%s195 + $0x2d0] sm:$0xff] %v376
                %v378 = vld [vmem:[%s194 + $0x8d8] sm:$0xff]
                %379 = vst [vmem:[%s195 + $0x2d8] sm:$0xff] %v378
                %v380 = vld [vmem:[%s194 + $0x8e0] sm:$0xff]
                %381 = vst [vmem:[%s195 + $0x2e0] sm:$0xff] %v380
                %v382 = vld [vmem:[%s194 + $0x8e8] sm:$0xff]
                %383 = vst [vmem:[%s195 + $0x2e8] sm:$0xff] %v382
                %v384 = vld [vmem:[%s194 + $0x8f0] sm:$0xff]
                %385 = vst [vmem:[%s195 + $0x2f0] sm:$0xff] %v384
                %v386 = vld [vmem:[%s194 + $0x8f8] sm:$0xff]
                %387 = vst [vmem:[%s195 + $0x2f8] sm:$0xff] %v386
                %v388 = vld [vmem:[%s194 + $0xc00] sm:$0xff]
                %389 = vst [vmem:[%s195 + $0x300] sm:$0xff] %v388
                %v390 = vld [vmem:[%s194 + $0xc08] sm:$0xff]
                %391 = vst [vmem:[%s195 + $0x308] sm:$0xff] %v390
                %v392 = vld [vmem:[%s194 + $0xc10] sm:$0xff]
                %393 = vst [vmem:[%s195 + $0x310] sm:$0xff] %v392
                %v394 = vld [vmem:[%s194 + $0xc18] sm:$0xff]
                %395 = vst [vmem:[%s195 + $0x318] sm:$0xff] %v394
                %v396 = vld [vmem:[%s194 + $0xc20] sm:$0xff]
                %397 = vst [vmem:[%s195 + $0x320] sm:$0xff] %v396
                %v398 = vld [vmem:[%s194 + $0xc28] sm:$0xff]
                %399 = vst [vmem:[%s195 + $0x328] sm:$0xff] %v398
                %v400 = vld [vmem:[%s194 + $0xc30] sm:$0xff]
                %401 = vst [vmem:[%s195 + $0x330] sm:$0xff] %v400
                %v402 = vld [vmem:[%s194 + $0xc38] sm:$0xff]
                %403 = vst [vmem:[%s195 + $0x338] sm:$0xff] %v402
                %v404 = vld [vmem:[%s194 + $0xc40] sm:$0xff]
                %405 = vst [vmem:[%s195 + $0x340] sm:$0xff] %v404
                %v406 = vld [vmem:[%s194 + $0xc48] sm:$0xff]
                %407 = vst [vmem:[%s195 + $0x348] sm:$0xff] %v406
                %v408 = vld [vmem:[%s194 + $0xc50] sm:$0xff]
                %409 = vst [vmem:[%s195 + $0x350] sm:$0xff] %v408
                %v410 = vld [vmem:[%s194 + $0xc58] sm:$0xff]
                %411 = vst [vmem:[%s195 + $0x358] sm:$0xff] %v410
                %v412 = vld [vmem:[%s194 + $0xc60] sm:$0xff]
                %413 = vst [vmem:[%s195 + $0x360] sm:$0xff] %v412
                %v414 = vld [vmem:[%s194 + $0xc68] sm:$0xff]
                %415 = vst [vmem:[%s195 + $0x368] sm:$0xff] %v414
                %v416 = vld [vmem:[%s194 + $0xc70] sm:$0xff]
                %417 = vst [vmem:[%s195 + $0x370] sm:$0xff] %v416
                %v418 = vld [vmem:[%s194 + $0xc78] sm:$0xff]
                %419 = vst [vmem:[%s195 + $0x378] sm:$0xff] %v418
                %v420 = vld [vmem:[%s194 + $0xc80] sm:$0xff]
                %421 = vst [vmem:[%s195 + $0x380] sm:$0xff] %v420
                %v422 = vld [vmem:[%s194 + $0xc88] sm:$0xff]
                %423 = vst [vmem:[%s195 + $0x388] sm:$0xff] %v422
                %v424 = vld [vmem:[%s194 + $0xc90] sm:$0xff]
                %425 = vst [vmem:[%s195 + $0x390] sm:$0xff] %v424
                %v426 = vld [vmem:[%s194 + $0xc98] sm:$0xff]
                %427 = vst [vmem:[%s195 + $0x398] sm:$0xff] %v426
                %v428 = vld [vmem:[%s194 + $0xca0] sm:$0xff]
                %429 = vst [vmem:[%s195 + $0x3a0] sm:$0xff] %v428
                %v430 = vld [vmem:[%s194 + $0xca8] sm:$0xff]
                %431 = vst [vmem:[%s195 + $0x3a8] sm:$0xff] %v430
                %v432 = vld [vmem:[%s194 + $0xcb0] sm:$0xff]
                %433 = vst [vmem:[%s195 + $0x3b0] sm:$0xff] %v432
                %v434 = vld [vmem:[%s194 + $0xcb8] sm:$0xff]
                %435 = vst [vmem:[%s195 + $0x3b8] sm:$0xff] %v434
                %v436 = vld [vmem:[%s194 + $0xcc0] sm:$0xff]
                %437 = vst [vmem:[%s195 + $0x3c0] sm:$0xff] %v436
                %v438 = vld [vmem:[%s194 + $0xcc8] sm:$0xff]
                %439 = vst [vmem:[%s195 + $0x3c8] sm:$0xff] %v438
                %v440 = vld [vmem:[%s194 + $0xcd0] sm:$0xff]
                %441 = vst [vmem:[%s195 + $0x3d0] sm:$0xff] %v440
                %v442 = vld [vmem:[%s194 + $0xcd8] sm:$0xff]
                %443 = vst [vmem:[%s195 + $0x3d8] sm:$0xff] %v442
                %v444 = vld [vmem:[%s194 + $0xce0] sm:$0xff]
                %445 = vst [vmem:[%s195 + $0x3e0] sm:$0xff] %v444
                %v446 = vld [vmem:[%s194 + $0xce8] sm:$0xff]
                %447 = vst [vmem:[%s195 + $0x3e8] sm:$0xff] %v446
                %v448 = vld [vmem:[%s194 + $0xcf0] sm:$0xff]
                %449 = vst [vmem:[%s195 + $0x3f0] sm:$0xff] %v448
                %v450 = vld [vmem:[%s194 + $0xcf8] sm:$0xff]
                %451 = vst [vmem:[%s195 + $0x3f8] sm:$0xff] %v450
                %v452 = vld [vmem:[%s194 + $0x1000] sm:$0xff]
                %453 = vst [vmem:[%s195 + $0x400] sm:$0xff] %v452
                %v454 = vld [vmem:[%s194 + $0x1008] sm:$0xff]
                %455 = vst [vmem:[%s195 + $0x408] sm:$0xff] %v454
                %v456 = vld [vmem:[%s194 + $0x1010] sm:$0xff]
                %457 = vst [vmem:[%s195 + $0x410] sm:$0xff] %v456
                %v458 = vld [vmem:[%s194 + $0x1018] sm:$0xff]
                %459 = vst [vmem:[%s195 + $0x418] sm:$0xff] %v458
                %v460 = vld [vmem:[%s194 + $0x1020] sm:$0xff]
                %461 = vst [vmem:[%s195 + $0x420] sm:$0xff] %v460
                %v462 = vld [vmem:[%s194 + $0x1028] sm:$0xff]
                %463 = vst [vmem:[%s195 + $0x428] sm:$0xff] %v462
                %v464 = vld [vmem:[%s194 + $0x1030] sm:$0xff]
                %465 = vst [vmem:[%s195 + $0x430] sm:$0xff] %v464
                %v466 = vld [vmem:[%s194 + $0x1038] sm:$0xff]
                %467 = vst [vmem:[%s195 + $0x438] sm:$0xff] %v466
                %v468 = vld [vmem:[%s194 + $0x1040] sm:$0xff]
                %469 = vst [vmem:[%s195 + $0x440] sm:$0xff] %v468
                %v470 = vld [vmem:[%s194 + $0x1048] sm:$0xff]
                %471 = vst [vmem:[%s195 + $0x448] sm:$0xff] %v470
                %v472 = vld [vmem:[%s194 + $0x1050] sm:$0xff]
                %473 = vst [vmem:[%s195 + $0x450] sm:$0xff] %v472
                %v474 = vld [vmem:[%s194 + $0x1058] sm:$0xff]
                %475 = vst [vmem:[%s195 + $0x458] sm:$0xff] %v474
                %v476 = vld [vmem:[%s194 + $0x1060] sm:$0xff]
                %477 = vst [vmem:[%s195 + $0x460] sm:$0xff] %v476
                %v478 = vld [vmem:[%s194 + $0x1068] sm:$0xff]
                %479 = vst [vmem:[%s195 + $0x468] sm:$0xff] %v478
                %v480 = vld [vmem:[%s194 + $0x1070] sm:$0xff]
                %481 = vst [vmem:[%s195 + $0x470] sm:$0xff] %v480
                %v482 = vld [vmem:[%s194 + $0x1078] sm:$0xff]
                %483 = vst [vmem:[%s195 + $0x478] sm:$0xff] %v482
                %v484 = vld [vmem:[%s194 + $0x1080] sm:$0xff]
                %485 = vst [vmem:[%s195 + $0x480] sm:$0xff] %v484
                %v486 = vld [vmem:[%s194 + $0x1088] sm:$0xff]
                %487 = vst [vmem:[%s195 + $0x488] sm:$0xff] %v486
                %v488 = vld [vmem:[%s194 + $0x1090] sm:$0xff]
                %489 = vst [vmem:[%s195 + $0x490] sm:$0xff] %v488
                %v490 = vld [vmem:[%s194 + $0x1098] sm:$0xff]
                %491 = vst [vmem:[%s195 + $0x498] sm:$0xff] %v490
                %v492 = vld [vmem:[%s194 + $0x10a0] sm:$0xff]
                %493 = vst [vmem:[%s195 + $0x4a0] sm:$0xff] %v492
                %v494 = vld [vmem:[%s194 + $0x10a8] sm:$0xff]
                %495 = vst [vmem:[%s195 + $0x4a8] sm:$0xff] %v494
                %v496 = vld [vmem:[%s194 + $0x10b0] sm:$0xff]
                %497 = vst [vmem:[%s195 + $0x4b0] sm:$0xff] %v496
                %v498 = vld [vmem:[%s194 + $0x10b8] sm:$0xff]
                %499 = vst [vmem:[%s195 + $0x4b8] sm:$0xff] %v498
                %v500 = vld [vmem:[%s194 + $0x10c0] sm:$0xff]
                %501 = vst [vmem:[%s195 + $0x4c0] sm:$0xff] %v500
                %v502 = vld [vmem:[%s194 + $0x10c8] sm:$0xff]
                %503 = vst [vmem:[%s195 + $0x4c8] sm:$0xff] %v502
                %v504 = vld [vmem:[%s194 + $0x10d0] sm:$0xff]
                %505 = vst [vmem:[%s195 + $0x4d0] sm:$0xff] %v504
                %v506 = vld [vmem:[%s194 + $0x10d8] sm:$0xff]
                %507 = vst [vmem:[%s195 + $0x4d8] sm:$0xff] %v506
                %v508 = vld [vmem:[%s194 + $0x10e0] sm:$0xff]
                %509 = vst [vmem:[%s195 + $0x4e0] sm:$0xff] %v508
                %v510 = vld [vmem:[%s194 + $0x10e8] sm:$0xff]
                %511 = vst [vmem:[%s195 + $0x4e8] sm:$0xff] %v510
                %v512 = vld [vmem:[%s194 + $0x10f0] sm:$0xff]
                %513 = vst [vmem:[%s195 + $0x4f0] sm:$0xff] %v512
                %v514 = vld [vmem:[%s194 + $0x10f8] sm:$0xff]
                %515 = vst [vmem:[%s195 + $0x4f8] sm:$0xff] %v514
              $region41: #{tpu_custom_call.1} parent=35 // loop_footer
                %s193 = sadd.s32 1, %s189
              $region42: #{tpu_custom_call.1} parent=35 // loop_footer_branch
                %188 = sbr.rel target = $region38
              $region43: #{tpu_custom_call.1} parent=35 // loop_exit
                _
            $region36: #{tpu_custom_call.1} parent=27 // pred_fallthru
              _
          $region28: #{tpu_custom_call.1} parent=23 // pred_fallthru
            _
          %848 = vnop
        $region24: #{tpu_custom_call.1} parent=15 // pred_fallthru
          _
        // Predicated region
        $region59: #{tpu_custom_call.1} parent=15 // pred_check
          %p849 = pneg %p105
        $region60: #{tpu_custom_call.1} parent=15 // pred_check_branch
          %851 = sbr.rel (%p849) target = $region62
        $region61: #{tpu_custom_call.1} parent=15 // pred_region
          %s852 = smul.u32 %s16, 2
          %s853 = sadd.s32 %s852, %s17
          %s854 = smul.u32 32, %s853
          %p855 = scmp.lt.s32.totalorder %s854, 127
          %s856 = scalar_select %p855, %s854, 127
          %s857 = smul.addr %s856, 8
          %s858 = scalar_lea.vmem %s2, %s857
          %s859 = smul.u32 %s16, 2
          %s860 = sadd.s32 %s859, %s17
          %s861 = smul.u32 32, %s860
        $region62: #{tpu_custom_call.1} parent=15 // pred_fallthru
          _
      $region16: #{tpu_custom_call.1} parent=5 // pred_fallthru
        _
      %p862 = scmp.le.s32.totalorder 1, %s9
      %p863 = scmp.lt.s32.totalorder %s9, 5
      %p864 = pnand %p862, %p863
      %p865 = pneg %p864
      // Predicated region
      $region63: #{tpu_custom_call.1} parent=5 // pred_check
        _
      $region64: #{tpu_custom_call.1} parent=5 // pred_check_branch
        %867 = sbr.rel (%p864) target = $region66
      $region65: #{tpu_custom_call.1} parent=5 // pred_region
        %s868 = ssub.s32 %s9, 1
        %s869 = sand.u32 %s68, 1
        %s870 = sand.u32 %s68, 1
        %s871 = smul.addr %s870, 1280
        %s872 = scalar_lea.vmem [#allocation3], %s871
        // Predicated region
        $region67: #{tpu_custom_call.1} parent=65 // pred_check
          %p873 = pneg %p81
        $region68: #{tpu_custom_call.1} parent=65 // pred_check_branch
          %875 = sbr.rel (%p873) target = $region70
        $region69: #{tpu_custom_call.1} parent=65 // pred_region
          _
        $region70: #{tpu_custom_call.1} parent=65 // pred_fallthru
          _
        %s876 = smul.u32 %s18, 2
        %s877 = sadd.s32 %s876, %s19
        %s878 = smul.u32 32, %s877
        %p879 = scmp.lt.s32.totalorder %s878, 127
        %s880 = scalar_select %p879, %s878, 127
        %s881 = smul.addr %s880, 8
        %s882 = scalar_lea.vmem %s0, %s881
        %p883 = pneg %p51
        %p884 = pneg %p48
        %s885 = sand.u32 %s68, 1
        %s886 = sand.u32 %s68, 1
        %s887 = smul.addr %s886, 1280
        %s888 = scalar_lea.vmem [#allocation3], %s887
        %p889 = pneg %p81
        %p890 = pneg %p78
        %s891 = smul.u32 %s18, 2
        %s892 = sadd.s32 %s891, %s19
        %s893 = smul.u32 32, %s892
        %p894 = scmp.lt.s32.totalorder %s893, 127
        %s895 = scalar_select %p894, %s893, 127
        %s896 = smul.addr %s895, 8
        %s897 = scalar_lea.vmem %s2, %s896
        %p898 = pneg %p111
        %p899 = pneg %p108
        %p900 = pneg %p137
        %p901 = pneg %p134
        %p902 = scmp.lt.s32.totalorder %s18, 1
        %s903 = scalar_select %p902, %s18, 1
        %s904 = scalar_lea.vmem %s3, %s903
        %s905 = smul.u32 %s18, 2
        %s906 = sadd.s32 %s905, %s19
        %s907 = smul.u32 32, %s906
        %p908 = scmp.lt.s32.totalorder %s907, 127
        %s909 = scalar_select %p908, %s907, 127
        %s910 = smul.addr %s909, 8
        %s911 = scalar_lea.vmem %s0, %s910
        %s912 = smul.u32 %s18, 2
        %s913 = sadd.s32 %s912, %s19
        %s914 = smul.u32 32, %s913
        %s915 = smul.u32 %s18, 2
        %s916 = sadd.s32 %s915, %s19
        %s917 = smul.u32 32, %s916
        %s918 = smul.u32 %s18, 2
        %s919 = sadd.s32 %s918, %s19
        %s920 = smul.u32 32, %s919
        %p921 = scmp.lt.s32.totalorder %s920, 127
        %s922 = scalar_select %p921, %s920, 127
        %s923 = smul.addr %s922, 8
        %s924 = scalar_lea.vmem %s2, %s923
        %s925 = smul.u32 %s18, 2
        %s926 = sadd.s32 %s925, %s19
        %s927 = smul.u32 32, %s926
        %p928 = scmp.lt.s32.totalorder %s18, 1
        %s929 = scalar_select %p928, %s18, 1
        %s930 = scalar_lea.vmem %s3, %s929
        %p931 = scmp.eq.s32.totalorder %s19, 0
        // Predicated region
        $region71: #{tpu_custom_call.1} parent=65 // pred_check
          %p932 = pneg %p931
        $region72: #{tpu_custom_call.1} parent=65 // pred_check_branch
          %934 = sbr.rel (%p932) target = $region74
        $region73: #{tpu_custom_call.1} parent=65 // pred_region
          %vm935 = vcmask 7168
          %936 = vst.msk [vmem:[#allocation2] sm:$0xff] %vm935, 0.0
          %937 = vst.msk [vmem:[#allocation2 + $0x8] sm:$0xff] %vm935, 0.0
          %938 = vst.msk [vmem:[#allocation2 + $0x10] sm:$0xff] %vm935, 0.0
          %939 = vst.msk [vmem:[#allocation2 + $0x18] sm:$0xff] %vm935, 0.0
          %940 = vst.msk [vmem:[#allocation2 + $0x20] sm:$0xff] %vm935, 0.0
          %941 = vst.msk [vmem:[#allocation2 + $0x28] sm:$0xff] %vm935, 0.0
          %942 = vst.msk [vmem:[#allocation2 + $0x30] sm:$0xff] %vm935, 0.0
          %943 = vst.msk [vmem:[#allocation2 + $0x38] sm:$0xff] %vm935, 0.0
          %944 = vst.msk [vmem:[#allocation2 + $0x40] sm:$0xff] %vm935, 0.0
          %945 = vst.msk [vmem:[#allocation2 + $0x48] sm:$0xff] %vm935, 0.0
          %946 = vst.msk [vmem:[#allocation2 + $0x50] sm:$0xff] %vm935, 0.0
          %947 = vst.msk [vmem:[#allocation2 + $0x58] sm:$0xff] %vm935, 0.0
          %948 = vst.msk [vmem:[#allocation2 + $0x60] sm:$0xff] %vm935, 0.0
          %949 = vst.msk [vmem:[#allocation2 + $0x68] sm:$0xff] %vm935, 0.0
          %950 = vst.msk [vmem:[#allocation2 + $0x70] sm:$0xff] %vm935, 0.0
          %951 = vst.msk [vmem:[#allocation2 + $0x78] sm:$0xff] %vm935, 0.0
          %952 = vst.msk [vmem:[#allocation2 + $0x80] sm:$0xff] %vm935, 0.0
          %953 = vst.msk [vmem:[#allocation2 + $0x88] sm:$0xff] %vm935, 0.0
          %954 = vst.msk [vmem:[#allocation2 + $0x90] sm:$0xff] %vm935, 0.0
          %955 = vst.msk [vmem:[#allocation2 + $0x98] sm:$0xff] %vm935, 0.0
          %956 = vst.msk [vmem:[#allocation2 + $0xa0] sm:$0xff] %vm935, 0.0
          %957 = vst.msk [vmem:[#allocation2 + $0xa8] sm:$0xff] %vm935, 0.0
          %958 = vst.msk [vmem:[#allocation2 + $0xb0] sm:$0xff] %vm935, 0.0
          %959 = vst.msk [vmem:[#allocation2 + $0xb8] sm:$0xff] %vm935, 0.0
          %960 = vst.msk [vmem:[#allocation2 + $0xc0] sm:$0xff] %vm935, 0.0
          %961 = vst.msk [vmem:[#allocation2 + $0xc8] sm:$0xff] %vm935, 0.0
          %962 = vst.msk [vmem:[#allocation2 + $0xd0] sm:$0xff] %vm935, 0.0
          %963 = vst.msk [vmem:[#allocation2 + $0xd8] sm:$0xff] %vm935, 0.0
          %964 = vst.msk [vmem:[#allocation2 + $0xe0] sm:$0xff] %vm935, 0.0
          %965 = vst.msk [vmem:[#allocation2 + $0xe8] sm:$0xff] %vm935, 0.0
          %966 = vst.msk [vmem:[#allocation2 + $0xf0] sm:$0xff] %vm935, 0.0
          %967 = vst.msk [vmem:[#allocation2 + $0xf8] sm:$0xff] %vm935, 0.0
        $region74: #{tpu_custom_call.1} parent=65 // pred_fallthru
          _
        %v968 = vld [vmem:[%s911] sm:$0xff]
        %v969 = vld [vmem:[%s911 + $0x8] sm:$0xff]
        %v970 = vld [vmem:[%s911 + $0x10] sm:$0xff]
        %v971 = vld [vmem:[%s911 + $0x18] sm:$0xff]
        %v972 = vld [vmem:[%s911 + $0x20] sm:$0xff]
        %v973 = vld [vmem:[%s911 + $0x28] sm:$0xff]
        %v974 = vld [vmem:[%s911 + $0x30] sm:$0xff]
        %v975 = vld [vmem:[%s911 + $0x38] sm:$0xff]
        %v976 = vld [vmem:[%s911 + $0x40] sm:$0xff]
        %v977 = vld [vmem:[%s911 + $0x48] sm:$0xff]
        %v978 = vld [vmem:[%s911 + $0x50] sm:$0xff]
        %v979 = vld [vmem:[%s911 + $0x58] sm:$0xff]
        %v980 = vld [vmem:[%s911 + $0x60] sm:$0xff]
        %v981 = vld [vmem:[%s911 + $0x68] sm:$0xff]
        %v982 = vld [vmem:[%s911 + $0x70] sm:$0xff]
        %v983 = vld [vmem:[%s911 + $0x78] sm:$0xff]
        %v984 = vld [vmem:[%s911 + $0x80] sm:$0xff]
        %v985 = vld [vmem:[%s911 + $0x88] sm:$0xff]
        %v986 = vld [vmem:[%s911 + $0x90] sm:$0xff]
        %v987 = vld [vmem:[%s911 + $0x98] sm:$0xff]
        %v988 = vld [vmem:[%s911 + $0xa0] sm:$0xff]
        %v989 = vld [vmem:[%s911 + $0xa8] sm:$0xff]
        %v990 = vld [vmem:[%s911 + $0xb0] sm:$0xff]
        %v991 = vld [vmem:[%s911 + $0xb8] sm:$0xff]
        %v992 = vld [vmem:[%s911 + $0xc0] sm:$0xff]
        %v993 = vld [vmem:[%s911 + $0xc8] sm:$0xff]
        %v994 = vld [vmem:[%s911 + $0xd0] sm:$0xff]
        %v995 = vld [vmem:[%s911 + $0xd8] sm:$0xff]
        %v996 = vld [vmem:[%s911 + $0xe0] sm:$0xff]
        %v997 = vld [vmem:[%s911 + $0xe8] sm:$0xff]
        %v998 = vld [vmem:[%s911 + $0xf0] sm:$0xff]
        %v999 = vld [vmem:[%s911 + $0xf8] sm:$0xff]
        %v1000 = vld [vmem:[%s872] sm:$0xff]
        %v1001 = vld [vmem:[%s872 + $0x8] sm:$0xff]
        %v1002 = vld [vmem:[%s872 + $0x10] sm:$0xff]
        %v1003 = vld [vmem:[%s872 + $0x18] sm:$0xff]
        %v1004 = vld [vmem:[%s872 + $0x20] sm:$0xff]
        %v1005 = vld [vmem:[%s872 + $0x28] sm:$0xff]
        %v1006 = vld [vmem:[%s872 + $0x30] sm:$0xff]
        %v1007 = vld [vmem:[%s872 + $0x38] sm:$0xff]
        %v1008 = vld [vmem:[%s872 + $0x40] sm:$0xff]
        %v1009 = vld [vmem:[%s872 + $0x48] sm:$0xff]
        %v1010 = vld [vmem:[%s872 + $0x50] sm:$0xff]
        %v1011 = vld [vmem:[%s872 + $0x58] sm:$0xff]
        %v1012 = vld [vmem:[%s872 + $0x60] sm:$0xff]
        %v1013 = vld [vmem:[%s872 + $0x68] sm:$0xff]
        %v1014 = vld [vmem:[%s872 + $0x70] sm:$0xff]
        %v1015 = vld [vmem:[%s872 + $0x78] sm:$0xff]
        %v1016 = vld [vmem:[%s872 + $0x80] sm:$0xff]
        %v1017 = vld [vmem:[%s872 + $0x88] sm:$0xff]
        %v1018 = vld [vmem:[%s872 + $0x90] sm:$0xff]
        %v1019 = vld [vmem:[%s872 + $0x98] sm:$0xff]
        %v1020 = vld [vmem:[%s872 + $0xa0] sm:$0xff]
        %v1021 = vld [vmem:[%s872 + $0xa8] sm:$0xff]
        %v1022 = vld [vmem:[%s872 + $0xb0] sm:$0xff]
        %v1023 = vld [vmem:[%s872 + $0xb8] sm:$0xff]
        %v1024 = vld [vmem:[%s872 + $0xc0] sm:$0xff]
        %v1025 = vld [vmem:[%s872 + $0xc8] sm:$0xff]
        %v1026 = vld [vmem:[%s872 + $0xd0] sm:$0xff]
        %v1027 = vld [vmem:[%s872 + $0xd8] sm:$0xff]
        %v1028 = vld [vmem:[%s872 + $0xe0] sm:$0xff]
        %v1029 = vld [vmem:[%s872 + $0xe8] sm:$0xff]
        %v1030 = vld [vmem:[%s872 + $0xf0] sm:$0xff]
        %v1031 = vld [vmem:[%s872 + $0xf8] sm:$0xff]
        %v1032 = vmul.f32 %v968, %v1000
        %v1033 = vmul.f32 %v969, %v1001
        %v1034 = vmul.f32 %v970, %v1002
        %v1035 = vmul.f32 %v971, %v1003
        %v1036 = vmul.f32 %v972, %v1004
        %v1037 = vmul.f32 %v973, %v1005
        %v1038 = vmul.f32 %v974, %v1006
        %v1039 = vmul.f32 %v975, %v1007
        %v1040 = vmul.f32 %v976, %v1008
        %v1041 = vmul.f32 %v977, %v1009
        %v1042 = vmul.f32 %v978, %v1010
        %v1043 = vmul.f32 %v979, %v1011
        %v1044 = vmul.f32 %v980, %v1012
        %v1045 = vmul.f32 %v981, %v1013
        %v1046 = vmul.f32 %v982, %v1014
        %v1047 = vmul.f32 %v983, %v1015
        %v1048 = vmul.f32 %v984, %v1016
        %v1049 = vmul.f32 %v985, %v1017
        %v1050 = vmul.f32 %v986, %v1018
        %v1051 = vmul.f32 %v987, %v1019
        %v1052 = vmul.f32 %v988, %v1020
        %v1053 = vmul.f32 %v989, %v1021
        %v1054 = vmul.f32 %v990, %v1022
        %v1055 = vmul.f32 %v991, %v1023
        %v1056 = vmul.f32 %v992, %v1024
        %v1057 = vmul.f32 %v993, %v1025
        %v1058 = vmul.f32 %v994, %v1026
        %v1059 = vmul.f32 %v995, %v1027
        %v1060 = vmul.f32 %v996, %v1028
        %v1061 = vmul.f32 %v997, %v1029
        %v1062 = vmul.f32 %v998, %v1030
        %v1063 = vmul.f32 %v999, %v1031
        %vm1064 = vcmask 261120
        %v1065 = vsel %vm1064, %v1032, 0.0
        %1066 = vadd.xlane.f32.xlu0 %v1065
        %v1067 = vpop.xlane.xlu0 %1066
        %v1068 = vsel %vm1064, %v1033, 0.0
        %1069 = vadd.xlane.f32.xlu0 %v1068
        %v1070 = vpop.xlane.xlu0 %1069
        %v1071 = vsel %vm1064, %v1034, 0.0
        %1072 = vadd.xlane.f32.xlu0 %v1071
        %v1073 = vpop.xlane.xlu0 %1072
        %v1074 = vsel %vm1064, %v1035, 0.0
        %1075 = vadd.xlane.f32.xlu0 %v1074
        %v1076 = vpop.xlane.xlu0 %1075
        %v1077 = vsel %vm1064, %v1036, 0.0
        %1078 = vadd.xlane.f32.xlu0 %v1077
        %v1079 = vpop.xlane.xlu0 %1078
        %v1080 = vsel %vm1064, %v1037, 0.0
        %1081 = vadd.xlane.f32.xlu0 %v1080
        %v1082 = vpop.xlane.xlu0 %1081
        %v1083 = vsel %vm1064, %v1038, 0.0
        %1084 = vadd.xlane.f32.xlu0 %v1083
        %v1085 = vpop.xlane.xlu0 %1084
        %v1086 = vsel %vm1064, %v1039, 0.0
        %1087 = vadd.xlane.f32.xlu0 %v1086
        %v1088 = vpop.xlane.xlu0 %1087
        %v1089 = vsel %vm1064, %v1040, 0.0
        %1090 = vadd.xlane.f32.xlu0 %v1089
        %v1091 = vpop.xlane.xlu0 %1090
        %v1092 = vsel %vm1064, %v1041, 0.0
        %1093 = vadd.xlane.f32.xlu0 %v1092
        %v1094 = vpop.xlane.xlu0 %1093
        %v1095 = vsel %vm1064, %v1042, 0.0
        %1096 = vadd.xlane.f32.xlu0 %v1095
        %v1097 = vpop.xlane.xlu0 %1096
        %v1098 = vsel %vm1064, %v1043, 0.0
        %1099 = vadd.xlane.f32.xlu0 %v1098
        %v1100 = vpop.xlane.xlu0 %1099
        %v1101 = vsel %vm1064, %v1044, 0.0
        %1102 = vadd.xlane.f32.xlu0 %v1101
        %v1103 = vpop.xlane.xlu0 %1102
        %v1104 = vsel %vm1064, %v1045, 0.0
        %1105 = vadd.xlane.f32.xlu0 %v1104
        %v1106 = vpop.xlane.xlu0 %1105
        %v1107 = vsel %vm1064, %v1046, 0.0
        %1108 = vadd.xlane.f32.xlu0 %v1107
        %v1109 = vpop.xlane.xlu0 %1108
        %v1110 = vsel %vm1064, %v1047, 0.0
        %1111 = vadd.xlane.f32.xlu0 %v1110
        %v1112 = vpop.xlane.xlu0 %1111
        %v1113 = vsel %vm1064, %v1048, 0.0
        %1114 = vadd.xlane.f32.xlu0 %v1113
        %v1115 = vpop.xlane.xlu0 %1114
        %v1116 = vsel %vm1064, %v1049, 0.0
        %1117 = vadd.xlane.f32.xlu0 %v1116
        %v1118 = vpop.xlane.xlu0 %1117
        %v1119 = vsel %vm1064, %v1050, 0.0
        %1120 = vadd.xlane.f32.xlu0 %v1119
        %v1121 = vpop.xlane.xlu0 %1120
        %v1122 = vsel %vm1064, %v1051, 0.0
        %1123 = vadd.xlane.f32.xlu0 %v1122
        %v1124 = vpop.xlane.xlu0 %1123
        %v1125 = vsel %vm1064, %v1052, 0.0
        %1126 = vadd.xlane.f32.xlu0 %v1125
        %v1127 = vpop.xlane.xlu0 %1126
        %v1128 = vsel %vm1064, %v1053, 0.0
        %1129 = vadd.xlane.f32.xlu0 %v1128
        %v1130 = vpop.xlane.xlu0 %1129
        %v1131 = vsel %vm1064, %v1054, 0.0
        %1132 = vadd.xlane.f32.xlu0 %v1131
        %v1133 = vpop.xlane.xlu0 %1132
        %v1134 = vsel %vm1064, %v1055, 0.0
        %1135 = vadd.xlane.f32.xlu0 %v1134
        %v1136 = vpop.xlane.xlu0 %1135
        %v1137 = vsel %vm1064, %v1056, 0.0
        %1138 = vadd.xlane.f32.xlu0 %v1137
        %v1139 = vpop.xlane.xlu0 %1138
        %v1140 = vsel %vm1064, %v1057, 0.0
        %1141 = vadd.xlane.f32.xlu0 %v1140
        %v1142 = vpop.xlane.xlu0 %1141
        %v1143 = vsel %vm1064, %v1058, 0.0
        %1144 = vadd.xlane.f32.xlu0 %v1143
        %v1145 = vpop.xlane.xlu0 %1144
        %v1146 = vsel %vm1064, %v1059, 0.0
        %1147 = vadd.xlane.f32.xlu0 %v1146
        %v1148 = vpop.xlane.xlu0 %1147
        %v1149 = vsel %vm1064, %v1060, 0.0
        %1150 = vadd.xlane.f32.xlu0 %v1149
        %v1151 = vpop.xlane.xlu0 %1150
        %v1152 = vsel %vm1064, %v1061, 0.0
        %1153 = vadd.xlane.f32.xlu0 %v1152
        %v1154 = vpop.xlane.xlu0 %1153
        %v1155 = vsel %vm1064, %v1062, 0.0
        %1156 = vadd.xlane.f32.xlu0 %v1155
        %v1157 = vpop.xlane.xlu0 %1156
        %v1158 = vsel %vm1064, %v1063, 0.0
        %1159 = vadd.xlane.f32.xlu0 %v1158
        %v1160 = vpop.xlane.xlu0 %1159
        %v1161 = vmin.f32 %v1067, 0.0
        %v1162 = vmin.f32 %v1070, 0.0
        %v1163 = vmin.f32 %v1073, 0.0
        %v1164 = vmin.f32 %v1076, 0.0
        %v1165 = vmin.f32 %v1079, 0.0
        %v1166 = vmin.f32 %v1082, 0.0
        %v1167 = vmin.f32 %v1085, 0.0
        %v1168 = vmin.f32 %v1088, 0.0
        %v1169 = vmin.f32 %v1091, 0.0
        %v1170 = vmin.f32 %v1094, 0.0
        %v1171 = vmin.f32 %v1097, 0.0
        %v1172 = vmin.f32 %v1100, 0.0
        %v1173 = vmin.f32 %v1103, 0.0
        %v1174 = vmin.f32 %v1106, 0.0
        %v1175 = vmin.f32 %v1109, 0.0
        %v1176 = vmin.f32 %v1112, 0.0
        %v1177 = vmin.f32 %v1115, 0.0
        %v1178 = vmin.f32 %v1118, 0.0
        %v1179 = vmin.f32 %v1121, 0.0
        %v1180 = vmin.f32 %v1124, 0.0
        %v1181 = vmin.f32 %v1127, 0.0
        %v1182 = vmin.f32 %v1130, 0.0
        %v1183 = vmin.f32 %v1133, 0.0
        %v1184 = vmin.f32 %v1136, 0.0
        %v1185 = vmin.f32 %v1139, 0.0
        %v1186 = vmin.f32 %v1142, 0.0
        %v1187 = vmin.f32 %v1145, 0.0
        %v1188 = vmin.f32 %v1148, 0.0
        %v1189 = vmin.f32 %v1151, 0.0
        %v1190 = vmin.f32 %v1154, 0.0
        %v1191 = vmin.f32 %v1157, 0.0
        %v1192 = vmin.f32 %v1160, 0.0
        %v1193 = vand.u32 2147483647, %v1067
        %v1194 = vand.u32 2147483647, %v1070
        %v1195 = vand.u32 2147483647, %v1073
        %v1196 = vand.u32 2147483647, %v1076
        %v1197 = vand.u32 2147483647, %v1079
        %v1198 = vand.u32 2147483647, %v1082
        %v1199 = vand.u32 2147483647, %v1085
        %v1200 = vand.u32 2147483647, %v1088
        %v1201 = vand.u32 2147483647, %v1091
        %v1202 = vand.u32 2147483647, %v1094
        %v1203 = vand.u32 2147483647, %v1097
        %v1204 = vand.u32 2147483647, %v1100
        %v1205 = vand.u32 2147483647, %v1103
        %v1206 = vand.u32 2147483647, %v1106
        %v1207 = vand.u32 2147483647, %v1109
        %v1208 = vand.u32 2147483647, %v1112
        %v1209 = vand.u32 2147483647, %v1115
        %v1210 = vand.u32 2147483647, %v1118
        %v1211 = vand.u32 2147483647, %v1121
        %v1212 = vand.u32 2147483647, %v1124
        %v1213 = vand.u32 2147483647, %v1127
        %v1214 = vand.u32 2147483647, %v1130
        %v1215 = vand.u32 2147483647, %v1133
        %v1216 = vand.u32 2147483647, %v1136
        %v1217 = vand.u32 2147483647, %v1139
        %v1218 = vand.u32 2147483647, %v1142
        %v1219 = vand.u32 2147483647, %v1145
        %v1220 = vand.u32 2147483647, %v1148
        %v1221 = vand.u32 2147483647, %v1151
        %v1222 = vand.u32 2147483647, %v1154
        %v1223 = vand.u32 2147483647, %v1157
        %v1224 = vand.u32 2147483647, %v1160
        %v1225 = vsub.f32 0.0, %v1193
        %v1226 = vsub.f32 0.0, %v1194
        %v1227 = vsub.f32 0.0, %v1195
        %v1228 = vsub.f32 0.0, %v1196
        %v1229 = vsub.f32 0.0, %v1197
        %v1230 = vsub.f32 0.0, %v1198
        %v1231 = vsub.f32 0.0, %v1199
        %v1232 = vsub.f32 0.0, %v1200
        %v1233 = vsub.f32 0.0, %v1201
        %v1234 = vsub.f32 0.0, %v1202
        %v1235 = vsub.f32 0.0, %v1203
        %v1236 = vsub.f32 0.0, %v1204
        %v1237 = vsub.f32 0.0, %v1205
        %v1238 = vsub.f32 0.0, %v1206
        %v1239 = vsub.f32 0.0, %v1207
        %v1240 = vsub.f32 0.0, %v1208
        %v1241 = vsub.f32 0.0, %v1209
        %v1242 = vsub.f32 0.0, %v1210
        %v1243 = vsub.f32 0.0, %v1211
        %v1244 = vsub.f32 0.0, %v1212
        %v1245 = vsub.f32 0.0, %v1213
        %v1246 = vsub.f32 0.0, %v1214
        %v1247 = vsub.f32 0.0, %v1215
        %v1248 = vsub.f32 0.0, %v1216
        %v1249 = vsub.f32 0.0, %v1217
        %v1250 = vsub.f32 0.0, %v1218
        %v1251 = vsub.f32 0.0, %v1219
        %v1252 = vsub.f32 0.0, %v1220
        %v1253 = vsub.f32 0.0, %v1221
        %v1254 = vsub.f32 0.0, %v1222
        %v1255 = vsub.f32 0.0, %v1223
        %v1256 = vsub.f32 0.0, %v1224
        %v1257 = vmul.f32 %v1225, 1.442695
        %v1258 = vpow.pop %v1257
        %v1259 = vmul.f32 %v1226, 1.442695
        %v1260 = vpow.pop %v1259
        %v1261 = vmul.f32 %v1227, 1.442695
        %v1262 = vpow.pop %v1261
        %v1263 = vmul.f32 %v1228, 1.442695
        %v1264 = vpow.pop %v1263
        %v1265 = vmul.f32 %v1229, 1.442695
        %v1266 = vpow.pop %v1265
        %v1267 = vmul.f32 %v1230, 1.442695
        %v1268 = vpow.pop %v1267
        %v1269 = vmul.f32 %v1231, 1.442695
        %v1270 = vpow.pop %v1269
        %v1271 = vmul.f32 %v1232, 1.442695
        %v1272 = vpow.pop %v1271
        %v1273 = vmul.f32 %v1233, 1.442695
        %v1274 = vpow.pop %v1273
        %v1275 = vmul.f32 %v1234, 1.442695
        %v1276 = vpow.pop %v1275
        %v1277 = vmul.f32 %v1235, 1.442695
        %v1278 = vpow.pop %v1277
        %v1279 = vmul.f32 %v1236, 1.442695
        %v1280 = vpow.pop %v1279
        %v1281 = vmul.f32 %v1237, 1.442695
        %v1282 = vpow.pop %v1281
        %v1283 = vmul.f32 %v1238, 1.442695
        %v1284 = vpow.pop %v1283
        %v1285 = vmul.f32 %v1239, 1.442695
        %v1286 = vpow.pop %v1285
        %v1287 = vmul.f32 %v1240, 1.442695
        %v1288 = vpow.pop %v1287
        %v1289 = vmul.f32 %v1241, 1.442695
        %v1290 = vpow.pop %v1289
        %v1291 = vmul.f32 %v1242, 1.442695
        %v1292 = vpow.pop %v1291
        %v1293 = vmul.f32 %v1243, 1.442695
        %v1294 = vpow.pop %v1293
        %v1295 = vmul.f32 %v1244, 1.442695
        %v1296 = vpow.pop %v1295
        %v1297 = vmul.f32 %v1245, 1.442695
        %v1298 = vpow.pop %v1297
        %v1299 = vmul.f32 %v1246, 1.442695
        %v1300 = vpow.pop %v1299
        %v1301 = vmul.f32 %v1247, 1.442695
        %v1302 = vpow.pop %v1301
        %v1303 = vmul.f32 %v1248, 1.442695
        %v1304 = vpow.pop %v1303
        %v1305 = vmul.f32 %v1249, 1.442695
        %v1306 = vpow.pop %v1305
        %v1307 = vmul.f32 %v1250, 1.442695
        %v1308 = vpow.pop %v1307
        %v1309 = vmul.f32 %v1251, 1.442695
        %v1310 = vpow.pop %v1309
        %v1311 = vmul.f32 %v1252, 1.442695
        %v1312 = vpow.pop %v1311
        %v1313 = vmul.f32 %v1253, 1.442695
        %v1314 = vpow.pop %v1313
        %v1315 = vmul.f32 %v1254, 1.442695
        %v1316 = vpow.pop %v1315
        %v1317 = vmul.f32 %v1255, 1.442695
        %v1318 = vpow.pop %v1317
        %v1319 = vmul.f32 %v1256, 1.442695
        %v1320 = vpow.pop %v1319
        %v1321 = vadd.f32 %v1258, 1.0
        %v1322 = vadd.f32 %v1260, 1.0
        %v1323 = vadd.f32 %v1262, 1.0
        %v1324 = vadd.f32 %v1264, 1.0
        %v1325 = vadd.f32 %v1266, 1.0
        %v1326 = vadd.f32 %v1268, 1.0
        %v1327 = vadd.f32 %v1270, 1.0
        %v1328 = vadd.f32 %v1272, 1.0
        %v1329 = vadd.f32 %v1274, 1.0
        %v1330 = vadd.f32 %v1276, 1.0
        %v1331 = vadd.f32 %v1278, 1.0
        %v1332 = vadd.f32 %v1280, 1.0
        %v1333 = vadd.f32 %v1282, 1.0
        %v1334 = vadd.f32 %v1284, 1.0
        %v1335 = vadd.f32 %v1286, 1.0
        %v1336 = vadd.f32 %v1288, 1.0
        %v1337 = vadd.f32 %v1290, 1.0
        %v1338 = vadd.f32 %v1292, 1.0
        %v1339 = vadd.f32 %v1294, 1.0
        %v1340 = vadd.f32 %v1296, 1.0
        %v1341 = vadd.f32 %v1298, 1.0
        %v1342 = vadd.f32 %v1300, 1.0
        %v1343 = vadd.f32 %v1302, 1.0
        %v1344 = vadd.f32 %v1304, 1.0
        %v1345 = vadd.f32 %v1306, 1.0
        %v1346 = vadd.f32 %v1308, 1.0
        %v1347 = vadd.f32 %v1310, 1.0
        %v1348 = vadd.f32 %v1312, 1.0
        %v1349 = vadd.f32 %v1314, 1.0
        %v1350 = vadd.f32 %v1316, 1.0
        %v1351 = vadd.f32 %v1318, 1.0
        %v1352 = vadd.f32 %v1320, 1.0
        %v1353 = vlog2.pop %v1321
        %v1354 = vmul.f32 %v1353, 0.6931472
        %v1355 = vlog2.pop %v1322
        %v1356 = vmul.f32 %v1355, 0.6931472
        %v1357 = vlog2.pop %v1323
        %v1358 = vmul.f32 %v1357, 0.6931472
        %v1359 = vlog2.pop %v1324
        %v1360 = vmul.f32 %v1359, 0.6931472
        %v1361 = vlog2.pop %v1325
        %v1362 = vmul.f32 %v1361, 0.6931472
        %v1363 = vlog2.pop %v1326
        %v1364 = vmul.f32 %v1363, 0.6931472
        %v1365 = vlog2.pop %v1327
        %v1366 = vmul.f32 %v1365, 0.6931472
        %v1367 = vlog2.pop %v1328
        %v1368 = vmul.f32 %v1367, 0.6931472
        %v1369 = vlog2.pop %v1329
        %v1370 = vmul.f32 %v1369, 0.6931472
        %v1371 = vlog2.pop %v1330
        %v1372 = vmul.f32 %v1371, 0.6931472
        %v1373 = vlog2.pop %v1331
        %v1374 = vmul.f32 %v1373, 0.6931472
        %v1375 = vlog2.pop %v1332
        %v1376 = vmul.f32 %v1375, 0.6931472
        %v1377 = vlog2.pop %v1333
        %v1378 = vmul.f32 %v1377, 0.6931472
        %v1379 = vlog2.pop %v1334
        %v1380 = vmul.f32 %v1379, 0.6931472
        %v1381 = vlog2.pop %v1335
        %v1382 = vmul.f32 %v1381, 0.6931472
        %v1383 = vlog2.pop %v1336
        %v1384 = vmul.f32 %v1383, 0.6931472
        %v1385 = vlog2.pop %v1337
        %v1386 = vmul.f32 %v1385, 0.6931472
        %v1387 = vlog2.pop %v1338
        %v1388 = vmul.f32 %v1387, 0.6931472
        %v1389 = vlog2.pop %v1339
        %v1390 = vmul.f32 %v1389, 0.6931472
        %v1391 = vlog2.pop %v1340
        %v1392 = vmul.f32 %v1391, 0.6931472
        %v1393 = vlog2.pop %v1341
        %v1394 = vmul.f32 %v1393, 0.6931472
        %v1395 = vlog2.pop %v1342
        %v1396 = vmul.f32 %v1395, 0.6931472
        %v1397 = vlog2.pop %v1343
        %v1398 = vmul.f32 %v1397, 0.6931472
        %v1399 = vlog2.pop %v1344
        %v1400 = vmul.f32 %v1399, 0.6931472
        %v1401 = vlog2.pop %v1345
        %v1402 = vmul.f32 %v1401, 0.6931472
        %v1403 = vlog2.pop %v1346
        %v1404 = vmul.f32 %v1403, 0.6931472
        %v1405 = vlog2.pop %v1347
        %v1406 = vmul.f32 %v1405, 0.6931472
        %v1407 = vlog2.pop %v1348
        %v1408 = vmul.f32 %v1407, 0.6931472
        %v1409 = vlog2.pop %v1349
        %v1410 = vmul.f32 %v1409, 0.6931472
        %v1411 = vlog2.pop %v1350
        %v1412 = vmul.f32 %v1411, 0.6931472
        %v1413 = vlog2.pop %v1351
        %v1414 = vmul.f32 %v1413, 0.6931472
        %v1415 = vlog2.pop %v1352
        %v1416 = vmul.f32 %v1415, 0.6931472
        %v1417 = vsub.f32 %v1161, %v1354
        %v1418 = vsub.f32 %v1162, %v1356
        %v1419 = vsub.f32 %v1163, %v1358
        %v1420 = vsub.f32 %v1164, %v1360
        %v1421 = vsub.f32 %v1165, %v1362
        %v1422 = vsub.f32 %v1166, %v1364
        %v1423 = vsub.f32 %v1167, %v1366
        %v1424 = vsub.f32 %v1168, %v1368
        %v1425 = vsub.f32 %v1169, %v1370
        %v1426 = vsub.f32 %v1170, %v1372
        %v1427 = vsub.f32 %v1171, %v1374
        %v1428 = vsub.f32 %v1172, %v1376
        %v1429 = vsub.f32 %v1173, %v1378
        %v1430 = vsub.f32 %v1174, %v1380
        %v1431 = vsub.f32 %v1175, %v1382
        %v1432 = vsub.f32 %v1176, %v1384
        %v1433 = vsub.f32 %v1177, %v1386
        %v1434 = vsub.f32 %v1178, %v1388
        %v1435 = vsub.f32 %v1179, %v1390
        %v1436 = vsub.f32 %v1180, %v1392
        %v1437 = vsub.f32 %v1181, %v1394
        %v1438 = vsub.f32 %v1182, %v1396
        %v1439 = vsub.f32 %v1183, %v1398
        %v1440 = vsub.f32 %v1184, %v1400
        %v1441 = vsub.f32 %v1185, %v1402
        %v1442 = vsub.f32 %v1186, %v1404
        %v1443 = vsub.f32 %v1187, %v1406
        %v1444 = vsub.f32 %v1188, %v1408
        %v1445 = vsub.f32 %v1189, %v1410
        %v1446 = vsub.f32 %v1190, %v1412
        %v1447 = vsub.f32 %v1191, %v1414
        %v1448 = vsub.f32 %v1192, %v1416
        %s1449 = scalar_lea.vmem %s872, 256 [#allocation3]
        %v1450 = vld [vmem:[%s1449] sm:$0xff]
        %v1451 = vld [vmem:[%s1449 + $0x8] sm:$0xff]
        %v1452 = vld [vmem:[%s1449 + $0x10] sm:$0xff]
        %v1453 = vld [vmem:[%s1449 + $0x18] sm:$0xff]
        %v1454 = vld [vmem:[%s1449 + $0x20] sm:$0xff]
        %v1455 = vld [vmem:[%s1449 + $0x28] sm:$0xff]
        %v1456 = vld [vmem:[%s1449 + $0x30] sm:$0xff]
        %v1457 = vld [vmem:[%s1449 + $0x38] sm:$0xff]
        %v1458 = vld [vmem:[%s1449 + $0x40] sm:$0xff]
        %v1459 = vld [vmem:[%s1449 + $0x48] sm:$0xff]
        %v1460 = vld [vmem:[%s1449 + $0x50] sm:$0xff]
        %v1461 = vld [vmem:[%s1449 + $0x58] sm:$0xff]
        %v1462 = vld [vmem:[%s1449 + $0x60] sm:$0xff]
        %v1463 = vld [vmem:[%s1449 + $0x68] sm:$0xff]
        %v1464 = vld [vmem:[%s1449 + $0x70] sm:$0xff]
        %v1465 = vld [vmem:[%s1449 + $0x78] sm:$0xff]
        %v1466 = vld [vmem:[%s1449 + $0x80] sm:$0xff]
        %v1467 = vld [vmem:[%s1449 + $0x88] sm:$0xff]
        %v1468 = vld [vmem:[%s1449 + $0x90] sm:$0xff]
        %v1469 = vld [vmem:[%s1449 + $0x98] sm:$0xff]
        %v1470 = vld [vmem:[%s1449 + $0xa0] sm:$0xff]
        %v1471 = vld [vmem:[%s1449 + $0xa8] sm:$0xff]
        %v1472 = vld [vmem:[%s1449 + $0xb0] sm:$0xff]
        %v1473 = vld [vmem:[%s1449 + $0xb8] sm:$0xff]
        %v1474 = vld [vmem:[%s1449 + $0xc0] sm:$0xff]
        %v1475 = vld [vmem:[%s1449 + $0xc8] sm:$0xff]
        %v1476 = vld [vmem:[%s1449 + $0xd0] sm:$0xff]
        %v1477 = vld [vmem:[%s1449 + $0xd8] sm:$0xff]
        %v1478 = vld [vmem:[%s1449 + $0xe0] sm:$0xff]
        %v1479 = vld [vmem:[%s1449 + $0xe8] sm:$0xff]
        %v1480 = vld [vmem:[%s1449 + $0xf0] sm:$0xff]
        %v1481 = vld [vmem:[%s1449 + $0xf8] sm:$0xff]
        %v1482 = vmul.f32 %v968, %v1450
        %v1483 = vmul.f32 %v969, %v1451
        %v1484 = vmul.f32 %v970, %v1452
        %v1485 = vmul.f32 %v971, %v1453
        %v1486 = vmul.f32 %v972, %v1454
        %v1487 = vmul.f32 %v973, %v1455
        %v1488 = vmul.f32 %v974, %v1456
        %v1489 = vmul.f32 %v975, %v1457
        %v1490 = vmul.f32 %v976, %v1458
        %v1491 = vmul.f32 %v977, %v1459
        %v1492 = vmul.f32 %v978, %v1460
        %v1493 = vmul.f32 %v979, %v1461
        %v1494 = vmul.f32 %v980, %v1462
        %v1495 = vmul.f32 %v981, %v1463
        %v1496 = vmul.f32 %v982, %v1464
        %v1497 = vmul.f32 %v983, %v1465
        %v1498 = vmul.f32 %v984, %v1466
        %v1499 = vmul.f32 %v985, %v1467
        %v1500 = vmul.f32 %v986, %v1468
        %v1501 = vmul.f32 %v987, %v1469
        %v1502 = vmul.f32 %v988, %v1470
        %v1503 = vmul.f32 %v989, %v1471
        %v1504 = vmul.f32 %v990, %v1472
        %v1505 = vmul.f32 %v991, %v1473
        %v1506 = vmul.f32 %v992, %v1474
        %v1507 = vmul.f32 %v993, %v1475
        %v1508 = vmul.f32 %v994, %v1476
        %v1509 = vmul.f32 %v995, %v1477
        %v1510 = vmul.f32 %v996, %v1478
        %v1511 = vmul.f32 %v997, %v1479
        %v1512 = vmul.f32 %v998, %v1480
        %v1513 = vmul.f32 %v999, %v1481
        %v1514 = vsel %vm1064, %v1482, 0.0
        %1515 = vadd.xlane.f32.xlu0 %v1514
        %v1516 = vpop.xlane.xlu0 %1515
        %v1517 = vsel %vm1064, %v1483, 0.0
        %1518 = vadd.xlane.f32.xlu0 %v1517
        %v1519 = vpop.xlane.xlu0 %1518
        %v1520 = vsel %vm1064, %v1484, 0.0
        %1521 = vadd.xlane.f32.xlu0 %v1520
        %v1522 = vpop.xlane.xlu0 %1521
        %v1523 = vsel %vm1064, %v1485, 0.0
        %1524 = vadd.xlane.f32.xlu0 %v1523
        %v1525 = vpop.xlane.xlu0 %1524
        %v1526 = vsel %vm1064, %v1486, 0.0
        %1527 = vadd.xlane.f32.xlu0 %v1526
        %v1528 = vpop.xlane.xlu0 %1527
        %v1529 = vsel %vm1064, %v1487, 0.0
        %1530 = vadd.xlane.f32.xlu0 %v1529
        %v1531 = vpop.xlane.xlu0 %1530
        %v1532 = vsel %vm1064, %v1488, 0.0
        %1533 = vadd.xlane.f32.xlu0 %v1532
        %v1534 = vpop.xlane.xlu0 %1533
        %v1535 = vsel %vm1064, %v1489, 0.0
        %1536 = vadd.xlane.f32.xlu0 %v1535
        %v1537 = vpop.xlane.xlu0 %1536
        %v1538 = vsel %vm1064, %v1490, 0.0
        %1539 = vadd.xlane.f32.xlu0 %v1538
        %v1540 = vpop.xlane.xlu0 %1539
        %v1541 = vsel %vm1064, %v1491, 0.0
        %1542 = vadd.xlane.f32.xlu0 %v1541
        %v1543 = vpop.xlane.xlu0 %1542
        %v1544 = vsel %vm1064, %v1492, 0.0
        %1545 = vadd.xlane.f32.xlu0 %v1544
        %v1546 = vpop.xlane.xlu0 %1545
        %v1547 = vsel %vm1064, %v1493, 0.0
        %1548 = vadd.xlane.f32.xlu0 %v1547
        %v1549 = vpop.xlane.xlu0 %1548
        %v1550 = vsel %vm1064, %v1494, 0.0
        %1551 = vadd.xlane.f32.xlu0 %v1550
        %v1552 = vpop.xlane.xlu0 %1551
        %v1553 = vsel %vm1064, %v1495, 0.0
        %1554 = vadd.xlane.f32.xlu0 %v1553
        %v1555 = vpop.xlane.xlu0 %1554
        %v1556 = vsel %vm1064, %v1496, 0.0
        %1557 = vadd.xlane.f32.xlu0 %v1556
        %v1558 = vpop.xlane.xlu0 %1557
        %v1559 = vsel %vm1064, %v1497, 0.0
        %1560 = vadd.xlane.f32.xlu0 %v1559
        %v1561 = vpop.xlane.xlu0 %1560
        %v1562 = vsel %vm1064, %v1498, 0.0
        %1563 = vadd.xlane.f32.xlu0 %v1562
        %v1564 = vpop.xlane.xlu0 %1563
        %v1565 = vsel %vm1064, %v1499, 0.0
        %1566 = vadd.xlane.f32.xlu0 %v1565
        %v1567 = vpop.xlane.xlu0 %1566
        %v1568 = vsel %vm1064, %v1500, 0.0
        %1569 = vadd.xlane.f32.xlu0 %v1568
        %v1570 = vpop.xlane.xlu0 %1569
        %v1571 = vsel %vm1064, %v1501, 0.0
        %1572 = vadd.xlane.f32.xlu0 %v1571
        %v1573 = vpop.xlane.xlu0 %1572
        %v1574 = vsel %vm1064, %v1502, 0.0
        %1575 = vadd.xlane.f32.xlu0 %v1574
        %v1576 = vpop.xlane.xlu0 %1575
        %v1577 = vsel %vm1064, %v1503, 0.0
        %1578 = vadd.xlane.f32.xlu0 %v1577
        %v1579 = vpop.xlane.xlu0 %1578
        %v1580 = vsel %vm1064, %v1504, 0.0
        %1581 = vadd.xlane.f32.xlu0 %v1580
        %v1582 = vpop.xlane.xlu0 %1581
        %v1583 = vsel %vm1064, %v1505, 0.0
        %1584 = vadd.xlane.f32.xlu0 %v1583
        %v1585 = vpop.xlane.xlu0 %1584
        %v1586 = vsel %vm1064, %v1506, 0.0
        %1587 = vadd.xlane.f32.xlu0 %v1586
        %v1588 = vpop.xlane.xlu0 %1587
        %v1589 = vsel %vm1064, %v1507, 0.0
        %1590 = vadd.xlane.f32.xlu0 %v1589
        %v1591 = vpop.xlane.xlu0 %1590
        %v1592 = vsel %vm1064, %v1508, 0.0
        %1593 = vadd.xlane.f32.xlu0 %v1592
        %v1594 = vpop.xlane.xlu0 %1593
        %v1595 = vsel %vm1064, %v1509, 0.0
        %1596 = vadd.xlane.f32.xlu0 %v1595
        %v1597 = vpop.xlane.xlu0 %1596
        %v1598 = vsel %vm1064, %v1510, 0.0
        %1599 = vadd.xlane.f32.xlu0 %v1598
        %v1600 = vpop.xlane.xlu0 %1599
        %v1601 = vsel %vm1064, %v1511, 0.0
        %1602 = vadd.xlane.f32.xlu0 %v1601
        %v1603 = vpop.xlane.xlu0 %1602
        %v1604 = vsel %vm1064, %v1512, 0.0
        %1605 = vadd.xlane.f32.xlu0 %v1604
        %v1606 = vpop.xlane.xlu0 %1605
        %v1607 = vsel %vm1064, %v1513, 0.0
        %1608 = vadd.xlane.f32.xlu0 %v1607
        %v1609 = vpop.xlane.xlu0 %1608
        %v1610 = vsub.f32 0.0, %v1516
        %v1611 = vsub.f32 0.0, %v1519
        %v1612 = vsub.f32 0.0, %v1522
        %v1613 = vsub.f32 0.0, %v1525
        %v1614 = vsub.f32 0.0, %v1528
        %v1615 = vsub.f32 0.0, %v1531
        %v1616 = vsub.f32 0.0, %v1534
        %v1617 = vsub.f32 0.0, %v1537
        %v1618 = vsub.f32 0.0, %v1540
        %v1619 = vsub.f32 0.0, %v1543
        %v1620 = vsub.f32 0.0, %v1546
        %v1621 = vsub.f32 0.0, %v1549
        %v1622 = vsub.f32 0.0, %v1552
        %v1623 = vsub.f32 0.0, %v1555
        %v1624 = vsub.f32 0.0, %v1558
        %v1625 = vsub.f32 0.0, %v1561
        %v1626 = vsub.f32 0.0, %v1564
        %v1627 = vsub.f32 0.0, %v1567
        %v1628 = vsub.f32 0.0, %v1570
        %v1629 = vsub.f32 0.0, %v1573
        %v1630 = vsub.f32 0.0, %v1576
        %v1631 = vsub.f32 0.0, %v1579
        %v1632 = vsub.f32 0.0, %v1582
        %v1633 = vsub.f32 0.0, %v1585
        %v1634 = vsub.f32 0.0, %v1588
        %v1635 = vsub.f32 0.0, %v1591
        %v1636 = vsub.f32 0.0, %v1594
        %v1637 = vsub.f32 0.0, %v1597
        %v1638 = vsub.f32 0.0, %v1600
        %v1639 = vsub.f32 0.0, %v1603
        %v1640 = vsub.f32 0.0, %v1606
        %v1641 = vsub.f32 0.0, %v1609
        %v1642 = vmin.f32 %v1610, 0.0
        %v1643 = vmin.f32 %v1611, 0.0
        %v1644 = vmin.f32 %v1612, 0.0
        %v1645 = vmin.f32 %v1613, 0.0
        %v1646 = vmin.f32 %v1614, 0.0
        %v1647 = vmin.f32 %v1615, 0.0
        %v1648 = vmin.f32 %v1616, 0.0
        %v1649 = vmin.f32 %v1617, 0.0
        %v1650 = vmin.f32 %v1618, 0.0
        %v1651 = vmin.f32 %v1619, 0.0
        %v1652 = vmin.f32 %v1620, 0.0
        %v1653 = vmin.f32 %v1621, 0.0
        %v1654 = vmin.f32 %v1622, 0.0
        %v1655 = vmin.f32 %v1623, 0.0
        %v1656 = vmin.f32 %v1624, 0.0
        %v1657 = vmin.f32 %v1625, 0.0
        %v1658 = vmin.f32 %v1626, 0.0
        %v1659 = vmin.f32 %v1627, 0.0
        %v1660 = vmin.f32 %v1628, 0.0
        %v1661 = vmin.f32 %v1629, 0.0
        %v1662 = vmin.f32 %v1630, 0.0
        %v1663 = vmin.f32 %v1631, 0.0
        %v1664 = vmin.f32 %v1632, 0.0
        %v1665 = vmin.f32 %v1633, 0.0
        %v1666 = vmin.f32 %v1634, 0.0
        %v1667 = vmin.f32 %v1635, 0.0
        %v1668 = vmin.f32 %v1636, 0.0
        %v1669 = vmin.f32 %v1637, 0.0
        %v1670 = vmin.f32 %v1638, 0.0
        %v1671 = vmin.f32 %v1639, 0.0
        %v1672 = vmin.f32 %v1640, 0.0
        %v1673 = vmin.f32 %v1641, 0.0
        %v1674 = vand.u32 2147483647, %v1610
        %v1675 = vand.u32 2147483647, %v1611
        %v1676 = vand.u32 2147483647, %v1612
        %v1677 = vand.u32 2147483647, %v1613
        %v1678 = vand.u32 2147483647, %v1614
        %v1679 = vand.u32 2147483647, %v1615
        %v1680 = vand.u32 2147483647, %v1616
        %v1681 = vand.u32 2147483647, %v1617
        %v1682 = vand.u32 2147483647, %v1618
        %v1683 = vand.u32 2147483647, %v1619
        %v1684 = vand.u32 2147483647, %v1620
        %v1685 = vand.u32 2147483647, %v1621
        %v1686 = vand.u32 2147483647, %v1622
        %v1687 = vand.u32 2147483647, %v1623
        %v1688 = vand.u32 2147483647, %v1624
        %v1689 = vand.u32 2147483647, %v1625
        %v1690 = vand.u32 2147483647, %v1626
        %v1691 = vand.u32 2147483647, %v1627
        %v1692 = vand.u32 2147483647, %v1628
        %v1693 = vand.u32 2147483647, %v1629
        %v1694 = vand.u32 2147483647, %v1630
        %v1695 = vand.u32 2147483647, %v1631
        %v1696 = vand.u32 2147483647, %v1632
        %v1697 = vand.u32 2147483647, %v1633
        %v1698 = vand.u32 2147483647, %v1634
        %v1699 = vand.u32 2147483647, %v1635
        %v1700 = vand.u32 2147483647, %v1636
        %v1701 = vand.u32 2147483647, %v1637
        %v1702 = vand.u32 2147483647, %v1638
        %v1703 = vand.u32 2147483647, %v1639
        %v1704 = vand.u32 2147483647, %v1640
        %v1705 = vand.u32 2147483647, %v1641
        %v1706 = vsub.f32 0.0, %v1674
        %v1707 = vsub.f32 0.0, %v1675
        %v1708 = vsub.f32 0.0, %v1676
        %v1709 = vsub.f32 0.0, %v1677
        %v1710 = vsub.f32 0.0, %v1678
        %v1711 = vsub.f32 0.0, %v1679
        %v1712 = vsub.f32 0.0, %v1680
        %v1713 = vsub.f32 0.0, %v1681
        %v1714 = vsub.f32 0.0, %v1682
        %v1715 = vsub.f32 0.0, %v1683
        %v1716 = vsub.f32 0.0, %v1684
        %v1717 = vsub.f32 0.0, %v1685
        %v1718 = vsub.f32 0.0, %v1686
        %v1719 = vsub.f32 0.0, %v1687
        %v1720 = vsub.f32 0.0, %v1688
        %v1721 = vsub.f32 0.0, %v1689
        %v1722 = vsub.f32 0.0, %v1690
        %v1723 = vsub.f32 0.0, %v1691
        %v1724 = vsub.f32 0.0, %v1692
        %v1725 = vsub.f32 0.0, %v1693
        %v1726 = vsub.f32 0.0, %v1694
        %v1727 = vsub.f32 0.0, %v1695
        %v1728 = vsub.f32 0.0, %v1696
        %v1729 = vsub.f32 0.0, %v1697
        %v1730 = vsub.f32 0.0, %v1698
        %v1731 = vsub.f32 0.0, %v1699
        %v1732 = vsub.f32 0.0, %v1700
        %v1733 = vsub.f32 0.0, %v1701
        %v1734 = vsub.f32 0.0, %v1702
        %v1735 = vsub.f32 0.0, %v1703
        %v1736 = vsub.f32 0.0, %v1704
        %v1737 = vsub.f32 0.0, %v1705
        %v1738 = vmul.f32 %v1706, 1.442695
        %v1739 = vpow.pop %v1738
        %v1740 = vmul.f32 %v1707, 1.442695
        %v1741 = vpow.pop %v1740
        %v1742 = vmul.f32 %v1708, 1.442695
        %v1743 = vpow.pop %v1742
        %v1744 = vmul.f32 %v1709, 1.442695
        %v1745 = vpow.pop %v1744
        %v1746 = vmul.f32 %v1710, 1.442695
        %v1747 = vpow.pop %v1746
        %v1748 = vmul.f32 %v1711, 1.442695
        %v1749 = vpow.pop %v1748
        %v1750 = vmul.f32 %v1712, 1.442695
        %v1751 = vpow.pop %v1750
        %v1752 = vmul.f32 %v1713, 1.442695
        %v1753 = vpow.pop %v1752
        %v1754 = vmul.f32 %v1714, 1.442695
        %v1755 = vpow.pop %v1754
        %v1756 = vmul.f32 %v1715, 1.442695
        %v1757 = vpow.pop %v1756
        %v1758 = vmul.f32 %v1716, 1.442695
        %v1759 = vpow.pop %v1758
        %v1760 = vmul.f32 %v1717, 1.442695
        %v1761 = vpow.pop %v1760
        %v1762 = vmul.f32 %v1718, 1.442695
        %v1763 = vpow.pop %v1762
        %v1764 = vmul.f32 %v1719, 1.442695
        %v1765 = vpow.pop %v1764
        %v1766 = vmul.f32 %v1720, 1.442695
        %v1767 = vpow.pop %v1766
        %v1768 = vmul.f32 %v1721, 1.442695
        %v1769 = vpow.pop %v1768
        %v1770 = vmul.f32 %v1722, 1.442695
        %v1771 = vpow.pop %v1770
        %v1772 = vmul.f32 %v1723, 1.442695
        %v1773 = vpow.pop %v1772
        %v1774 = vmul.f32 %v1724, 1.442695
        %v1775 = vpow.pop %v1774
        %v1776 = vmul.f32 %v1725, 1.442695
        %v1777 = vpow.pop %v1776
        %v1778 = vmul.f32 %v1726, 1.442695
        %v1779 = vpow.pop %v1778
        %v1780 = vmul.f32 %v1727, 1.442695
        %v1781 = vpow.pop %v1780
        %v1782 = vmul.f32 %v1728, 1.442695
        %v1783 = vpow.pop %v1782
        %v1784 = vmul.f32 %v1729, 1.442695
        %v1785 = vpow.pop %v1784
        %v1786 = vmul.f32 %v1730, 1.442695
        %v1787 = vpow.pop %v1786
        %v1788 = vmul.f32 %v1731, 1.442695
        %v1789 = vpow.pop %v1788
        %v1790 = vmul.f32 %v1732, 1.442695
        %v1791 = vpow.pop %v1790
        %v1792 = vmul.f32 %v1733, 1.442695
        %v1793 = vpow.pop %v1792
        %v1794 = vmul.f32 %v1734, 1.442695
        %v1795 = vpow.pop %v1794
        %v1796 = vmul.f32 %v1735, 1.442695
        %v1797 = vpow.pop %v1796
        %v1798 = vmul.f32 %v1736, 1.442695
        %v1799 = vpow.pop %v1798
        %v1800 = vmul.f32 %v1737, 1.442695
        %v1801 = vpow.pop %v1800
        %v1802 = vadd.f32 %v1739, 1.0
        %v1803 = vadd.f32 %v1741, 1.0
        %v1804 = vadd.f32 %v1743, 1.0
        %v1805 = vadd.f32 %v1745, 1.0
        %v1806 = vadd.f32 %v1747, 1.0
        %v1807 = vadd.f32 %v1749, 1.0
        %v1808 = vadd.f32 %v1751, 1.0
        %v1809 = vadd.f32 %v1753, 1.0
        %v1810 = vadd.f32 %v1755, 1.0
        %v1811 = vadd.f32 %v1757, 1.0
        %v1812 = vadd.f32 %v1759, 1.0
        %v1813 = vadd.f32 %v1761, 1.0
        %v1814 = vadd.f32 %v1763, 1.0
        %v1815 = vadd.f32 %v1765, 1.0
        %v1816 = vadd.f32 %v1767, 1.0
        %v1817 = vadd.f32 %v1769, 1.0
        %v1818 = vadd.f32 %v1771, 1.0
        %v1819 = vadd.f32 %v1773, 1.0
        %v1820 = vadd.f32 %v1775, 1.0
        %v1821 = vadd.f32 %v1777, 1.0
        %v1822 = vadd.f32 %v1779, 1.0
        %v1823 = vadd.f32 %v1781, 1.0
        %v1824 = vadd.f32 %v1783, 1.0
        %v1825 = vadd.f32 %v1785, 1.0
        %v1826 = vadd.f32 %v1787, 1.0
        %v1827 = vadd.f32 %v1789, 1.0
        %v1828 = vadd.f32 %v1791, 1.0
        %v1829 = vadd.f32 %v1793, 1.0
        %v1830 = vadd.f32 %v1795, 1.0
        %v1831 = vadd.f32 %v1797, 1.0
        %v1832 = vadd.f32 %v1799, 1.0
        %v1833 = vadd.f32 %v1801, 1.0
        %v1834 = vlog2.pop %v1802
        %v1835 = vmul.f32 %v1834, 0.6931472
        %v1836 = vlog2.pop %v1803
        %v1837 = vmul.f32 %v1836, 0.6931472
        %v1838 = vlog2.pop %v1804
        %v1839 = vmul.f32 %v1838, 0.6931472
        %v1840 = vlog2.pop %v1805
        %v1841 = vmul.f32 %v1840, 0.6931472
        %v1842 = vlog2.pop %v1806
        %v1843 = vmul.f32 %v1842, 0.6931472
        %v1844 = vlog2.pop %v1807
        %v1845 = vmul.f32 %v1844, 0.6931472
        %v1846 = vlog2.pop %v1808
        %v1847 = vmul.f32 %v1846, 0.6931472
        %v1848 = vlog2.pop %v1809
        %v1849 = vmul.f32 %v1848, 0.6931472
        %v1850 = vlog2.pop %v1810
        %v1851 = vmul.f32 %v1850, 0.6931472
        %v1852 = vlog2.pop %v1811
        %v1853 = vmul.f32 %v1852, 0.6931472
        %v1854 = vlog2.pop %v1812
        %v1855 = vmul.f32 %v1854, 0.6931472
        %v1856 = vlog2.pop %v1813
        %v1857 = vmul.f32 %v1856, 0.6931472
        %v1858 = vlog2.pop %v1814
        %v1859 = vmul.f32 %v1858, 0.6931472
        %v1860 = vlog2.pop %v1815
        %v1861 = vmul.f32 %v1860, 0.6931472
        %v1862 = vlog2.pop %v1816
        %v1863 = vmul.f32 %v1862, 0.6931472
        %v1864 = vlog2.pop %v1817
        %v1865 = vmul.f32 %v1864, 0.6931472
        %v1866 = vlog2.pop %v1818
        %v1867 = vmul.f32 %v1866, 0.6931472
        %v1868 = vlog2.pop %v1819
        %v1869 = vmul.f32 %v1868, 0.6931472
        %v1870 = vlog2.pop %v1820
        %v1871 = vmul.f32 %v1870, 0.6931472
        %v1872 = vlog2.pop %v1821
        %v1873 = vmul.f32 %v1872, 0.6931472
        %v1874 = vlog2.pop %v1822
        %v1875 = vmul.f32 %v1874, 0.6931472
        %v1876 = vlog2.pop %v1823
        %v1877 = vmul.f32 %v1876, 0.6931472
        %v1878 = vlog2.pop %v1824
        %v1879 = vmul.f32 %v1878, 0.6931472
        %v1880 = vlog2.pop %v1825
        %v1881 = vmul.f32 %v1880, 0.6931472
        %v1882 = vlog2.pop %v1826
        %v1883 = vmul.f32 %v1882, 0.6931472
        %v1884 = vlog2.pop %v1827
        %v1885 = vmul.f32 %v1884, 0.6931472
        %v1886 = vlog2.pop %v1828
        %v1887 = vmul.f32 %v1886, 0.6931472
        %v1888 = vlog2.pop %v1829
        %v1889 = vmul.f32 %v1888, 0.6931472
        %v1890 = vlog2.pop %v1830
        %v1891 = vmul.f32 %v1890, 0.6931472
        %v1892 = vlog2.pop %v1831
        %v1893 = vmul.f32 %v1892, 0.6931472
        %v1894 = vlog2.pop %v1832
        %v1895 = vmul.f32 %v1894, 0.6931472
        %v1896 = vlog2.pop %v1833
        %v1897 = vmul.f32 %v1896, 0.6931472
        %v1898 = vsub.f32 %v1642, %v1835
        %v1899 = vsub.f32 %v1643, %v1837
        %v1900 = vsub.f32 %v1644, %v1839
        %v1901 = vsub.f32 %v1645, %v1841
        %v1902 = vsub.f32 %v1646, %v1843
        %v1903 = vsub.f32 %v1647, %v1845
        %v1904 = vsub.f32 %v1648, %v1847
        %v1905 = vsub.f32 %v1649, %v1849
        %v1906 = vsub.f32 %v1650, %v1851
        %v1907 = vsub.f32 %v1651, %v1853
        %v1908 = vsub.f32 %v1652, %v1855
        %v1909 = vsub.f32 %v1653, %v1857
        %v1910 = vsub.f32 %v1654, %v1859
        %v1911 = vsub.f32 %v1655, %v1861
        %v1912 = vsub.f32 %v1656, %v1863
        %v1913 = vsub.f32 %v1657, %v1865
        %v1914 = vsub.f32 %v1658, %v1867
        %v1915 = vsub.f32 %v1659, %v1869
        %v1916 = vsub.f32 %v1660, %v1871
        %v1917 = vsub.f32 %v1661, %v1873
        %v1918 = vsub.f32 %v1662, %v1875
        %v1919 = vsub.f32 %v1663, %v1877
        %v1920 = vsub.f32 %v1664, %v1879
        %v1921 = vsub.f32 %v1665, %v1881
        %v1922 = vsub.f32 %v1666, %v1883
        %v1923 = vsub.f32 %v1667, %v1885
        %v1924 = vsub.f32 %v1668, %v1887
        %v1925 = vsub.f32 %v1669, %v1889
        %v1926 = vsub.f32 %v1670, %v1891
        %v1927 = vsub.f32 %v1671, %v1893
        %v1928 = vsub.f32 %v1672, %v1895
        %v1929 = vsub.f32 %v1673, %v1897
        %v1930 = vadd.f32 %v1417, %v1898
        %v1931 = vadd.f32 %v1418, %v1899
        %v1932 = vadd.f32 %v1419, %v1900
        %v1933 = vadd.f32 %v1420, %v1901
        %v1934 = vadd.f32 %v1421, %v1902
        %v1935 = vadd.f32 %v1422, %v1903
        %v1936 = vadd.f32 %v1423, %v1904
        %v1937 = vadd.f32 %v1424, %v1905
        %v1938 = vadd.f32 %v1425, %v1906
        %v1939 = vadd.f32 %v1426, %v1907
        %v1940 = vadd.f32 %v1427, %v1908
        %v1941 = vadd.f32 %v1428, %v1909
        %v1942 = vadd.f32 %v1429, %v1910
        %v1943 = vadd.f32 %v1430, %v1911
        %v1944 = vadd.f32 %v1431, %v1912
        %v1945 = vadd.f32 %v1432, %v1913
        %v1946 = vadd.f32 %v1433, %v1914
        %v1947 = vadd.f32 %v1434, %v1915
        %v1948 = vadd.f32 %v1435, %v1916
        %v1949 = vadd.f32 %v1436, %v1917
        %v1950 = vadd.f32 %v1437, %v1918
        %v1951 = vadd.f32 %v1438, %v1919
        %v1952 = vadd.f32 %v1439, %v1920
        %v1953 = vadd.f32 %v1440, %v1921
        %v1954 = vadd.f32 %v1441, %v1922
        %v1955 = vadd.f32 %v1442, %v1923
        %v1956 = vadd.f32 %v1443, %v1924
        %v1957 = vadd.f32 %v1444, %v1925
        %v1958 = vadd.f32 %v1445, %v1926
        %v1959 = vadd.f32 %v1446, %v1927
        %v1960 = vadd.f32 %v1447, %v1928
        %v1961 = vadd.f32 %v1448, %v1929
        %s1962 = scalar_lea.vmem %s872, 512 [#allocation3]
        %v1963 = vld [vmem:[%s1962] sm:$0xff]
        %v1964 = vld [vmem:[%s1962 + $0x8] sm:$0xff]
        %v1965 = vld [vmem:[%s1962 + $0x10] sm:$0xff]
        %v1966 = vld [vmem:[%s1962 + $0x18] sm:$0xff]
        %v1967 = vld [vmem:[%s1962 + $0x20] sm:$0xff]
        %v1968 = vld [vmem:[%s1962 + $0x28] sm:$0xff]
        %v1969 = vld [vmem:[%s1962 + $0x30] sm:$0xff]
        %v1970 = vld [vmem:[%s1962 + $0x38] sm:$0xff]
        %v1971 = vld [vmem:[%s1962 + $0x40] sm:$0xff]
        %v1972 = vld [vmem:[%s1962 + $0x48] sm:$0xff]
        %v1973 = vld [vmem:[%s1962 + $0x50] sm:$0xff]
        %v1974 = vld [vmem:[%s1962 + $0x58] sm:$0xff]
        %v1975 = vld [vmem:[%s1962 + $0x60] sm:$0xff]
        %v1976 = vld [vmem:[%s1962 + $0x68] sm:$0xff]
        %v1977 = vld [vmem:[%s1962 + $0x70] sm:$0xff]
        %v1978 = vld [vmem:[%s1962 + $0x78] sm:$0xff]
        %v1979 = vld [vmem:[%s1962 + $0x80] sm:$0xff]
        %v1980 = vld [vmem:[%s1962 + $0x88] sm:$0xff]
        %v1981 = vld [vmem:[%s1962 + $0x90] sm:$0xff]
        %v1982 = vld [vmem:[%s1962 + $0x98] sm:$0xff]
        %v1983 = vld [vmem:[%s1962 + $0xa0] sm:$0xff]
        %v1984 = vld [vmem:[%s1962 + $0xa8] sm:$0xff]
        %v1985 = vld [vmem:[%s1962 + $0xb0] sm:$0xff]
        %v1986 = vld [vmem:[%s1962 + $0xb8] sm:$0xff]
        %v1987 = vld [vmem:[%s1962 + $0xc0] sm:$0xff]
        %v1988 = vld [vmem:[%s1962 + $0xc8] sm:$0xff]
        %v1989 = vld [vmem:[%s1962 + $0xd0] sm:$0xff]
        %v1990 = vld [vmem:[%s1962 + $0xd8] sm:$0xff]
        %v1991 = vld [vmem:[%s1962 + $0xe0] sm:$0xff]
        %v1992 = vld [vmem:[%s1962 + $0xe8] sm:$0xff]
        %v1993 = vld [vmem:[%s1962 + $0xf0] sm:$0xff]
        %v1994 = vld [vmem:[%s1962 + $0xf8] sm:$0xff]
        %v1995 = vmul.f32 %v968, %v1963
        %v1996 = vmul.f32 %v969, %v1964
        %v1997 = vmul.f32 %v970, %v1965
        %v1998 = vmul.f32 %v971, %v1966
        %v1999 = vmul.f32 %v972, %v1967
        %v2000 = vmul.f32 %v973, %v1968
        %v2001 = vmul.f32 %v974, %v1969
        %v2002 = vmul.f32 %v975, %v1970
        %v2003 = vmul.f32 %v976, %v1971
        %v2004 = vmul.f32 %v977, %v1972
        %v2005 = vmul.f32 %v978, %v1973
        %v2006 = vmul.f32 %v979, %v1974
        %v2007 = vmul.f32 %v980, %v1975
        %v2008 = vmul.f32 %v981, %v1976
        %v2009 = vmul.f32 %v982, %v1977
        %v2010 = vmul.f32 %v983, %v1978
        %v2011 = vmul.f32 %v984, %v1979
        %v2012 = vmul.f32 %v985, %v1980
        %v2013 = vmul.f32 %v986, %v1981
        %v2014 = vmul.f32 %v987, %v1982
        %v2015 = vmul.f32 %v988, %v1983
        %v2016 = vmul.f32 %v989, %v1984
        %v2017 = vmul.f32 %v990, %v1985
        %v2018 = vmul.f32 %v991, %v1986
        %v2019 = vmul.f32 %v992, %v1987
        %v2020 = vmul.f32 %v993, %v1988
        %v2021 = vmul.f32 %v994, %v1989
        %v2022 = vmul.f32 %v995, %v1990
        %v2023 = vmul.f32 %v996, %v1991
        %v2024 = vmul.f32 %v997, %v1992
        %v2025 = vmul.f32 %v998, %v1993
        %v2026 = vmul.f32 %v999, %v1994
        %v2027 = vsel %vm1064, %v1995, 0.0
        %2028 = vadd.xlane.f32.xlu0 %v2027
        %v2029 = vpop.xlane.xlu0 %2028
        %v2030 = vsel %vm1064, %v1996, 0.0
        %2031 = vadd.xlane.f32.xlu0 %v2030
        %v2032 = vpop.xlane.xlu0 %2031
        %v2033 = vsel %vm1064, %v1997, 0.0
        %2034 = vadd.xlane.f32.xlu0 %v2033
        %v2035 = vpop.xlane.xlu0 %2034
        %v2036 = vsel %vm1064, %v1998, 0.0
        %2037 = vadd.xlane.f32.xlu0 %v2036
        %v2038 = vpop.xlane.xlu0 %2037
        %v2039 = vsel %vm1064, %v1999, 0.0
        %2040 = vadd.xlane.f32.xlu0 %v2039
        %v2041 = vpop.xlane.xlu0 %2040
        %v2042 = vsel %vm1064, %v2000, 0.0
        %2043 = vadd.xlane.f32.xlu0 %v2042
        %v2044 = vpop.xlane.xlu0 %2043
        %v2045 = vsel %vm1064, %v2001, 0.0
        %2046 = vadd.xlane.f32.xlu0 %v2045
        %v2047 = vpop.xlane.xlu0 %2046
        %v2048 = vsel %vm1064, %v2002, 0.0
        %2049 = vadd.xlane.f32.xlu0 %v2048
        %v2050 = vpop.xlane.xlu0 %2049
        %v2051 = vsel %vm1064, %v2003, 0.0
        %2052 = vadd.xlane.f32.xlu0 %v2051
        %v2053 = vpop.xlane.xlu0 %2052
        %v2054 = vsel %vm1064, %v2004, 0.0
        %2055 = vadd.xlane.f32.xlu0 %v2054
        %v2056 = vpop.xlane.xlu0 %2055
        %v2057 = vsel %vm1064, %v2005, 0.0
        %2058 = vadd.xlane.f32.xlu0 %v2057
        %v2059 = vpop.xlane.xlu0 %2058
        %v2060 = vsel %vm1064, %v2006, 0.0
        %2061 = vadd.xlane.f32.xlu0 %v2060
        %v2062 = vpop.xlane.xlu0 %2061
        %v2063 = vsel %vm1064, %v2007, 0.0
        %2064 = vadd.xlane.f32.xlu0 %v2063
        %v2065 = vpop.xlane.xlu0 %2064
        %v2066 = vsel %vm1064, %v2008, 0.0
        %2067 = vadd.xlane.f32.xlu0 %v2066
        %v2068 = vpop.xlane.xlu0 %2067
        %v2069 = vsel %vm1064, %v2009, 0.0
        %2070 = vadd.xlane.f32.xlu0 %v2069
        %v2071 = vpop.xlane.xlu0 %2070
        %v2072 = vsel %vm1064, %v2010, 0.0
        %2073 = vadd.xlane.f32.xlu0 %v2072
        %v2074 = vpop.xlane.xlu0 %2073
        %v2075 = vsel %vm1064, %v2011, 0.0
        %2076 = vadd.xlane.f32.xlu0 %v2075
        %v2077 = vpop.xlane.xlu0 %2076
        %v2078 = vsel %vm1064, %v2012, 0.0
        %2079 = vadd.xlane.f32.xlu0 %v2078
        %v2080 = vpop.xlane.xlu0 %2079
        %v2081 = vsel %vm1064, %v2013, 0.0
        %2082 = vadd.xlane.f32.xlu0 %v2081
        %v2083 = vpop.xlane.xlu0 %2082
        %v2084 = vsel %vm1064, %v2014, 0.0
        %2085 = vadd.xlane.f32.xlu0 %v2084
        %v2086 = vpop.xlane.xlu0 %2085
        %v2087 = vsel %vm1064, %v2015, 0.0
        %2088 = vadd.xlane.f32.xlu0 %v2087
        %v2089 = vpop.xlane.xlu0 %2088
        %v2090 = vsel %vm1064, %v2016, 0.0
        %2091 = vadd.xlane.f32.xlu0 %v2090
        %v2092 = vpop.xlane.xlu0 %2091
        %v2093 = vsel %vm1064, %v2017, 0.0
        %2094 = vadd.xlane.f32.xlu0 %v2093
        %v2095 = vpop.xlane.xlu0 %2094
        %v2096 = vsel %vm1064, %v2018, 0.0
        %2097 = vadd.xlane.f32.xlu0 %v2096
        %v2098 = vpop.xlane.xlu0 %2097
        %v2099 = vsel %vm1064, %v2019, 0.0
        %2100 = vadd.xlane.f32.xlu0 %v2099
        %v2101 = vpop.xlane.xlu0 %2100
        %v2102 = vsel %vm1064, %v2020, 0.0
        %2103 = vadd.xlane.f32.xlu0 %v2102
        %v2104 = vpop.xlane.xlu0 %2103
        %v2105 = vsel %vm1064, %v2021, 0.0
        %2106 = vadd.xlane.f32.xlu0 %v2105
        %v2107 = vpop.xlane.xlu0 %2106
        %v2108 = vsel %vm1064, %v2022, 0.0
        %2109 = vadd.xlane.f32.xlu0 %v2108
        %v2110 = vpop.xlane.xlu0 %2109
        %v2111 = vsel %vm1064, %v2023, 0.0
        %2112 = vadd.xlane.f32.xlu0 %v2111
        %v2113 = vpop.xlane.xlu0 %2112
        %v2114 = vsel %vm1064, %v2024, 0.0
        %2115 = vadd.xlane.f32.xlu0 %v2114
        %v2116 = vpop.xlane.xlu0 %2115
        %v2117 = vsel %vm1064, %v2025, 0.0
        %2118 = vadd.xlane.f32.xlu0 %v2117
        %v2119 = vpop.xlane.xlu0 %2118
        %v2120 = vsel %vm1064, %v2026, 0.0
        %2121 = vadd.xlane.f32.xlu0 %v2120
        %v2122 = vpop.xlane.xlu0 %2121
        %v2123 = vsub.f32 0.0, %v2029
        %v2124 = vsub.f32 0.0, %v2032
        %v2125 = vsub.f32 0.0, %v2035
        %v2126 = vsub.f32 0.0, %v2038
        %v2127 = vsub.f32 0.0, %v2041
        %v2128 = vsub.f32 0.0, %v2044
        %v2129 = vsub.f32 0.0, %v2047
        %v2130 = vsub.f32 0.0, %v2050
        %v2131 = vsub.f32 0.0, %v2053
        %v2132 = vsub.f32 0.0, %v2056
        %v2133 = vsub.f32 0.0, %v2059
        %v2134 = vsub.f32 0.0, %v2062
        %v2135 = vsub.f32 0.0, %v2065
        %v2136 = vsub.f32 0.0, %v2068
        %v2137 = vsub.f32 0.0, %v2071
        %v2138 = vsub.f32 0.0, %v2074
        %v2139 = vsub.f32 0.0, %v2077
        %v2140 = vsub.f32 0.0, %v2080
        %v2141 = vsub.f32 0.0, %v2083
        %v2142 = vsub.f32 0.0, %v2086
        %v2143 = vsub.f32 0.0, %v2089
        %v2144 = vsub.f32 0.0, %v2092
        %v2145 = vsub.f32 0.0, %v2095
        %v2146 = vsub.f32 0.0, %v2098
        %v2147 = vsub.f32 0.0, %v2101
        %v2148 = vsub.f32 0.0, %v2104
        %v2149 = vsub.f32 0.0, %v2107
        %v2150 = vsub.f32 0.0, %v2110
        %v2151 = vsub.f32 0.0, %v2113
        %v2152 = vsub.f32 0.0, %v2116
        %v2153 = vsub.f32 0.0, %v2119
        %v2154 = vsub.f32 0.0, %v2122
        %v2155 = vmin.f32 %v2123, 0.0
        %v2156 = vmin.f32 %v2124, 0.0
        %v2157 = vmin.f32 %v2125, 0.0
        %v2158 = vmin.f32 %v2126, 0.0
        %v2159 = vmin.f32 %v2127, 0.0
        %v2160 = vmin.f32 %v2128, 0.0
        %v2161 = vmin.f32 %v2129, 0.0
        %v2162 = vmin.f32 %v2130, 0.0
        %v2163 = vmin.f32 %v2131, 0.0
        %v2164 = vmin.f32 %v2132, 0.0
        %v2165 = vmin.f32 %v2133, 0.0
        %v2166 = vmin.f32 %v2134, 0.0
        %v2167 = vmin.f32 %v2135, 0.0
        %v2168 = vmin.f32 %v2136, 0.0
        %v2169 = vmin.f32 %v2137, 0.0
        %v2170 = vmin.f32 %v2138, 0.0
        %v2171 = vmin.f32 %v2139, 0.0
        %v2172 = vmin.f32 %v2140, 0.0
        %v2173 = vmin.f32 %v2141, 0.0
        %v2174 = vmin.f32 %v2142, 0.0
        %v2175 = vmin.f32 %v2143, 0.0
        %v2176 = vmin.f32 %v2144, 0.0
        %v2177 = vmin.f32 %v2145, 0.0
        %v2178 = vmin.f32 %v2146, 0.0
        %v2179 = vmin.f32 %v2147, 0.0
        %v2180 = vmin.f32 %v2148, 0.0
        %v2181 = vmin.f32 %v2149, 0.0
        %v2182 = vmin.f32 %v2150, 0.0
        %v2183 = vmin.f32 %v2151, 0.0
        %v2184 = vmin.f32 %v2152, 0.0
        %v2185 = vmin.f32 %v2153, 0.0
        %v2186 = vmin.f32 %v2154, 0.0
        %v2187 = vand.u32 2147483647, %v2123
        %v2188 = vand.u32 2147483647, %v2124
        %v2189 = vand.u32 2147483647, %v2125
        %v2190 = vand.u32 2147483647, %v2126
        %v2191 = vand.u32 2147483647, %v2127
        %v2192 = vand.u32 2147483647, %v2128
        %v2193 = vand.u32 2147483647, %v2129
        %v2194 = vand.u32 2147483647, %v2130
        %v2195 = vand.u32 2147483647, %v2131
        %v2196 = vand.u32 2147483647, %v2132
        %v2197 = vand.u32 2147483647, %v2133
        %v2198 = vand.u32 2147483647, %v2134
        %v2199 = vand.u32 2147483647, %v2135
        %v2200 = vand.u32 2147483647, %v2136
        %v2201 = vand.u32 2147483647, %v2137
        %v2202 = vand.u32 2147483647, %v2138
        %v2203 = vand.u32 2147483647, %v2139
        %v2204 = vand.u32 2147483647, %v2140
        %v2205 = vand.u32 2147483647, %v2141
        %v2206 = vand.u32 2147483647, %v2142
        %v2207 = vand.u32 2147483647, %v2143
        %v2208 = vand.u32 2147483647, %v2144
        %v2209 = vand.u32 2147483647, %v2145
        %v2210 = vand.u32 2147483647, %v2146
        %v2211 = vand.u32 2147483647, %v2147
        %v2212 = vand.u32 2147483647, %v2148
        %v2213 = vand.u32 2147483647, %v2149
        %v2214 = vand.u32 2147483647, %v2150
        %v2215 = vand.u32 2147483647, %v2151
        %v2216 = vand.u32 2147483647, %v2152
        %v2217 = vand.u32 2147483647, %v2153
        %v2218 = vand.u32 2147483647, %v2154
        %v2219 = vsub.f32 0.0, %v2187
        %v2220 = vsub.f32 0.0, %v2188
        %v2221 = vsub.f32 0.0, %v2189
        %v2222 = vsub.f32 0.0, %v2190
        %v2223 = vsub.f32 0.0, %v2191
        %v2224 = vsub.f32 0.0, %v2192
        %v2225 = vsub.f32 0.0, %v2193
        %v2226 = vsub.f32 0.0, %v2194
        %v2227 = vsub.f32 0.0, %v2195
        %v2228 = vsub.f32 0.0, %v2196
        %v2229 = vsub.f32 0.0, %v2197
        %v2230 = vsub.f32 0.0, %v2198
        %v2231 = vsub.f32 0.0, %v2199
        %v2232 = vsub.f32 0.0, %v2200
        %v2233 = vsub.f32 0.0, %v2201
        %v2234 = vsub.f32 0.0, %v2202
        %v2235 = vsub.f32 0.0, %v2203
        %v2236 = vsub.f32 0.0, %v2204
        %v2237 = vsub.f32 0.0, %v2205
        %v2238 = vsub.f32 0.0, %v2206
        %v2239 = vsub.f32 0.0, %v2207
        %v2240 = vsub.f32 0.0, %v2208
        %v2241 = vsub.f32 0.0, %v2209
        %v2242 = vsub.f32 0.0, %v2210
        %v2243 = vsub.f32 0.0, %v2211
        %v2244 = vsub.f32 0.0, %v2212
        %v2245 = vsub.f32 0.0, %v2213
        %v2246 = vsub.f32 0.0, %v2214
        %v2247 = vsub.f32 0.0, %v2215
        %v2248 = vsub.f32 0.0, %v2216
        %v2249 = vsub.f32 0.0, %v2217
        %v2250 = vsub.f32 0.0, %v2218
        %v2251 = vmul.f32 %v2219, 1.442695
        %v2252 = vpow.pop %v2251
        %v2253 = vmul.f32 %v2220, 1.442695
        %v2254 = vpow.pop %v2253
        %v2255 = vmul.f32 %v2221, 1.442695
        %v2256 = vpow.pop %v2255
        %v2257 = vmul.f32 %v2222, 1.442695
        %v2258 = vpow.pop %v2257
        %v2259 = vmul.f32 %v2223, 1.442695
        %v2260 = vpow.pop %v2259
        %v2261 = vmul.f32 %v2224, 1.442695
        %v2262 = vpow.pop %v2261
        %v2263 = vmul.f32 %v2225, 1.442695
        %v2264 = vpow.pop %v2263
        %v2265 = vmul.f32 %v2226, 1.442695
        %v2266 = vpow.pop %v2265
        %v2267 = vmul.f32 %v2227, 1.442695
        %v2268 = vpow.pop %v2267
        %v2269 = vmul.f32 %v2228, 1.442695
        %v2270 = vpow.pop %v2269
        %v2271 = vmul.f32 %v2229, 1.442695
        %v2272 = vpow.pop %v2271
        %v2273 = vmul.f32 %v2230, 1.442695
        %v2274 = vpow.pop %v2273
        %v2275 = vmul.f32 %v2231, 1.442695
        %v2276 = vpow.pop %v2275
        %v2277 = vmul.f32 %v2232, 1.442695
        %v2278 = vpow.pop %v2277
        %v2279 = vmul.f32 %v2233, 1.442695
        %v2280 = vpow.pop %v2279
        %v2281 = vmul.f32 %v2234, 1.442695
        %v2282 = vpow.pop %v2281
        %v2283 = vmul.f32 %v2235, 1.442695
        %v2284 = vpow.pop %v2283
        %v2285 = vmul.f32 %v2236, 1.442695
        %v2286 = vpow.pop %v2285
        %v2287 = vmul.f32 %v2237, 1.442695
        %v2288 = vpow.pop %v2287
        %v2289 = vmul.f32 %v2238, 1.442695
        %v2290 = vpow.pop %v2289
        %v2291 = vmul.f32 %v2239, 1.442695
        %v2292 = vpow.pop %v2291
        %v2293 = vmul.f32 %v2240, 1.442695
        %v2294 = vpow.pop %v2293
        %v2295 = vmul.f32 %v2241, 1.442695
        %v2296 = vpow.pop %v2295
        %v2297 = vmul.f32 %v2242, 1.442695
        %v2298 = vpow.pop %v2297
        %v2299 = vmul.f32 %v2243, 1.442695
        %v2300 = vpow.pop %v2299
        %v2301 = vmul.f32 %v2244, 1.442695
        %v2302 = vpow.pop %v2301
        %v2303 = vmul.f32 %v2245, 1.442695
        %v2304 = vpow.pop %v2303
        %v2305 = vmul.f32 %v2246, 1.442695
        %v2306 = vpow.pop %v2305
        %v2307 = vmul.f32 %v2247, 1.442695
        %v2308 = vpow.pop %v2307
        %v2309 = vmul.f32 %v2248, 1.442695
        %v2310 = vpow.pop %v2309
        %v2311 = vmul.f32 %v2249, 1.442695
        %v2312 = vpow.pop %v2311
        %v2313 = vmul.f32 %v2250, 1.442695
        %v2314 = vpow.pop %v2313
        %v2315 = vadd.f32 %v2252, 1.0
        %v2316 = vadd.f32 %v2254, 1.0
        %v2317 = vadd.f32 %v2256, 1.0
        %v2318 = vadd.f32 %v2258, 1.0
        %v2319 = vadd.f32 %v2260, 1.0
        %v2320 = vadd.f32 %v2262, 1.0
        %v2321 = vadd.f32 %v2264, 1.0
        %v2322 = vadd.f32 %v2266, 1.0
        %v2323 = vadd.f32 %v2268, 1.0
        %v2324 = vadd.f32 %v2270, 1.0
        %v2325 = vadd.f32 %v2272, 1.0
        %v2326 = vadd.f32 %v2274, 1.0
        %v2327 = vadd.f32 %v2276, 1.0
        %v2328 = vadd.f32 %v2278, 1.0
        %v2329 = vadd.f32 %v2280, 1.0
        %v2330 = vadd.f32 %v2282, 1.0
        %v2331 = vadd.f32 %v2284, 1.0
        %v2332 = vadd.f32 %v2286, 1.0
        %v2333 = vadd.f32 %v2288, 1.0
        %v2334 = vadd.f32 %v2290, 1.0
        %v2335 = vadd.f32 %v2292, 1.0
        %v2336 = vadd.f32 %v2294, 1.0
        %v2337 = vadd.f32 %v2296, 1.0
        %v2338 = vadd.f32 %v2298, 1.0
        %v2339 = vadd.f32 %v2300, 1.0
        %v2340 = vadd.f32 %v2302, 1.0
        %v2341 = vadd.f32 %v2304, 1.0
        %v2342 = vadd.f32 %v2306, 1.0
        %v2343 = vadd.f32 %v2308, 1.0
        %v2344 = vadd.f32 %v2310, 1.0
        %v2345 = vadd.f32 %v2312, 1.0
        %v2346 = vadd.f32 %v2314, 1.0
        %v2347 = vlog2.pop %v2315
        %v2348 = vmul.f32 %v2347, 0.6931472
        %v2349 = vlog2.pop %v2316
        %v2350 = vmul.f32 %v2349, 0.6931472
        %v2351 = vlog2.pop %v2317
        %v2352 = vmul.f32 %v2351, 0.6931472
        %v2353 = vlog2.pop %v2318
        %v2354 = vmul.f32 %v2353, 0.6931472
        %v2355 = vlog2.pop %v2319
        %v2356 = vmul.f32 %v2355, 0.6931472
        %v2357 = vlog2.pop %v2320
        %v2358 = vmul.f32 %v2357, 0.6931472
        %v2359 = vlog2.pop %v2321
        %v2360 = vmul.f32 %v2359, 0.6931472
        %v2361 = vlog2.pop %v2322
        %v2362 = vmul.f32 %v2361, 0.6931472
        %v2363 = vlog2.pop %v2323
        %v2364 = vmul.f32 %v2363, 0.6931472
        %v2365 = vlog2.pop %v2324
        %v2366 = vmul.f32 %v2365, 0.6931472
        %v2367 = vlog2.pop %v2325
        %v2368 = vmul.f32 %v2367, 0.6931472
        %v2369 = vlog2.pop %v2326
        %v2370 = vmul.f32 %v2369, 0.6931472
        %v2371 = vlog2.pop %v2327
        %v2372 = vmul.f32 %v2371, 0.6931472
        %v2373 = vlog2.pop %v2328
        %v2374 = vmul.f32 %v2373, 0.6931472
        %v2375 = vlog2.pop %v2329
        %v2376 = vmul.f32 %v2375, 0.6931472
        %v2377 = vlog2.pop %v2330
        %v2378 = vmul.f32 %v2377, 0.6931472
        %v2379 = vlog2.pop %v2331
        %v2380 = vmul.f32 %v2379, 0.6931472
        %v2381 = vlog2.pop %v2332
        %v2382 = vmul.f32 %v2381, 0.6931472
        %v2383 = vlog2.pop %v2333
        %v2384 = vmul.f32 %v2383, 0.6931472
        %v2385 = vlog2.pop %v2334
        %v2386 = vmul.f32 %v2385, 0.6931472
        %v2387 = vlog2.pop %v2335
        %v2388 = vmul.f32 %v2387, 0.6931472
        %v2389 = vlog2.pop %v2336
        %v2390 = vmul.f32 %v2389, 0.6931472
        %v2391 = vlog2.pop %v2337
        %v2392 = vmul.f32 %v2391, 0.6931472
        %v2393 = vlog2.pop %v2338
        %v2394 = vmul.f32 %v2393, 0.6931472
        %v2395 = vlog2.pop %v2339
        %v2396 = vmul.f32 %v2395, 0.6931472
        %v2397 = vlog2.pop %v2340
        %v2398 = vmul.f32 %v2397, 0.6931472
        %v2399 = vlog2.pop %v2341
        %v2400 = vmul.f32 %v2399, 0.6931472
        %v2401 = vlog2.pop %v2342
        %v2402 = vmul.f32 %v2401, 0.6931472
        %v2403 = vlog2.pop %v2343
        %v2404 = vmul.f32 %v2403, 0.6931472
        %v2405 = vlog2.pop %v2344
        %v2406 = vmul.f32 %v2405, 0.6931472
        %v2407 = vlog2.pop %v2345
        %v2408 = vmul.f32 %v2407, 0.6931472
        %v2409 = vlog2.pop %v2346
        %v2410 = vmul.f32 %v2409, 0.6931472
        %v2411 = vsub.f32 %v2155, %v2348
        %v2412 = vsub.f32 %v2156, %v2350
        %v2413 = vsub.f32 %v2157, %v2352
        %v2414 = vsub.f32 %v2158, %v2354
        %v2415 = vsub.f32 %v2159, %v2356
        %v2416 = vsub.f32 %v2160, %v2358
        %v2417 = vsub.f32 %v2161, %v2360
        %v2418 = vsub.f32 %v2162, %v2362
        %v2419 = vsub.f32 %v2163, %v2364
        %v2420 = vsub.f32 %v2164, %v2366
        %v2421 = vsub.f32 %v2165, %v2368
        %v2422 = vsub.f32 %v2166, %v2370
        %v2423 = vsub.f32 %v2167, %v2372
        %v2424 = vsub.f32 %v2168, %v2374
        %v2425 = vsub.f32 %v2169, %v2376
        %v2426 = vsub.f32 %v2170, %v2378
        %v2427 = vsub.f32 %v2171, %v2380
        %v2428 = vsub.f32 %v2172, %v2382
        %v2429 = vsub.f32 %v2173, %v2384
        %v2430 = vsub.f32 %v2174, %v2386
        %v2431 = vsub.f32 %v2175, %v2388
        %v2432 = vsub.f32 %v2176, %v2390
        %v2433 = vsub.f32 %v2177, %v2392
        %v2434 = vsub.f32 %v2178, %v2394
        %v2435 = vsub.f32 %v2179, %v2396
        %v2436 = vsub.f32 %v2180, %v2398
        %v2437 = vsub.f32 %v2181, %v2400
        %v2438 = vsub.f32 %v2182, %v2402
        %v2439 = vsub.f32 %v2183, %v2404
        %v2440 = vsub.f32 %v2184, %v2406
        %v2441 = vsub.f32 %v2185, %v2408
        %v2442 = vsub.f32 %v2186, %v2410
        %v2443 = vadd.f32 %v1930, %v2411
        %v2444 = vadd.f32 %v1931, %v2412
        %v2445 = vadd.f32 %v1932, %v2413
        %v2446 = vadd.f32 %v1933, %v2414
        %v2447 = vadd.f32 %v1934, %v2415
        %v2448 = vadd.f32 %v1935, %v2416
        %v2449 = vadd.f32 %v1936, %v2417
        %v2450 = vadd.f32 %v1937, %v2418
        %v2451 = vadd.f32 %v1938, %v2419
        %v2452 = vadd.f32 %v1939, %v2420
        %v2453 = vadd.f32 %v1940, %v2421
        %v2454 = vadd.f32 %v1941, %v2422
        %v2455 = vadd.f32 %v1942, %v2423
        %v2456 = vadd.f32 %v1943, %v2424
        %v2457 = vadd.f32 %v1944, %v2425
        %v2458 = vadd.f32 %v1945, %v2426
        %v2459 = vadd.f32 %v1946, %v2427
        %v2460 = vadd.f32 %v1947, %v2428
        %v2461 = vadd.f32 %v1948, %v2429
        %v2462 = vadd.f32 %v1949, %v2430
        %v2463 = vadd.f32 %v1950, %v2431
        %v2464 = vadd.f32 %v1951, %v2432
        %v2465 = vadd.f32 %v1952, %v2433
        %v2466 = vadd.f32 %v1953, %v2434
        %v2467 = vadd.f32 %v1954, %v2435
        %v2468 = vadd.f32 %v1955, %v2436
        %v2469 = vadd.f32 %v1956, %v2437
        %v2470 = vadd.f32 %v1957, %v2438
        %v2471 = vadd.f32 %v1958, %v2439
        %v2472 = vadd.f32 %v1959, %v2440
        %v2473 = vadd.f32 %v1960, %v2441
        %v2474 = vadd.f32 %v1961, %v2442
        %s2475 = scalar_lea.vmem %s872, 768 [#allocation3]
        %v2476 = vld [vmem:[%s2475] sm:$0xff]
        %v2477 = vld [vmem:[%s2475 + $0x8] sm:$0xff]
        %v2478 = vld [vmem:[%s2475 + $0x10] sm:$0xff]
        %v2479 = vld [vmem:[%s2475 + $0x18] sm:$0xff]
        %v2480 = vld [vmem:[%s2475 + $0x20] sm:$0xff]
        %v2481 = vld [vmem:[%s2475 + $0x28] sm:$0xff]
        %v2482 = vld [vmem:[%s2475 + $0x30] sm:$0xff]
        %v2483 = vld [vmem:[%s2475 + $0x38] sm:$0xff]
        %v2484 = vld [vmem:[%s2475 + $0x40] sm:$0xff]
        %v2485 = vld [vmem:[%s2475 + $0x48] sm:$0xff]
        %v2486 = vld [vmem:[%s2475 + $0x50] sm:$0xff]
        %v2487 = vld [vmem:[%s2475 + $0x58] sm:$0xff]
        %v2488 = vld [vmem:[%s2475 + $0x60] sm:$0xff]
        %v2489 = vld [vmem:[%s2475 + $0x68] sm:$0xff]
        %v2490 = vld [vmem:[%s2475 + $0x70] sm:$0xff]
        %v2491 = vld [vmem:[%s2475 + $0x78] sm:$0xff]
        %v2492 = vld [vmem:[%s2475 + $0x80] sm:$0xff]
        %v2493 = vld [vmem:[%s2475 + $0x88] sm:$0xff]
        %v2494 = vld [vmem:[%s2475 + $0x90] sm:$0xff]
        %v2495 = vld [vmem:[%s2475 + $0x98] sm:$0xff]
        %v2496 = vld [vmem:[%s2475 + $0xa0] sm:$0xff]
        %v2497 = vld [vmem:[%s2475 + $0xa8] sm:$0xff]
        %v2498 = vld [vmem:[%s2475 + $0xb0] sm:$0xff]
        %v2499 = vld [vmem:[%s2475 + $0xb8] sm:$0xff]
        %v2500 = vld [vmem:[%s2475 + $0xc0] sm:$0xff]
        %v2501 = vld [vmem:[%s2475 + $0xc8] sm:$0xff]
        %v2502 = vld [vmem:[%s2475 + $0xd0] sm:$0xff]
        %v2503 = vld [vmem:[%s2475 + $0xd8] sm:$0xff]
        %v2504 = vld [vmem:[%s2475 + $0xe0] sm:$0xff]
        %v2505 = vld [vmem:[%s2475 + $0xe8] sm:$0xff]
        %v2506 = vld [vmem:[%s2475 + $0xf0] sm:$0xff]
        %v2507 = vld [vmem:[%s2475 + $0xf8] sm:$0xff]
        %v2508 = vmul.f32 %v968, %v2476
        %v2509 = vmul.f32 %v969, %v2477
        %v2510 = vmul.f32 %v970, %v2478
        %v2511 = vmul.f32 %v971, %v2479
        %v2512 = vmul.f32 %v972, %v2480
        %v2513 = vmul.f32 %v973, %v2481
        %v2514 = vmul.f32 %v974, %v2482
        %v2515 = vmul.f32 %v975, %v2483
        %v2516 = vmul.f32 %v976, %v2484
        %v2517 = vmul.f32 %v977, %v2485
        %v2518 = vmul.f32 %v978, %v2486
        %v2519 = vmul.f32 %v979, %v2487
        %v2520 = vmul.f32 %v980, %v2488
        %v2521 = vmul.f32 %v981, %v2489
        %v2522 = vmul.f32 %v982, %v2490
        %v2523 = vmul.f32 %v983, %v2491
        %v2524 = vmul.f32 %v984, %v2492
        %v2525 = vmul.f32 %v985, %v2493
        %v2526 = vmul.f32 %v986, %v2494
        %v2527 = vmul.f32 %v987, %v2495
        %v2528 = vmul.f32 %v988, %v2496
        %v2529 = vmul.f32 %v989, %v2497
        %v2530 = vmul.f32 %v990, %v2498
        %v2531 = vmul.f32 %v991, %v2499
        %v2532 = vmul.f32 %v992, %v2500
        %v2533 = vmul.f32 %v993, %v2501
        %v2534 = vmul.f32 %v994, %v2502
        %v2535 = vmul.f32 %v995, %v2503
        %v2536 = vmul.f32 %v996, %v2504
        %v2537 = vmul.f32 %v997, %v2505
        %v2538 = vmul.f32 %v998, %v2506
        %v2539 = vmul.f32 %v999, %v2507
        %v2540 = vsel %vm1064, %v2508, 0.0
        %2541 = vadd.xlane.f32.xlu0 %v2540
        %v2542 = vpop.xlane.xlu0 %2541
        %v2543 = vsel %vm1064, %v2509, 0.0
        %2544 = vadd.xlane.f32.xlu0 %v2543
        %v2545 = vpop.xlane.xlu0 %2544
        %v2546 = vsel %vm1064, %v2510, 0.0
        %2547 = vadd.xlane.f32.xlu0 %v2546
        %v2548 = vpop.xlane.xlu0 %2547
        %v2549 = vsel %vm1064, %v2511, 0.0
        %2550 = vadd.xlane.f32.xlu0 %v2549
        %v2551 = vpop.xlane.xlu0 %2550
        %v2552 = vsel %vm1064, %v2512, 0.0
        %2553 = vadd.xlane.f32.xlu0 %v2552
        %v2554 = vpop.xlane.xlu0 %2553
        %v2555 = vsel %vm1064, %v2513, 0.0
        %2556 = vadd.xlane.f32.xlu0 %v2555
        %v2557 = vpop.xlane.xlu0 %2556
        %v2558 = vsel %vm1064, %v2514, 0.0
        %2559 = vadd.xlane.f32.xlu0 %v2558
        %v2560 = vpop.xlane.xlu0 %2559
        %v2561 = vsel %vm1064, %v2515, 0.0
        %2562 = vadd.xlane.f32.xlu0 %v2561
        %v2563 = vpop.xlane.xlu0 %2562
        %v2564 = vsel %vm1064, %v2516, 0.0
        %2565 = vadd.xlane.f32.xlu0 %v2564
        %v2566 = vpop.xlane.xlu0 %2565
        %v2567 = vsel %vm1064, %v2517, 0.0
        %2568 = vadd.xlane.f32.xlu0 %v2567
        %v2569 = vpop.xlane.xlu0 %2568
        %v2570 = vsel %vm1064, %v2518, 0.0
        %2571 = vadd.xlane.f32.xlu0 %v2570
        %v2572 = vpop.xlane.xlu0 %2571
        %v2573 = vsel %vm1064, %v2519, 0.0
        %2574 = vadd.xlane.f32.xlu0 %v2573
        %v2575 = vpop.xlane.xlu0 %2574
        %v2576 = vsel %vm1064, %v2520, 0.0
        %2577 = vadd.xlane.f32.xlu0 %v2576
        %v2578 = vpop.xlane.xlu0 %2577
        %v2579 = vsel %vm1064, %v2521, 0.0
        %2580 = vadd.xlane.f32.xlu0 %v2579
        %v2581 = vpop.xlane.xlu0 %2580
        %v2582 = vsel %vm1064, %v2522, 0.0
        %2583 = vadd.xlane.f32.xlu0 %v2582
        %v2584 = vpop.xlane.xlu0 %2583
        %v2585 = vsel %vm1064, %v2523, 0.0
        %2586 = vadd.xlane.f32.xlu0 %v2585
        %v2587 = vpop.xlane.xlu0 %2586
        %v2588 = vsel %vm1064, %v2524, 0.0
        %2589 = vadd.xlane.f32.xlu0 %v2588
        %v2590 = vpop.xlane.xlu0 %2589
        %v2591 = vsel %vm1064, %v2525, 0.0
        %2592 = vadd.xlane.f32.xlu0 %v2591
        %v2593 = vpop.xlane.xlu0 %2592
        %v2594 = vsel %vm1064, %v2526, 0.0
        %2595 = vadd.xlane.f32.xlu0 %v2594
        %v2596 = vpop.xlane.xlu0 %2595
        %v2597 = vsel %vm1064, %v2527, 0.0
        %2598 = vadd.xlane.f32.xlu0 %v2597
        %v2599 = vpop.xlane.xlu0 %2598
        %v2600 = vsel %vm1064, %v2528, 0.0
        %2601 = vadd.xlane.f32.xlu0 %v2600
        %v2602 = vpop.xlane.xlu0 %2601
        %v2603 = vsel %vm1064, %v2529, 0.0
        %2604 = vadd.xlane.f32.xlu0 %v2603
        %v2605 = vpop.xlane.xlu0 %2604
        %v2606 = vsel %vm1064, %v2530, 0.0
        %2607 = vadd.xlane.f32.xlu0 %v2606
        %v2608 = vpop.xlane.xlu0 %2607
        %v2609 = vsel %vm1064, %v2531, 0.0
        %2610 = vadd.xlane.f32.xlu0 %v2609
        %v2611 = vpop.xlane.xlu0 %2610
        %v2612 = vsel %vm1064, %v2532, 0.0
        %2613 = vadd.xlane.f32.xlu0 %v2612
        %v2614 = vpop.xlane.xlu0 %2613
        %v2615 = vsel %vm1064, %v2533, 0.0
        %2616 = vadd.xlane.f32.xlu0 %v2615
        %v2617 = vpop.xlane.xlu0 %2616
        %v2618 = vsel %vm1064, %v2534, 0.0
        %2619 = vadd.xlane.f32.xlu0 %v2618
        %v2620 = vpop.xlane.xlu0 %2619
        %v2621 = vsel %vm1064, %v2535, 0.0
        %2622 = vadd.xlane.f32.xlu0 %v2621
        %v2623 = vpop.xlane.xlu0 %2622
        %v2624 = vsel %vm1064, %v2536, 0.0
        %2625 = vadd.xlane.f32.xlu0 %v2624
        %v2626 = vpop.xlane.xlu0 %2625
        %v2627 = vsel %vm1064, %v2537, 0.0
        %2628 = vadd.xlane.f32.xlu0 %v2627
        %v2629 = vpop.xlane.xlu0 %2628
        %v2630 = vsel %vm1064, %v2538, 0.0
        %2631 = vadd.xlane.f32.xlu0 %v2630
        %v2632 = vpop.xlane.xlu0 %2631
        %v2633 = vsel %vm1064, %v2539, 0.0
        %2634 = vadd.xlane.f32.xlu0 %v2633
        %v2635 = vpop.xlane.xlu0 %2634
        %v2636 = vsub.f32 0.0, %v2542
        %v2637 = vsub.f32 0.0, %v2545
        %v2638 = vsub.f32 0.0, %v2548
        %v2639 = vsub.f32 0.0, %v2551
        %v2640 = vsub.f32 0.0, %v2554
        %v2641 = vsub.f32 0.0, %v2557
        %v2642 = vsub.f32 0.0, %v2560
        %v2643 = vsub.f32 0.0, %v2563
        %v2644 = vsub.f32 0.0, %v2566
        %v2645 = vsub.f32 0.0, %v2569
        %v2646 = vsub.f32 0.0, %v2572
        %v2647 = vsub.f32 0.0, %v2575
        %v2648 = vsub.f32 0.0, %v2578
        %v2649 = vsub.f32 0.0, %v2581
        %v2650 = vsub.f32 0.0, %v2584
        %v2651 = vsub.f32 0.0, %v2587
        %v2652 = vsub.f32 0.0, %v2590
        %v2653 = vsub.f32 0.0, %v2593
        %v2654 = vsub.f32 0.0, %v2596
        %v2655 = vsub.f32 0.0, %v2599
        %v2656 = vsub.f32 0.0, %v2602
        %v2657 = vsub.f32 0.0, %v2605
        %v2658 = vsub.f32 0.0, %v2608
        %v2659 = vsub.f32 0.0, %v2611
        %v2660 = vsub.f32 0.0, %v2614
        %v2661 = vsub.f32 0.0, %v2617
        %v2662 = vsub.f32 0.0, %v2620
        %v2663 = vsub.f32 0.0, %v2623
        %v2664 = vsub.f32 0.0, %v2626
        %v2665 = vsub.f32 0.0, %v2629
        %v2666 = vsub.f32 0.0, %v2632
        %v2667 = vsub.f32 0.0, %v2635
        %v2668 = vmin.f32 %v2636, 0.0
        %v2669 = vmin.f32 %v2637, 0.0
        %v2670 = vmin.f32 %v2638, 0.0
        %v2671 = vmin.f32 %v2639, 0.0
        %v2672 = vmin.f32 %v2640, 0.0
        %v2673 = vmin.f32 %v2641, 0.0
        %v2674 = vmin.f32 %v2642, 0.0
        %v2675 = vmin.f32 %v2643, 0.0
        %v2676 = vmin.f32 %v2644, 0.0
        %v2677 = vmin.f32 %v2645, 0.0
        %v2678 = vmin.f32 %v2646, 0.0
        %v2679 = vmin.f32 %v2647, 0.0
        %v2680 = vmin.f32 %v2648, 0.0
        %v2681 = vmin.f32 %v2649, 0.0
        %v2682 = vmin.f32 %v2650, 0.0
        %v2683 = vmin.f32 %v2651, 0.0
        %v2684 = vmin.f32 %v2652, 0.0
        %v2685 = vmin.f32 %v2653, 0.0
        %v2686 = vmin.f32 %v2654, 0.0
        %v2687 = vmin.f32 %v2655, 0.0
        %v2688 = vmin.f32 %v2656, 0.0
        %v2689 = vmin.f32 %v2657, 0.0
        %v2690 = vmin.f32 %v2658, 0.0
        %v2691 = vmin.f32 %v2659, 0.0
        %v2692 = vmin.f32 %v2660, 0.0
        %v2693 = vmin.f32 %v2661, 0.0
        %v2694 = vmin.f32 %v2662, 0.0
        %v2695 = vmin.f32 %v2663, 0.0
        %v2696 = vmin.f32 %v2664, 0.0
        %v2697 = vmin.f32 %v2665, 0.0
        %v2698 = vmin.f32 %v2666, 0.0
        %v2699 = vmin.f32 %v2667, 0.0
        %v2700 = vand.u32 2147483647, %v2636
        %v2701 = vand.u32 2147483647, %v2637
        %v2702 = vand.u32 2147483647, %v2638
        %v2703 = vand.u32 2147483647, %v2639
        %v2704 = vand.u32 2147483647, %v2640
        %v2705 = vand.u32 2147483647, %v2641
        %v2706 = vand.u32 2147483647, %v2642
        %v2707 = vand.u32 2147483647, %v2643
        %v2708 = vand.u32 2147483647, %v2644
        %v2709 = vand.u32 2147483647, %v2645
        %v2710 = vand.u32 2147483647, %v2646
        %v2711 = vand.u32 2147483647, %v2647
        %v2712 = vand.u32 2147483647, %v2648
        %v2713 = vand.u32 2147483647, %v2649
        %v2714 = vand.u32 2147483647, %v2650
        %v2715 = vand.u32 2147483647, %v2651
        %v2716 = vand.u32 2147483647, %v2652
        %v2717 = vand.u32 2147483647, %v2653
        %v2718 = vand.u32 2147483647, %v2654
        %v2719 = vand.u32 2147483647, %v2655
        %v2720 = vand.u32 2147483647, %v2656
        %v2721 = vand.u32 2147483647, %v2657
        %v2722 = vand.u32 2147483647, %v2658
        %v2723 = vand.u32 2147483647, %v2659
        %v2724 = vand.u32 2147483647, %v2660
        %v2725 = vand.u32 2147483647, %v2661
        %v2726 = vand.u32 2147483647, %v2662
        %v2727 = vand.u32 2147483647, %v2663
        %v2728 = vand.u32 2147483647, %v2664
        %v2729 = vand.u32 2147483647, %v2665
        %v2730 = vand.u32 2147483647, %v2666
        %v2731 = vand.u32 2147483647, %v2667
        %v2732 = vsub.f32 0.0, %v2700
        %v2733 = vsub.f32 0.0, %v2701
        %v2734 = vsub.f32 0.0, %v2702
        %v2735 = vsub.f32 0.0, %v2703
        %v2736 = vsub.f32 0.0, %v2704
        %v2737 = vsub.f32 0.0, %v2705
        %v2738 = vsub.f32 0.0, %v2706
        %v2739 = vsub.f32 0.0, %v2707
        %v2740 = vsub.f32 0.0, %v2708
        %v2741 = vsub.f32 0.0, %v2709
        %v2742 = vsub.f32 0.0, %v2710
        %v2743 = vsub.f32 0.0, %v2711
        %v2744 = vsub.f32 0.0, %v2712
        %v2745 = vsub.f32 0.0, %v2713
        %v2746 = vsub.f32 0.0, %v2714
        %v2747 = vsub.f32 0.0, %v2715
        %v2748 = vsub.f32 0.0, %v2716
        %v2749 = vsub.f32 0.0, %v2717
        %v2750 = vsub.f32 0.0, %v2718
        %v2751 = vsub.f32 0.0, %v2719
        %v2752 = vsub.f32 0.0, %v2720
        %v2753 = vsub.f32 0.0, %v2721
        %v2754 = vsub.f32 0.0, %v2722
        %v2755 = vsub.f32 0.0, %v2723
        %v2756 = vsub.f32 0.0, %v2724
        %v2757 = vsub.f32 0.0, %v2725
        %v2758 = vsub.f32 0.0, %v2726
        %v2759 = vsub.f32 0.0, %v2727
        %v2760 = vsub.f32 0.0, %v2728
        %v2761 = vsub.f32 0.0, %v2729
        %v2762 = vsub.f32 0.0, %v2730
        %v2763 = vsub.f32 0.0, %v2731
        %v2764 = vmul.f32 %v2732, 1.442695
        %v2765 = vpow.pop %v2764
        %v2766 = vmul.f32 %v2733, 1.442695
        %v2767 = vpow.pop %v2766
        %v2768 = vmul.f32 %v2734, 1.442695
        %v2769 = vpow.pop %v2768
        %v2770 = vmul.f32 %v2735, 1.442695
        %v2771 = vpow.pop %v2770
        %v2772 = vmul.f32 %v2736, 1.442695
        %v2773 = vpow.pop %v2772
        %v2774 = vmul.f32 %v2737, 1.442695
        %v2775 = vpow.pop %v2774
        %v2776 = vmul.f32 %v2738, 1.442695
        %v2777 = vpow.pop %v2776
        %v2778 = vmul.f32 %v2739, 1.442695
        %v2779 = vpow.pop %v2778
        %v2780 = vmul.f32 %v2740, 1.442695
        %v2781 = vpow.pop %v2780
        %v2782 = vmul.f32 %v2741, 1.442695
        %v2783 = vpow.pop %v2782
        %v2784 = vmul.f32 %v2742, 1.442695
        %v2785 = vpow.pop %v2784
        %v2786 = vmul.f32 %v2743, 1.442695
        %v2787 = vpow.pop %v2786
        %v2788 = vmul.f32 %v2744, 1.442695
        %v2789 = vpow.pop %v2788
        %v2790 = vmul.f32 %v2745, 1.442695
        %v2791 = vpow.pop %v2790
        %v2792 = vmul.f32 %v2746, 1.442695
        %v2793 = vpow.pop %v2792
        %v2794 = vmul.f32 %v2747, 1.442695
        %v2795 = vpow.pop %v2794
        %v2796 = vmul.f32 %v2748, 1.442695
        %v2797 = vpow.pop %v2796
        %v2798 = vmul.f32 %v2749, 1.442695
        %v2799 = vpow.pop %v2798
        %v2800 = vmul.f32 %v2750, 1.442695
        %v2801 = vpow.pop %v2800
        %v2802 = vmul.f32 %v2751, 1.442695
        %v2803 = vpow.pop %v2802
        %v2804 = vmul.f32 %v2752, 1.442695
        %v2805 = vpow.pop %v2804
        %v2806 = vmul.f32 %v2753, 1.442695
        %v2807 = vpow.pop %v2806
        %v2808 = vmul.f32 %v2754, 1.442695
        %v2809 = vpow.pop %v2808
        %v2810 = vmul.f32 %v2755, 1.442695
        %v2811 = vpow.pop %v2810
        %v2812 = vmul.f32 %v2756, 1.442695
        %v2813 = vpow.pop %v2812
        %v2814 = vmul.f32 %v2757, 1.442695
        %v2815 = vpow.pop %v2814
        %v2816 = vmul.f32 %v2758, 1.442695
        %v2817 = vpow.pop %v2816
        %v2818 = vmul.f32 %v2759, 1.442695
        %v2819 = vpow.pop %v2818
        %v2820 = vmul.f32 %v2760, 1.442695
        %v2821 = vpow.pop %v2820
        %v2822 = vmul.f32 %v2761, 1.442695
        %v2823 = vpow.pop %v2822
        %v2824 = vmul.f32 %v2762, 1.442695
        %v2825 = vpow.pop %v2824
        %v2826 = vmul.f32 %v2763, 1.442695
        %v2827 = vpow.pop %v2826
        %v2828 = vadd.f32 %v2765, 1.0
        %v2829 = vadd.f32 %v2767, 1.0
        %v2830 = vadd.f32 %v2769, 1.0
        %v2831 = vadd.f32 %v2771, 1.0
        %v2832 = vadd.f32 %v2773, 1.0
        %v2833 = vadd.f32 %v2775, 1.0
        %v2834 = vadd.f32 %v2777, 1.0
        %v2835 = vadd.f32 %v2779, 1.0
        %v2836 = vadd.f32 %v2781, 1.0
        %v2837 = vadd.f32 %v2783, 1.0
        %v2838 = vadd.f32 %v2785, 1.0
        %v2839 = vadd.f32 %v2787, 1.0
        %v2840 = vadd.f32 %v2789, 1.0
        %v2841 = vadd.f32 %v2791, 1.0
        %v2842 = vadd.f32 %v2793, 1.0
        %v2843 = vadd.f32 %v2795, 1.0
        %v2844 = vadd.f32 %v2797, 1.0
        %v2845 = vadd.f32 %v2799, 1.0
        %v2846 = vadd.f32 %v2801, 1.0
        %v2847 = vadd.f32 %v2803, 1.0
        %v2848 = vadd.f32 %v2805, 1.0
        %v2849 = vadd.f32 %v2807, 1.0
        %v2850 = vadd.f32 %v2809, 1.0
        %v2851 = vadd.f32 %v2811, 1.0
        %v2852 = vadd.f32 %v2813, 1.0
        %v2853 = vadd.f32 %v2815, 1.0
        %v2854 = vadd.f32 %v2817, 1.0
        %v2855 = vadd.f32 %v2819, 1.0
        %v2856 = vadd.f32 %v2821, 1.0
        %v2857 = vadd.f32 %v2823, 1.0
        %v2858 = vadd.f32 %v2825, 1.0
        %v2859 = vadd.f32 %v2827, 1.0
        %v2860 = vlog2.pop %v2828
        %v2861 = vmul.f32 %v2860, 0.6931472
        %v2862 = vlog2.pop %v2829
        %v2863 = vmul.f32 %v2862, 0.6931472
        %v2864 = vlog2.pop %v2830
        %v2865 = vmul.f32 %v2864, 0.6931472
        %v2866 = vlog2.pop %v2831
        %v2867 = vmul.f32 %v2866, 0.6931472
        %v2868 = vlog2.pop %v2832
        %v2869 = vmul.f32 %v2868, 0.6931472
        %v2870 = vlog2.pop %v2833
        %v2871 = vmul.f32 %v2870, 0.6931472
        %v2872 = vlog2.pop %v2834
        %v2873 = vmul.f32 %v2872, 0.6931472
        %v2874 = vlog2.pop %v2835
        %v2875 = vmul.f32 %v2874, 0.6931472
        %v2876 = vlog2.pop %v2836
        %v2877 = vmul.f32 %v2876, 0.6931472
        %v2878 = vlog2.pop %v2837
        %v2879 = vmul.f32 %v2878, 0.6931472
        %v2880 = vlog2.pop %v2838
        %v2881 = vmul.f32 %v2880, 0.6931472
        %v2882 = vlog2.pop %v2839
        %v2883 = vmul.f32 %v2882, 0.6931472
        %v2884 = vlog2.pop %v2840
        %v2885 = vmul.f32 %v2884, 0.6931472
        %v2886 = vlog2.pop %v2841
        %v2887 = vmul.f32 %v2886, 0.6931472
        %v2888 = vlog2.pop %v2842
        %v2889 = vmul.f32 %v2888, 0.6931472
        %v2890 = vlog2.pop %v2843
        %v2891 = vmul.f32 %v2890, 0.6931472
        %v2892 = vlog2.pop %v2844
        %v2893 = vmul.f32 %v2892, 0.6931472
        %v2894 = vlog2.pop %v2845
        %v2895 = vmul.f32 %v2894, 0.6931472
        %v2896 = vlog2.pop %v2846
        %v2897 = vmul.f32 %v2896, 0.6931472
        %v2898 = vlog2.pop %v2847
        %v2899 = vmul.f32 %v2898, 0.6931472
        %v2900 = vlog2.pop %v2848
        %v2901 = vmul.f32 %v2900, 0.6931472
        %v2902 = vlog2.pop %v2849
        %v2903 = vmul.f32 %v2902, 0.6931472
        %v2904 = vlog2.pop %v2850
        %v2905 = vmul.f32 %v2904, 0.6931472
        %v2906 = vlog2.pop %v2851
        %v2907 = vmul.f32 %v2906, 0.6931472
        %v2908 = vlog2.pop %v2852
        %v2909 = vmul.f32 %v2908, 0.6931472
        %v2910 = vlog2.pop %v2853
        %v2911 = vmul.f32 %v2910, 0.6931472
        %v2912 = vlog2.pop %v2854
        %v2913 = vmul.f32 %v2912, 0.6931472
        %v2914 = vlog2.pop %v2855
        %v2915 = vmul.f32 %v2914, 0.6931472
        %v2916 = vlog2.pop %v2856
        %v2917 = vmul.f32 %v2916, 0.6931472
        %v2918 = vlog2.pop %v2857
        %v2919 = vmul.f32 %v2918, 0.6931472
        %v2920 = vlog2.pop %v2858
        %v2921 = vmul.f32 %v2920, 0.6931472
        %v2922 = vlog2.pop %v2859
        %v2923 = vmul.f32 %v2922, 0.6931472
        %v2924 = vsub.f32 %v2668, %v2861
        %v2925 = vsub.f32 %v2669, %v2863
        %v2926 = vsub.f32 %v2670, %v2865
        %v2927 = vsub.f32 %v2671, %v2867
        %v2928 = vsub.f32 %v2672, %v2869
        %v2929 = vsub.f32 %v2673, %v2871
        %v2930 = vsub.f32 %v2674, %v2873
        %v2931 = vsub.f32 %v2675, %v2875
        %v2932 = vsub.f32 %v2676, %v2877
        %v2933 = vsub.f32 %v2677, %v2879
        %v2934 = vsub.f32 %v2678, %v2881
        %v2935 = vsub.f32 %v2679, %v2883
        %v2936 = vsub.f32 %v2680, %v2885
        %v2937 = vsub.f32 %v2681, %v2887
        %v2938 = vsub.f32 %v2682, %v2889
        %v2939 = vsub.f32 %v2683, %v2891
        %v2940 = vsub.f32 %v2684, %v2893
        %v2941 = vsub.f32 %v2685, %v2895
        %v2942 = vsub.f32 %v2686, %v2897
        %v2943 = vsub.f32 %v2687, %v2899
        %v2944 = vsub.f32 %v2688, %v2901
        %v2945 = vsub.f32 %v2689, %v2903
        %v2946 = vsub.f32 %v2690, %v2905
        %v2947 = vsub.f32 %v2691, %v2907
        %v2948 = vsub.f32 %v2692, %v2909
        %v2949 = vsub.f32 %v2693, %v2911
        %v2950 = vsub.f32 %v2694, %v2913
        %v2951 = vsub.f32 %v2695, %v2915
        %v2952 = vsub.f32 %v2696, %v2917
        %v2953 = vsub.f32 %v2697, %v2919
        %v2954 = vsub.f32 %v2698, %v2921
        %v2955 = vsub.f32 %v2699, %v2923
        %v2956 = vadd.f32 %v2443, %v2924
        %v2957 = vadd.f32 %v2444, %v2925
        %v2958 = vadd.f32 %v2445, %v2926
        %v2959 = vadd.f32 %v2446, %v2927
        %v2960 = vadd.f32 %v2447, %v2928
        %v2961 = vadd.f32 %v2448, %v2929
        %v2962 = vadd.f32 %v2449, %v2930
        %v2963 = vadd.f32 %v2450, %v2931
        %v2964 = vadd.f32 %v2451, %v2932
        %v2965 = vadd.f32 %v2452, %v2933
        %v2966 = vadd.f32 %v2453, %v2934
        %v2967 = vadd.f32 %v2454, %v2935
        %v2968 = vadd.f32 %v2455, %v2936
        %v2969 = vadd.f32 %v2456, %v2937
        %v2970 = vadd.f32 %v2457, %v2938
        %v2971 = vadd.f32 %v2458, %v2939
        %v2972 = vadd.f32 %v2459, %v2940
        %v2973 = vadd.f32 %v2460, %v2941
        %v2974 = vadd.f32 %v2461, %v2942
        %v2975 = vadd.f32 %v2462, %v2943
        %v2976 = vadd.f32 %v2463, %v2944
        %v2977 = vadd.f32 %v2464, %v2945
        %v2978 = vadd.f32 %v2465, %v2946
        %v2979 = vadd.f32 %v2466, %v2947
        %v2980 = vadd.f32 %v2467, %v2948
        %v2981 = vadd.f32 %v2468, %v2949
        %v2982 = vadd.f32 %v2469, %v2950
        %v2983 = vadd.f32 %v2470, %v2951
        %v2984 = vadd.f32 %v2471, %v2952
        %v2985 = vadd.f32 %v2472, %v2953
        %v2986 = vadd.f32 %v2473, %v2954
        %v2987 = vadd.f32 %v2474, %v2955
        %s2988 = scalar_lea.vmem %s872, 1024 [#allocation3]
        %v2989 = vld [vmem:[%s2988] sm:$0xff]
        %v2990 = vld [vmem:[%s2988 + $0x8] sm:$0xff]
        %v2991 = vld [vmem:[%s2988 + $0x10] sm:$0xff]
        %v2992 = vld [vmem:[%s2988 + $0x18] sm:$0xff]
        %v2993 = vld [vmem:[%s2988 + $0x20] sm:$0xff]
        %v2994 = vld [vmem:[%s2988 + $0x28] sm:$0xff]
        %v2995 = vld [vmem:[%s2988 + $0x30] sm:$0xff]
        %v2996 = vld [vmem:[%s2988 + $0x38] sm:$0xff]
        %v2997 = vld [vmem:[%s2988 + $0x40] sm:$0xff]
        %v2998 = vld [vmem:[%s2988 + $0x48] sm:$0xff]
        %v2999 = vld [vmem:[%s2988 + $0x50] sm:$0xff]
        %v3000 = vld [vmem:[%s2988 + $0x58] sm:$0xff]
        %v3001 = vld [vmem:[%s2988 + $0x60] sm:$0xff]
        %v3002 = vld [vmem:[%s2988 + $0x68] sm:$0xff]
        %v3003 = vld [vmem:[%s2988 + $0x70] sm:$0xff]
        %v3004 = vld [vmem:[%s2988 + $0x78] sm:$0xff]
        %v3005 = vld [vmem:[%s2988 + $0x80] sm:$0xff]
        %v3006 = vld [vmem:[%s2988 + $0x88] sm:$0xff]
        %v3007 = vld [vmem:[%s2988 + $0x90] sm:$0xff]
        %v3008 = vld [vmem:[%s2988 + $0x98] sm:$0xff]
        %v3009 = vld [vmem:[%s2988 + $0xa0] sm:$0xff]
        %v3010 = vld [vmem:[%s2988 + $0xa8] sm:$0xff]
        %v3011 = vld [vmem:[%s2988 + $0xb0] sm:$0xff]
        %v3012 = vld [vmem:[%s2988 + $0xb8] sm:$0xff]
        %v3013 = vld [vmem:[%s2988 + $0xc0] sm:$0xff]
        %v3014 = vld [vmem:[%s2988 + $0xc8] sm:$0xff]
        %v3015 = vld [vmem:[%s2988 + $0xd0] sm:$0xff]
        %v3016 = vld [vmem:[%s2988 + $0xd8] sm:$0xff]
        %v3017 = vld [vmem:[%s2988 + $0xe0] sm:$0xff]
        %v3018 = vld [vmem:[%s2988 + $0xe8] sm:$0xff]
        %v3019 = vld [vmem:[%s2988 + $0xf0] sm:$0xff]
        %v3020 = vld [vmem:[%s2988 + $0xf8] sm:$0xff]
        %v3021 = vmul.f32 %v968, %v2989
        %v3022 = vmul.f32 %v969, %v2990
        %v3023 = vmul.f32 %v970, %v2991
        %v3024 = vmul.f32 %v971, %v2992
        %v3025 = vmul.f32 %v972, %v2993
        %v3026 = vmul.f32 %v973, %v2994
        %v3027 = vmul.f32 %v974, %v2995
        %v3028 = vmul.f32 %v975, %v2996
        %v3029 = vmul.f32 %v976, %v2997
        %v3030 = vmul.f32 %v977, %v2998
        %v3031 = vmul.f32 %v978, %v2999
        %v3032 = vmul.f32 %v979, %v3000
        %v3033 = vmul.f32 %v980, %v3001
        %v3034 = vmul.f32 %v981, %v3002
        %v3035 = vmul.f32 %v982, %v3003
        %v3036 = vmul.f32 %v983, %v3004
        %v3037 = vmul.f32 %v984, %v3005
        %v3038 = vmul.f32 %v985, %v3006
        %v3039 = vmul.f32 %v986, %v3007
        %v3040 = vmul.f32 %v987, %v3008
        %v3041 = vmul.f32 %v988, %v3009
        %v3042 = vmul.f32 %v989, %v3010
        %v3043 = vmul.f32 %v990, %v3011
        %v3044 = vmul.f32 %v991, %v3012
        %v3045 = vmul.f32 %v992, %v3013
        %v3046 = vmul.f32 %v993, %v3014
        %v3047 = vmul.f32 %v994, %v3015
        %v3048 = vmul.f32 %v995, %v3016
        %v3049 = vmul.f32 %v996, %v3017
        %v3050 = vmul.f32 %v997, %v3018
        %v3051 = vmul.f32 %v998, %v3019
        %v3052 = vmul.f32 %v999, %v3020
        %v3053 = vsel %vm1064, %v3021, 0.0
        %3054 = vadd.xlane.f32.xlu0 %v3053
        %v3055 = vpop.xlane.xlu0 %3054
        %v3056 = vsel %vm1064, %v3022, 0.0
        %3057 = vadd.xlane.f32.xlu0 %v3056
        %v3058 = vpop.xlane.xlu0 %3057
        %v3059 = vsel %vm1064, %v3023, 0.0
        %3060 = vadd.xlane.f32.xlu0 %v3059
        %v3061 = vpop.xlane.xlu0 %3060
        %v3062 = vsel %vm1064, %v3024, 0.0
        %3063 = vadd.xlane.f32.xlu0 %v3062
        %v3064 = vpop.xlane.xlu0 %3063
        %v3065 = vsel %vm1064, %v3025, 0.0
        %3066 = vadd.xlane.f32.xlu0 %v3065
        %v3067 = vpop.xlane.xlu0 %3066
        %v3068 = vsel %vm1064, %v3026, 0.0
        %3069 = vadd.xlane.f32.xlu0 %v3068
        %v3070 = vpop.xlane.xlu0 %3069
        %v3071 = vsel %vm1064, %v3027, 0.0
        %3072 = vadd.xlane.f32.xlu0 %v3071
        %v3073 = vpop.xlane.xlu0 %3072
        %v3074 = vsel %vm1064, %v3028, 0.0
        %3075 = vadd.xlane.f32.xlu0 %v3074
        %v3076 = vpop.xlane.xlu0 %3075
        %v3077 = vsel %vm1064, %v3029, 0.0
        %3078 = vadd.xlane.f32.xlu0 %v3077
        %v3079 = vpop.xlane.xlu0 %3078
        %v3080 = vsel %vm1064, %v3030, 0.0
        %3081 = vadd.xlane.f32.xlu0 %v3080
        %v3082 = vpop.xlane.xlu0 %3081
        %v3083 = vsel %vm1064, %v3031, 0.0
        %3084 = vadd.xlane.f32.xlu0 %v3083
        %v3085 = vpop.xlane.xlu0 %3084
        %v3086 = vsel %vm1064, %v3032, 0.0
        %3087 = vadd.xlane.f32.xlu0 %v3086
        %v3088 = vpop.xlane.xlu0 %3087
        %v3089 = vsel %vm1064, %v3033, 0.0
        %3090 = vadd.xlane.f32.xlu0 %v3089
        %v3091 = vpop.xlane.xlu0 %3090
        %v3092 = vsel %vm1064, %v3034, 0.0
        %3093 = vadd.xlane.f32.xlu0 %v3092
        %v3094 = vpop.xlane.xlu0 %3093
        %v3095 = vsel %vm1064, %v3035, 0.0
        %3096 = vadd.xlane.f32.xlu0 %v3095
        %v3097 = vpop.xlane.xlu0 %3096
        %v3098 = vsel %vm1064, %v3036, 0.0
        %3099 = vadd.xlane.f32.xlu0 %v3098
        %v3100 = vpop.xlane.xlu0 %3099
        %v3101 = vsel %vm1064, %v3037, 0.0
        %3102 = vadd.xlane.f32.xlu0 %v3101
        %v3103 = vpop.xlane.xlu0 %3102
        %v3104 = vsel %vm1064, %v3038, 0.0
        %3105 = vadd.xlane.f32.xlu0 %v3104
        %v3106 = vpop.xlane.xlu0 %3105
        %v3107 = vsel %vm1064, %v3039, 0.0
        %3108 = vadd.xlane.f32.xlu0 %v3107
        %v3109 = vpop.xlane.xlu0 %3108
        %v3110 = vsel %vm1064, %v3040, 0.0
        %3111 = vadd.xlane.f32.xlu0 %v3110
        %v3112 = vpop.xlane.xlu0 %3111
        %v3113 = vsel %vm1064, %v3041, 0.0
        %3114 = vadd.xlane.f32.xlu0 %v3113
        %v3115 = vpop.xlane.xlu0 %3114
        %v3116 = vsel %vm1064, %v3042, 0.0
        %3117 = vadd.xlane.f32.xlu0 %v3116
        %v3118 = vpop.xlane.xlu0 %3117
        %v3119 = vsel %vm1064, %v3043, 0.0
        %3120 = vadd.xlane.f32.xlu0 %v3119
        %v3121 = vpop.xlane.xlu0 %3120
        %v3122 = vsel %vm1064, %v3044, 0.0
        %3123 = vadd.xlane.f32.xlu0 %v3122
        %v3124 = vpop.xlane.xlu0 %3123
        %v3125 = vsel %vm1064, %v3045, 0.0
        %3126 = vadd.xlane.f32.xlu0 %v3125
        %v3127 = vpop.xlane.xlu0 %3126
        %v3128 = vsel %vm1064, %v3046, 0.0
        %3129 = vadd.xlane.f32.xlu0 %v3128
        %v3130 = vpop.xlane.xlu0 %3129
        %v3131 = vsel %vm1064, %v3047, 0.0
        %3132 = vadd.xlane.f32.xlu0 %v3131
        %v3133 = vpop.xlane.xlu0 %3132
        %v3134 = vsel %vm1064, %v3048, 0.0
        %3135 = vadd.xlane.f32.xlu0 %v3134
        %v3136 = vpop.xlane.xlu0 %3135
        %v3137 = vsel %vm1064, %v3049, 0.0
        %3138 = vadd.xlane.f32.xlu0 %v3137
        %v3139 = vpop.xlane.xlu0 %3138
        %v3140 = vsel %vm1064, %v3050, 0.0
        %3141 = vadd.xlane.f32.xlu0 %v3140
        %v3142 = vpop.xlane.xlu0 %3141
        %v3143 = vsel %vm1064, %v3051, 0.0
        %3144 = vadd.xlane.f32.xlu0 %v3143
        %v3145 = vpop.xlane.xlu0 %3144
        %v3146 = vsel %vm1064, %v3052, 0.0
        %3147 = vadd.xlane.f32.xlu0 %v3146
        %v3148 = vpop.xlane.xlu0 %3147
        %v3149 = vsub.f32 0.0, %v3055
        %v3150 = vsub.f32 0.0, %v3058
        %v3151 = vsub.f32 0.0, %v3061
        %v3152 = vsub.f32 0.0, %v3064
        %v3153 = vsub.f32 0.0, %v3067
        %v3154 = vsub.f32 0.0, %v3070
        %v3155 = vsub.f32 0.0, %v3073
        %v3156 = vsub.f32 0.0, %v3076
        %v3157 = vsub.f32 0.0, %v3079
        %v3158 = vsub.f32 0.0, %v3082
        %v3159 = vsub.f32 0.0, %v3085
        %v3160 = vsub.f32 0.0, %v3088
        %v3161 = vsub.f32 0.0, %v3091
        %v3162 = vsub.f32 0.0, %v3094
        %v3163 = vsub.f32 0.0, %v3097
        %v3164 = vsub.f32 0.0, %v3100
        %v3165 = vsub.f32 0.0, %v3103
        %v3166 = vsub.f32 0.0, %v3106
        %v3167 = vsub.f32 0.0, %v3109
        %v3168 = vsub.f32 0.0, %v3112
        %v3169 = vsub.f32 0.0, %v3115
        %v3170 = vsub.f32 0.0, %v3118
        %v3171 = vsub.f32 0.0, %v3121
        %v3172 = vsub.f32 0.0, %v3124
        %v3173 = vsub.f32 0.0, %v3127
        %v3174 = vsub.f32 0.0, %v3130
        %v3175 = vsub.f32 0.0, %v3133
        %v3176 = vsub.f32 0.0, %v3136
        %v3177 = vsub.f32 0.0, %v3139
        %v3178 = vsub.f32 0.0, %v3142
        %v3179 = vsub.f32 0.0, %v3145
        %v3180 = vsub.f32 0.0, %v3148
        %v3181 = vmin.f32 %v3149, 0.0
        %v3182 = vmin.f32 %v3150, 0.0
        %v3183 = vmin.f32 %v3151, 0.0
        %v3184 = vmin.f32 %v3152, 0.0
        %v3185 = vmin.f32 %v3153, 0.0
        %v3186 = vmin.f32 %v3154, 0.0
        %v3187 = vmin.f32 %v3155, 0.0
        %v3188 = vmin.f32 %v3156, 0.0
        %v3189 = vmin.f32 %v3157, 0.0
        %v3190 = vmin.f32 %v3158, 0.0
        %v3191 = vmin.f32 %v3159, 0.0
        %v3192 = vmin.f32 %v3160, 0.0
        %v3193 = vmin.f32 %v3161, 0.0
        %v3194 = vmin.f32 %v3162, 0.0
        %v3195 = vmin.f32 %v3163, 0.0
        %v3196 = vmin.f32 %v3164, 0.0
        %v3197 = vmin.f32 %v3165, 0.0
        %v3198 = vmin.f32 %v3166, 0.0
        %v3199 = vmin.f32 %v3167, 0.0
        %v3200 = vmin.f32 %v3168, 0.0
        %v3201 = vmin.f32 %v3169, 0.0
        %v3202 = vmin.f32 %v3170, 0.0
        %v3203 = vmin.f32 %v3171, 0.0
        %v3204 = vmin.f32 %v3172, 0.0
        %v3205 = vmin.f32 %v3173, 0.0
        %v3206 = vmin.f32 %v3174, 0.0
        %v3207 = vmin.f32 %v3175, 0.0
        %v3208 = vmin.f32 %v3176, 0.0
        %v3209 = vmin.f32 %v3177, 0.0
        %v3210 = vmin.f32 %v3178, 0.0
        %v3211 = vmin.f32 %v3179, 0.0
        %v3212 = vmin.f32 %v3180, 0.0
        %v3213 = vand.u32 2147483647, %v3149
        %v3214 = vand.u32 2147483647, %v3150
        %v3215 = vand.u32 2147483647, %v3151
        %v3216 = vand.u32 2147483647, %v3152
        %v3217 = vand.u32 2147483647, %v3153
        %v3218 = vand.u32 2147483647, %v3154
        %v3219 = vand.u32 2147483647, %v3155
        %v3220 = vand.u32 2147483647, %v3156
        %v3221 = vand.u32 2147483647, %v3157
        %v3222 = vand.u32 2147483647, %v3158
        %v3223 = vand.u32 2147483647, %v3159
        %v3224 = vand.u32 2147483647, %v3160
        %v3225 = vand.u32 2147483647, %v3161
        %v3226 = vand.u32 2147483647, %v3162
        %v3227 = vand.u32 2147483647, %v3163
        %v3228 = vand.u32 2147483647, %v3164
        %v3229 = vand.u32 2147483647, %v3165
        %v3230 = vand.u32 2147483647, %v3166
        %v3231 = vand.u32 2147483647, %v3167
        %v3232 = vand.u32 2147483647, %v3168
        %v3233 = vand.u32 2147483647, %v3169
        %v3234 = vand.u32 2147483647, %v3170
        %v3235 = vand.u32 2147483647, %v3171
        %v3236 = vand.u32 2147483647, %v3172
        %v3237 = vand.u32 2147483647, %v3173
        %v3238 = vand.u32 2147483647, %v3174
        %v3239 = vand.u32 2147483647, %v3175
        %v3240 = vand.u32 2147483647, %v3176
        %v3241 = vand.u32 2147483647, %v3177
        %v3242 = vand.u32 2147483647, %v3178
        %v3243 = vand.u32 2147483647, %v3179
        %v3244 = vand.u32 2147483647, %v3180
        %v3245 = vsub.f32 0.0, %v3213
        %v3246 = vsub.f32 0.0, %v3214
        %v3247 = vsub.f32 0.0, %v3215
        %v3248 = vsub.f32 0.0, %v3216
        %v3249 = vsub.f32 0.0, %v3217
        %v3250 = vsub.f32 0.0, %v3218
        %v3251 = vsub.f32 0.0, %v3219
        %v3252 = vsub.f32 0.0, %v3220
        %v3253 = vsub.f32 0.0, %v3221
        %v3254 = vsub.f32 0.0, %v3222
        %v3255 = vsub.f32 0.0, %v3223
        %v3256 = vsub.f32 0.0, %v3224
        %v3257 = vsub.f32 0.0, %v3225
        %v3258 = vsub.f32 0.0, %v3226
        %v3259 = vsub.f32 0.0, %v3227
        %v3260 = vsub.f32 0.0, %v3228
        %v3261 = vsub.f32 0.0, %v3229
        %v3262 = vsub.f32 0.0, %v3230
        %v3263 = vsub.f32 0.0, %v3231
        %v3264 = vsub.f32 0.0, %v3232
        %v3265 = vsub.f32 0.0, %v3233
        %v3266 = vsub.f32 0.0, %v3234
        %v3267 = vsub.f32 0.0, %v3235
        %v3268 = vsub.f32 0.0, %v3236
        %v3269 = vsub.f32 0.0, %v3237
        %v3270 = vsub.f32 0.0, %v3238
        %v3271 = vsub.f32 0.0, %v3239
        %v3272 = vsub.f32 0.0, %v3240
        %v3273 = vsub.f32 0.0, %v3241
        %v3274 = vsub.f32 0.0, %v3242
        %v3275 = vsub.f32 0.0, %v3243
        %v3276 = vsub.f32 0.0, %v3244
        %v3277 = vmul.f32 %v3245, 1.442695
        %v3278 = vpow.pop %v3277
        %v3279 = vmul.f32 %v3246, 1.442695
        %v3280 = vpow.pop %v3279
        %v3281 = vmul.f32 %v3247, 1.442695
        %v3282 = vpow.pop %v3281
        %v3283 = vmul.f32 %v3248, 1.442695
        %v3284 = vpow.pop %v3283
        %v3285 = vmul.f32 %v3249, 1.442695
        %v3286 = vpow.pop %v3285
        %v3287 = vmul.f32 %v3250, 1.442695
        %v3288 = vpow.pop %v3287
        %v3289 = vmul.f32 %v3251, 1.442695
        %v3290 = vpow.pop %v3289
        %v3291 = vmul.f32 %v3252, 1.442695
        %v3292 = vpow.pop %v3291
        %v3293 = vmul.f32 %v3253, 1.442695
        %v3294 = vpow.pop %v3293
        %v3295 = vmul.f32 %v3254, 1.442695
        %v3296 = vpow.pop %v3295
        %v3297 = vmul.f32 %v3255, 1.442695
        %v3298 = vpow.pop %v3297
        %v3299 = vmul.f32 %v3256, 1.442695
        %v3300 = vpow.pop %v3299
        %v3301 = vmul.f32 %v3257, 1.442695
        %v3302 = vpow.pop %v3301
        %v3303 = vmul.f32 %v3258, 1.442695
        %v3304 = vpow.pop %v3303
        %v3305 = vmul.f32 %v3259, 1.442695
        %v3306 = vpow.pop %v3305
        %v3307 = vmul.f32 %v3260, 1.442695
        %v3308 = vpow.pop %v3307
        %v3309 = vmul.f32 %v3261, 1.442695
        %v3310 = vpow.pop %v3309
        %v3311 = vmul.f32 %v3262, 1.442695
        %v3312 = vpow.pop %v3311
        %v3313 = vmul.f32 %v3263, 1.442695
        %v3314 = vpow.pop %v3313
        %v3315 = vmul.f32 %v3264, 1.442695
        %v3316 = vpow.pop %v3315
        %v3317 = vmul.f32 %v3265, 1.442695
        %v3318 = vpow.pop %v3317
        %v3319 = vmul.f32 %v3266, 1.442695
        %v3320 = vpow.pop %v3319
        %v3321 = vmul.f32 %v3267, 1.442695
        %v3322 = vpow.pop %v3321
        %v3323 = vmul.f32 %v3268, 1.442695
        %v3324 = vpow.pop %v3323
        %v3325 = vmul.f32 %v3269, 1.442695
        %v3326 = vpow.pop %v3325
        %v3327 = vmul.f32 %v3270, 1.442695
        %v3328 = vpow.pop %v3327
        %v3329 = vmul.f32 %v3271, 1.442695
        %v3330 = vpow.pop %v3329
        %v3331 = vmul.f32 %v3272, 1.442695
        %v3332 = vpow.pop %v3331
        %v3333 = vmul.f32 %v3273, 1.442695
        %v3334 = vpow.pop %v3333
        %v3335 = vmul.f32 %v3274, 1.442695
        %v3336 = vpow.pop %v3335
        %v3337 = vmul.f32 %v3275, 1.442695
        %v3338 = vpow.pop %v3337
        %v3339 = vmul.f32 %v3276, 1.442695
        %v3340 = vpow.pop %v3339
        %v3341 = vadd.f32 %v3278, 1.0
        %v3342 = vadd.f32 %v3280, 1.0
        %v3343 = vadd.f32 %v3282, 1.0
        %v3344 = vadd.f32 %v3284, 1.0
        %v3345 = vadd.f32 %v3286, 1.0
        %v3346 = vadd.f32 %v3288, 1.0
        %v3347 = vadd.f32 %v3290, 1.0
        %v3348 = vadd.f32 %v3292, 1.0
        %v3349 = vadd.f32 %v3294, 1.0
        %v3350 = vadd.f32 %v3296, 1.0
        %v3351 = vadd.f32 %v3298, 1.0
        %v3352 = vadd.f32 %v3300, 1.0
        %v3353 = vadd.f32 %v3302, 1.0
        %v3354 = vadd.f32 %v3304, 1.0
        %v3355 = vadd.f32 %v3306, 1.0
        %v3356 = vadd.f32 %v3308, 1.0
        %v3357 = vadd.f32 %v3310, 1.0
        %v3358 = vadd.f32 %v3312, 1.0
        %v3359 = vadd.f32 %v3314, 1.0
        %v3360 = vadd.f32 %v3316, 1.0
        %v3361 = vadd.f32 %v3318, 1.0
        %v3362 = vadd.f32 %v3320, 1.0
        %v3363 = vadd.f32 %v3322, 1.0
        %v3364 = vadd.f32 %v3324, 1.0
        %v3365 = vadd.f32 %v3326, 1.0
        %v3366 = vadd.f32 %v3328, 1.0
        %v3367 = vadd.f32 %v3330, 1.0
        %v3368 = vadd.f32 %v3332, 1.0
        %v3369 = vadd.f32 %v3334, 1.0
        %v3370 = vadd.f32 %v3336, 1.0
        %v3371 = vadd.f32 %v3338, 1.0
        %v3372 = vadd.f32 %v3340, 1.0
        %v3373 = vlog2.pop %v3341
        %v3374 = vmul.f32 %v3373, 0.6931472
        %v3375 = vlog2.pop %v3342
        %v3376 = vmul.f32 %v3375, 0.6931472
        %v3377 = vlog2.pop %v3343
        %v3378 = vmul.f32 %v3377, 0.6931472
        %v3379 = vlog2.pop %v3344
        %v3380 = vmul.f32 %v3379, 0.6931472
        %v3381 = vlog2.pop %v3345
        %v3382 = vmul.f32 %v3381, 0.6931472
        %v3383 = vlog2.pop %v3346
        %v3384 = vmul.f32 %v3383, 0.6931472
        %v3385 = vlog2.pop %v3347
        %v3386 = vmul.f32 %v3385, 0.6931472
        %v3387 = vlog2.pop %v3348
        %v3388 = vmul.f32 %v3387, 0.6931472
        %v3389 = vlog2.pop %v3349
        %v3390 = vmul.f32 %v3389, 0.6931472
        %v3391 = vlog2.pop %v3350
        %v3392 = vmul.f32 %v3391, 0.6931472
        %v3393 = vlog2.pop %v3351
        %v3394 = vmul.f32 %v3393, 0.6931472
        %v3395 = vlog2.pop %v3352
        %v3396 = vmul.f32 %v3395, 0.6931472
        %v3397 = vlog2.pop %v3353
        %v3398 = vmul.f32 %v3397, 0.6931472
        %v3399 = vlog2.pop %v3354
        %v3400 = vmul.f32 %v3399, 0.6931472
        %v3401 = vlog2.pop %v3355
        %v3402 = vmul.f32 %v3401, 0.6931472
        %v3403 = vlog2.pop %v3356
        %v3404 = vmul.f32 %v3403, 0.6931472
        %v3405 = vlog2.pop %v3357
        %v3406 = vmul.f32 %v3405, 0.6931472
        %v3407 = vlog2.pop %v3358
        %v3408 = vmul.f32 %v3407, 0.6931472
        %v3409 = vlog2.pop %v3359
        %v3410 = vmul.f32 %v3409, 0.6931472
        %v3411 = vlog2.pop %v3360
        %v3412 = vmul.f32 %v3411, 0.6931472
        %v3413 = vlog2.pop %v3361
        %v3414 = vmul.f32 %v3413, 0.6931472
        %v3415 = vlog2.pop %v3362
        %v3416 = vmul.f32 %v3415, 0.6931472
        %v3417 = vlog2.pop %v3363
        %v3418 = vmul.f32 %v3417, 0.6931472
        %v3419 = vlog2.pop %v3364
        %v3420 = vmul.f32 %v3419, 0.6931472
        %v3421 = vlog2.pop %v3365
        %v3422 = vmul.f32 %v3421, 0.6931472
        %v3423 = vlog2.pop %v3366
        %v3424 = vmul.f32 %v3423, 0.6931472
        %v3425 = vlog2.pop %v3367
        %v3426 = vmul.f32 %v3425, 0.6931472
        %v3427 = vlog2.pop %v3368
        %v3428 = vmul.f32 %v3427, 0.6931472
        %v3429 = vlog2.pop %v3369
        %v3430 = vmul.f32 %v3429, 0.6931472
        %v3431 = vlog2.pop %v3370
        %v3432 = vmul.f32 %v3431, 0.6931472
        %v3433 = vlog2.pop %v3371
        %v3434 = vmul.f32 %v3433, 0.6931472
        %v3435 = vlog2.pop %v3372
        %v3436 = vmul.f32 %v3435, 0.6931472
        %v3437 = vsub.f32 %v3181, %v3374
        %v3438 = vsub.f32 %v3182, %v3376
        %v3439 = vsub.f32 %v3183, %v3378
        %v3440 = vsub.f32 %v3184, %v3380
        %v3441 = vsub.f32 %v3185, %v3382
        %v3442 = vsub.f32 %v3186, %v3384
        %v3443 = vsub.f32 %v3187, %v3386
        %v3444 = vsub.f32 %v3188, %v3388
        %v3445 = vsub.f32 %v3189, %v3390
        %v3446 = vsub.f32 %v3190, %v3392
        %v3447 = vsub.f32 %v3191, %v3394
        %v3448 = vsub.f32 %v3192, %v3396
        %v3449 = vsub.f32 %v3193, %v3398
        %v3450 = vsub.f32 %v3194, %v3400
        %v3451 = vsub.f32 %v3195, %v3402
        %v3452 = vsub.f32 %v3196, %v3404
        %v3453 = vsub.f32 %v3197, %v3406
        %v3454 = vsub.f32 %v3198, %v3408
        %v3455 = vsub.f32 %v3199, %v3410
        %v3456 = vsub.f32 %v3200, %v3412
        %v3457 = vsub.f32 %v3201, %v3414
        %v3458 = vsub.f32 %v3202, %v3416
        %v3459 = vsub.f32 %v3203, %v3418
        %v3460 = vsub.f32 %v3204, %v3420
        %v3461 = vsub.f32 %v3205, %v3422
        %v3462 = vsub.f32 %v3206, %v3424
        %v3463 = vsub.f32 %v3207, %v3426
        %v3464 = vsub.f32 %v3208, %v3428
        %v3465 = vsub.f32 %v3209, %v3430
        %v3466 = vsub.f32 %v3210, %v3432
        %v3467 = vsub.f32 %v3211, %v3434
        %v3468 = vsub.f32 %v3212, %v3436
        %v3469 = vadd.f32 %v2956, %v3437
        %v3470 = vadd.f32 %v2957, %v3438
        %v3471 = vadd.f32 %v2958, %v3439
        %v3472 = vadd.f32 %v2959, %v3440
        %v3473 = vadd.f32 %v2960, %v3441
        %v3474 = vadd.f32 %v2961, %v3442
        %v3475 = vadd.f32 %v2962, %v3443
        %v3476 = vadd.f32 %v2963, %v3444
        %v3477 = vadd.f32 %v2964, %v3445
        %v3478 = vadd.f32 %v2965, %v3446
        %v3479 = vadd.f32 %v2966, %v3447
        %v3480 = vadd.f32 %v2967, %v3448
        %v3481 = vadd.f32 %v2968, %v3449
        %v3482 = vadd.f32 %v2969, %v3450
        %v3483 = vadd.f32 %v2970, %v3451
        %v3484 = vadd.f32 %v2971, %v3452
        %v3485 = vadd.f32 %v2972, %v3453
        %v3486 = vadd.f32 %v2973, %v3454
        %v3487 = vadd.f32 %v2974, %v3455
        %v3488 = vadd.f32 %v2975, %v3456
        %v3489 = vadd.f32 %v2976, %v3457
        %v3490 = vadd.f32 %v2977, %v3458
        %v3491 = vadd.f32 %v2978, %v3459
        %v3492 = vadd.f32 %v2979, %v3460
        %v3493 = vadd.f32 %v2980, %v3461
        %v3494 = vadd.f32 %v2981, %v3462
        %v3495 = vadd.f32 %v2982, %v3463
        %v3496 = vadd.f32 %v2983, %v3464
        %v3497 = vadd.f32 %v2984, %v3465
        %v3498 = vadd.f32 %v2985, %v3466
        %v3499 = vadd.f32 %v2986, %v3467
        %v3500 = vadd.f32 %v2987, %v3468
        %v3501 = vld [vmem:[#allocation2] sm:$0xff]
        %v3502 = vld [vmem:[#allocation2 + $0x8] sm:$0xff]
        %v3503 = vld [vmem:[#allocation2 + $0x10] sm:$0xff]
        %v3504 = vld [vmem:[#allocation2 + $0x18] sm:$0xff]
        %v3505 = vld [vmem:[#allocation2 + $0x20] sm:$0xff]
        %v3506 = vld [vmem:[#allocation2 + $0x28] sm:$0xff]
        %v3507 = vld [vmem:[#allocation2 + $0x30] sm:$0xff]
        %v3508 = vld [vmem:[#allocation2 + $0x38] sm:$0xff]
        %v3509 = vld [vmem:[#allocation2 + $0x40] sm:$0xff]
        %v3510 = vld [vmem:[#allocation2 + $0x48] sm:$0xff]
        %v3511 = vld [vmem:[#allocation2 + $0x50] sm:$0xff]
        %v3512 = vld [vmem:[#allocation2 + $0x58] sm:$0xff]
        %v3513 = vld [vmem:[#allocation2 + $0x60] sm:$0xff]
        %v3514 = vld [vmem:[#allocation2 + $0x68] sm:$0xff]
        %v3515 = vld [vmem:[#allocation2 + $0x70] sm:$0xff]
        %v3516 = vld [vmem:[#allocation2 + $0x78] sm:$0xff]
        %v3517 = vld [vmem:[#allocation2 + $0x80] sm:$0xff]
        %v3518 = vld [vmem:[#allocation2 + $0x88] sm:$0xff]
        %v3519 = vld [vmem:[#allocation2 + $0x90] sm:$0xff]
        %v3520 = vld [vmem:[#allocation2 + $0x98] sm:$0xff]
        %v3521 = vld [vmem:[#allocation2 + $0xa0] sm:$0xff]
        %v3522 = vld [vmem:[#allocation2 + $0xa8] sm:$0xff]
        %v3523 = vld [vmem:[#allocation2 + $0xb0] sm:$0xff]
        %v3524 = vld [vmem:[#allocation2 + $0xb8] sm:$0xff]
        %v3525 = vld [vmem:[#allocation2 + $0xc0] sm:$0xff]
        %v3526 = vld [vmem:[#allocation2 + $0xc8] sm:$0xff]
        %v3527 = vld [vmem:[#allocation2 + $0xd0] sm:$0xff]
        %v3528 = vld [vmem:[#allocation2 + $0xd8] sm:$0xff]
        %v3529 = vld [vmem:[#allocation2 + $0xe0] sm:$0xff]
        %v3530 = vld [vmem:[#allocation2 + $0xe8] sm:$0xff]
        %v3531 = vld [vmem:[#allocation2 + $0xf0] sm:$0xff]
        %v3532 = vld [vmem:[#allocation2 + $0xf8] sm:$0xff]
        %v3533 = vld [vmem:[%s924] sm:$0xff]
        %v3534 = vld [vmem:[%s924 + $0x8] sm:$0xff]
        %v3535 = vld [vmem:[%s924 + $0x10] sm:$0xff]
        %v3536 = vld [vmem:[%s924 + $0x18] sm:$0xff]
        %v3537 = vld [vmem:[%s924 + $0x20] sm:$0xff]
        %v3538 = vld [vmem:[%s924 + $0x28] sm:$0xff]
        %v3539 = vld [vmem:[%s924 + $0x30] sm:$0xff]
        %v3540 = vld [vmem:[%s924 + $0x38] sm:$0xff]
        %v3541 = vld [vmem:[%s924 + $0x40] sm:$0xff]
        %v3542 = vld [vmem:[%s924 + $0x48] sm:$0xff]
        %v3543 = vld [vmem:[%s924 + $0x50] sm:$0xff]
        %v3544 = vld [vmem:[%s924 + $0x58] sm:$0xff]
        %v3545 = vld [vmem:[%s924 + $0x60] sm:$0xff]
        %v3546 = vld [vmem:[%s924 + $0x68] sm:$0xff]
        %v3547 = vld [vmem:[%s924 + $0x70] sm:$0xff]
        %v3548 = vld [vmem:[%s924 + $0x78] sm:$0xff]
        %v3549 = vld [vmem:[%s924 + $0x80] sm:$0xff]
        %v3550 = vld [vmem:[%s924 + $0x88] sm:$0xff]
        %v3551 = vld [vmem:[%s924 + $0x90] sm:$0xff]
        %v3552 = vld [vmem:[%s924 + $0x98] sm:$0xff]
        %v3553 = vld [vmem:[%s924 + $0xa0] sm:$0xff]
        %v3554 = vld [vmem:[%s924 + $0xa8] sm:$0xff]
        %v3555 = vld [vmem:[%s924 + $0xb0] sm:$0xff]
        %v3556 = vld [vmem:[%s924 + $0xb8] sm:$0xff]
        %v3557 = vld [vmem:[%s924 + $0xc0] sm:$0xff]
        %v3558 = vld [vmem:[%s924 + $0xc8] sm:$0xff]
        %v3559 = vld [vmem:[%s924 + $0xd0] sm:$0xff]
        %v3560 = vld [vmem:[%s924 + $0xd8] sm:$0xff]
        %v3561 = vld [vmem:[%s924 + $0xe0] sm:$0xff]
        %v3562 = vld [vmem:[%s924 + $0xe8] sm:$0xff]
        %v3563 = vld [vmem:[%s924 + $0xf0] sm:$0xff]
        %v3564 = vld [vmem:[%s924 + $0xf8] sm:$0xff]
        %v3565 = vmul.f32 %v3469, %v3533
        %v3566 = vmul.f32 %v3470, %v3534
        %v3567 = vmul.f32 %v3471, %v3535
        %v3568 = vmul.f32 %v3472, %v3536
        %v3569 = vmul.f32 %v3473, %v3537
        %v3570 = vmul.f32 %v3474, %v3538
        %v3571 = vmul.f32 %v3475, %v3539
        %v3572 = vmul.f32 %v3476, %v3540
        %v3573 = vmul.f32 %v3477, %v3541
        %v3574 = vmul.f32 %v3478, %v3542
        %v3575 = vmul.f32 %v3479, %v3543
        %v3576 = vmul.f32 %v3480, %v3544
        %v3577 = vmul.f32 %v3481, %v3545
        %v3578 = vmul.f32 %v3482, %v3546
        %v3579 = vmul.f32 %v3483, %v3547
        %v3580 = vmul.f32 %v3484, %v3548
        %v3581 = vmul.f32 %v3485, %v3549
        %v3582 = vmul.f32 %v3486, %v3550
        %v3583 = vmul.f32 %v3487, %v3551
        %v3584 = vmul.f32 %v3488, %v3552
        %v3585 = vmul.f32 %v3489, %v3553
        %v3586 = vmul.f32 %v3490, %v3554
        %v3587 = vmul.f32 %v3491, %v3555
        %v3588 = vmul.f32 %v3492, %v3556
        %v3589 = vmul.f32 %v3493, %v3557
        %v3590 = vmul.f32 %v3494, %v3558
        %v3591 = vmul.f32 %v3495, %v3559
        %v3592 = vmul.f32 %v3496, %v3560
        %v3593 = vmul.f32 %v3497, %v3561
        %v3594 = vmul.f32 %v3498, %v3562
        %v3595 = vmul.f32 %v3499, %v3563
        %v3596 = vmul.f32 %v3500, %v3564
        %v3597 = vadd.f32 %v3501, %v3565
        %v3598 = vadd.f32 %v3502, %v3566
        %v3599 = vadd.f32 %v3503, %v3567
        %v3600 = vadd.f32 %v3504, %v3568
        %v3601 = vadd.f32 %v3505, %v3569
        %v3602 = vadd.f32 %v3506, %v3570
        %v3603 = vadd.f32 %v3507, %v3571
        %v3604 = vadd.f32 %v3508, %v3572
        %v3605 = vadd.f32 %v3509, %v3573
        %v3606 = vadd.f32 %v3510, %v3574
        %v3607 = vadd.f32 %v3511, %v3575
        %v3608 = vadd.f32 %v3512, %v3576
        %v3609 = vadd.f32 %v3513, %v3577
        %v3610 = vadd.f32 %v3514, %v3578
        %v3611 = vadd.f32 %v3515, %v3579
        %v3612 = vadd.f32 %v3516, %v3580
        %v3613 = vadd.f32 %v3517, %v3581
        %v3614 = vadd.f32 %v3518, %v3582
        %v3615 = vadd.f32 %v3519, %v3583
        %v3616 = vadd.f32 %v3520, %v3584
        %v3617 = vadd.f32 %v3521, %v3585
        %v3618 = vadd.f32 %v3522, %v3586
        %v3619 = vadd.f32 %v3523, %v3587
        %v3620 = vadd.f32 %v3524, %v3588
        %v3621 = vadd.f32 %v3525, %v3589
        %v3622 = vadd.f32 %v3526, %v3590
        %v3623 = vadd.f32 %v3527, %v3591
        %v3624 = vadd.f32 %v3528, %v3592
        %v3625 = vadd.f32 %v3529, %v3593
        %v3626 = vadd.f32 %v3530, %v3594
        %v3627 = vadd.f32 %v3531, %v3595
        %v3628 = vadd.f32 %v3532, %v3596
        %vm3629 = vcmask 7168
        %3630 = vst.msk [vmem:[#allocation2] sm:$0xff] %vm3629, %v3597
        %3631 = vst.msk [vmem:[#allocation2 + $0x8] sm:$0xff] %vm3629, %v3598
        %3632 = vst.msk [vmem:[#allocation2 + $0x10] sm:$0xff] %vm3629, %v3599
        %3633 = vst.msk [vmem:[#allocation2 + $0x18] sm:$0xff] %vm3629, %v3600
        %3634 = vst.msk [vmem:[#allocation2 + $0x20] sm:$0xff] %vm3629, %v3601
        %3635 = vst.msk [vmem:[#allocation2 + $0x28] sm:$0xff] %vm3629, %v3602
        %3636 = vst.msk [vmem:[#allocation2 + $0x30] sm:$0xff] %vm3629, %v3603
        %3637 = vst.msk [vmem:[#allocation2 + $0x38] sm:$0xff] %vm3629, %v3604
        %3638 = vst.msk [vmem:[#allocation2 + $0x40] sm:$0xff] %vm3629, %v3605
        %3639 = vst.msk [vmem:[#allocation2 + $0x48] sm:$0xff] %vm3629, %v3606
        %3640 = vst.msk [vmem:[#allocation2 + $0x50] sm:$0xff] %vm3629, %v3607
        %3641 = vst.msk [vmem:[#allocation2 + $0x58] sm:$0xff] %vm3629, %v3608
        %3642 = vst.msk [vmem:[#allocation2 + $0x60] sm:$0xff] %vm3629, %v3609
        %3643 = vst.msk [vmem:[#allocation2 + $0x68] sm:$0xff] %vm3629, %v3610
        %3644 = vst.msk [vmem:[#allocation2 + $0x70] sm:$0xff] %vm3629, %v3611
        %3645 = vst.msk [vmem:[#allocation2 + $0x78] sm:$0xff] %vm3629, %v3612
        %3646 = vst.msk [vmem:[#allocation2 + $0x80] sm:$0xff] %vm3629, %v3613
        %3647 = vst.msk [vmem:[#allocation2 + $0x88] sm:$0xff] %vm3629, %v3614
        %3648 = vst.msk [vmem:[#allocation2 + $0x90] sm:$0xff] %vm3629, %v3615
        %3649 = vst.msk [vmem:[#allocation2 + $0x98] sm:$0xff] %vm3629, %v3616
        %3650 = vst.msk [vmem:[#allocation2 + $0xa0] sm:$0xff] %vm3629, %v3617
        %3651 = vst.msk [vmem:[#allocation2 + $0xa8] sm:$0xff] %vm3629, %v3618
        %3652 = vst.msk [vmem:[#allocation2 + $0xb0] sm:$0xff] %vm3629, %v3619
        %3653 = vst.msk [vmem:[#allocation2 + $0xb8] sm:$0xff] %vm3629, %v3620
        %3654 = vst.msk [vmem:[#allocation2 + $0xc0] sm:$0xff] %vm3629, %v3621
        %3655 = vst.msk [vmem:[#allocation2 + $0xc8] sm:$0xff] %vm3629, %v3622
        %3656 = vst.msk [vmem:[#allocation2 + $0xd0] sm:$0xff] %vm3629, %v3623
        %3657 = vst.msk [vmem:[#allocation2 + $0xd8] sm:$0xff] %vm3629, %v3624
        %3658 = vst.msk [vmem:[#allocation2 + $0xe0] sm:$0xff] %vm3629, %v3625
        %3659 = vst.msk [vmem:[#allocation2 + $0xe8] sm:$0xff] %vm3629, %v3626
        %3660 = vst.msk [vmem:[#allocation2 + $0xf0] sm:$0xff] %vm3629, %v3627
        %3661 = vst.msk [vmem:[#allocation2 + $0xf8] sm:$0xff] %vm3629, %v3628
        %p3662 = scmp.eq.s32.totalorder %s19, 1
        // Predicated region
        $region75: #{tpu_custom_call.1} parent=65 // pred_check
          %p3663 = pneg %p3662
        $region76: #{tpu_custom_call.1} parent=65 // pred_check_branch
          %3665 = sbr.rel (%p3663) target = $region78
        $region77: #{tpu_custom_call.1} parent=65 // pred_region
          %v3666 = vld [vmem:[#allocation2] sm:$0xff]
          %v3667 = vld [vmem:[#allocation2 + $0x8] sm:$0xff]
          %v3668 = vld [vmem:[#allocation2 + $0x10] sm:$0xff]
          %v3669 = vld [vmem:[#allocation2 + $0x18] sm:$0xff]
          %v3670 = vld [vmem:[#allocation2 + $0x20] sm:$0xff]
          %v3671 = vld [vmem:[#allocation2 + $0x28] sm:$0xff]
          %v3672 = vld [vmem:[#allocation2 + $0x30] sm:$0xff]
          %v3673 = vld [vmem:[#allocation2 + $0x38] sm:$0xff]
          %v3674 = vld [vmem:[#allocation2 + $0x40] sm:$0xff]
          %v3675 = vld [vmem:[#allocation2 + $0x48] sm:$0xff]
          %v3676 = vld [vmem:[#allocation2 + $0x50] sm:$0xff]
          %v3677 = vld [vmem:[#allocation2 + $0x58] sm:$0xff]
          %v3678 = vld [vmem:[#allocation2 + $0x60] sm:$0xff]
          %v3679 = vld [vmem:[#allocation2 + $0x68] sm:$0xff]
          %v3680 = vld [vmem:[#allocation2 + $0x70] sm:$0xff]
          %v3681 = vld [vmem:[#allocation2 + $0x78] sm:$0xff]
          %v3682 = vld [vmem:[#allocation2 + $0x80] sm:$0xff]
          %v3683 = vld [vmem:[#allocation2 + $0x88] sm:$0xff]
          %v3684 = vld [vmem:[#allocation2 + $0x90] sm:$0xff]
          %v3685 = vld [vmem:[#allocation2 + $0x98] sm:$0xff]
          %v3686 = vld [vmem:[#allocation2 + $0xa0] sm:$0xff]
          %v3687 = vld [vmem:[#allocation2 + $0xa8] sm:$0xff]
          %v3688 = vld [vmem:[#allocation2 + $0xb0] sm:$0xff]
          %v3689 = vld [vmem:[#allocation2 + $0xb8] sm:$0xff]
          %v3690 = vld [vmem:[#allocation2 + $0xc0] sm:$0xff]
          %v3691 = vld [vmem:[#allocation2 + $0xc8] sm:$0xff]
          %v3692 = vld [vmem:[#allocation2 + $0xd0] sm:$0xff]
          %v3693 = vld [vmem:[#allocation2 + $0xd8] sm:$0xff]
          %v3694 = vld [vmem:[#allocation2 + $0xe0] sm:$0xff]
          %v3695 = vld [vmem:[#allocation2 + $0xe8] sm:$0xff]
          %v3696 = vld [vmem:[#allocation2 + $0xf0] sm:$0xff]
          %v3697 = vld [vmem:[#allocation2 + $0xf8] sm:$0xff]
          %v3698 = vsel %vm3629, %v3666, 0.0
          %v3699 = vsel %vm3629, %v3667, 0.0
          %v3700 = vadd.f32 %v3698, %v3699
          %v3701 = vsel %vm3629, %v3668, 0.0
          %v3702 = vadd.f32 %v3700, %v3701
          %v3703 = vsel %vm3629, %v3669, 0.0
          %v3704 = vadd.f32 %v3702, %v3703
          %v3705 = vsel %vm3629, %v3670, 0.0
          %v3706 = vadd.f32 %v3704, %v3705
          %v3707 = vsel %vm3629, %v3671, 0.0
          %v3708 = vadd.f32 %v3706, %v3707
          %v3709 = vsel %vm3629, %v3672, 0.0
          %v3710 = vadd.f32 %v3708, %v3709
          %v3711 = vsel %vm3629, %v3673, 0.0
          %v3712 = vadd.f32 %v3710, %v3711
          %v3713 = vsel %vm3629, %v3674, 0.0
          %v3714 = vadd.f32 %v3712, %v3713
          %v3715 = vsel %vm3629, %v3675, 0.0
          %v3716 = vadd.f32 %v3714, %v3715
          %v3717 = vsel %vm3629, %v3676, 0.0
          %v3718 = vadd.f32 %v3716, %v3717
          %v3719 = vsel %vm3629, %v3677, 0.0
          %v3720 = vadd.f32 %v3718, %v3719
          %v3721 = vsel %vm3629, %v3678, 0.0
          %v3722 = vadd.f32 %v3720, %v3721
          %v3723 = vsel %vm3629, %v3679, 0.0
          %v3724 = vadd.f32 %v3722, %v3723
          %v3725 = vsel %vm3629, %v3680, 0.0
          %v3726 = vadd.f32 %v3724, %v3725
          %v3727 = vsel %vm3629, %v3681, 0.0
          %v3728 = vadd.f32 %v3726, %v3727
          %v3729 = vsel %vm3629, %v3682, 0.0
          %v3730 = vadd.f32 %v3728, %v3729
          %v3731 = vsel %vm3629, %v3683, 0.0
          %v3732 = vadd.f32 %v3730, %v3731
          %v3733 = vsel %vm3629, %v3684, 0.0
          %v3734 = vadd.f32 %v3732, %v3733
          %v3735 = vsel %vm3629, %v3685, 0.0
          %v3736 = vadd.f32 %v3734, %v3735
          %v3737 = vsel %vm3629, %v3686, 0.0
          %v3738 = vadd.f32 %v3736, %v3737
          %v3739 = vsel %vm3629, %v3687, 0.0
          %v3740 = vadd.f32 %v3738, %v3739
          %v3741 = vsel %vm3629, %v3688, 0.0
          %v3742 = vadd.f32 %v3740, %v3741
          %v3743 = vsel %vm3629, %v3689, 0.0
          %v3744 = vadd.f32 %v3742, %v3743
          %v3745 = vsel %vm3629, %v3690, 0.0
          %v3746 = vadd.f32 %v3744, %v3745
          %v3747 = vsel %vm3629, %v3691, 0.0
          %v3748 = vadd.f32 %v3746, %v3747
          %v3749 = vsel %vm3629, %v3692, 0.0
          %v3750 = vadd.f32 %v3748, %v3749
          %v3751 = vsel %vm3629, %v3693, 0.0
          %v3752 = vadd.f32 %v3750, %v3751
          %v3753 = vsel %vm3629, %v3694, 0.0
          %v3754 = vadd.f32 %v3752, %v3753
          %v3755 = vsel %vm3629, %v3695, 0.0
          %v3756 = vadd.f32 %v3754, %v3755
          %v3757 = vsel %vm3629, %v3696, 0.0
          %v3758 = vadd.f32 %v3756, %v3757
          %v3759 = vsel %vm3629, %v3697, 0.0
          %v3760 = vadd.f32 %v3758, %v3759
          %3761 = vadd.xlane.f32.xlu0 %v3760
          %v3762 = vpop.xlane.xlu0 %3761
          %v3763 = vrot.slane %v3762, 4
          %v3764 = vadd.f32 %v3762, %v3763
          %v3765 = vrot.slane %v3764, 2
          %v3766 = vadd.f32 %v3764, %v3765
          %v3767 = vrot.slane %v3766, 1
          %v3768 = vadd.f32 %v3766, %v3767
          %s3769 = vtos %v3768
          %v3770 = vstv %s3769
          %v3771 = vsub.f32 0.0, %v3770
          %vm3772 = vcmask 0
          %3773 = vst.msk [vmem:[%s930] sm:$0x1] %vm3772, %v3771
        $region78: #{tpu_custom_call.1} parent=65 // pred_fallthru
          _
        %p3774 = scmp.lt.s32.totalorder %s18, 1
        %s3775 = scalar_select %p3774, %s18, 1
        %s3776 = scalar_lea.vmem %s3, %s3775
        // Predicated region
        $region79: #{tpu_custom_call.1} parent=65 // pred_check
          %p3777 = pneg %p134
        $region80: #{tpu_custom_call.1} parent=65 // pred_check_branch
          %3779 = sbr.rel (%p3777) target = $region82
        $region81: #{tpu_custom_call.1} parent=65 // pred_region
          _
        $region82: #{tpu_custom_call.1} parent=65 // pred_fallthru
          _
      $region66: #{tpu_custom_call.1} parent=5 // pred_fallthru
        _
      %p3780 = scmp.le.s32.totalorder 2, %s9
      // Predicated region
      $region83: #{tpu_custom_call.1} parent=5 // pred_check
        %p3781 = pneg %p3780
      $region84: #{tpu_custom_call.1} parent=5 // pred_check_branch
        %3783 = sbr.rel (%p3781) target = $region86
      $region85: #{tpu_custom_call.1} parent=5 // pred_region
        %s3784 = ssub.s32 %s9, 2
        // Predicated region
        $region87: #{tpu_custom_call.1} parent=85 // pred_check
          %p3785 = pneg %p140
        $region88: #{tpu_custom_call.1} parent=85 // pred_check_branch
          %3787 = sbr.rel (%p3785) target = $region90
        $region89: #{tpu_custom_call.1} parent=85 // pred_region
          %p3788 = scmp.lt.s32.totalorder %s20, 1
          %s3789 = scalar_select %p3788, %s20, 1
          %s3790 = scalar_lea.vmem %s3, %s3789
        $region90: #{tpu_custom_call.1} parent=85 // pred_fallthru
          _
      $region86: #{tpu_custom_call.1} parent=5 // pred_fallthru
        _
    $region6: #{tpu_custom_call.1} parent=1 // loop_footer
      %s13 = sadd.s32 1, %s9
    $region7: #{tpu_custom_call.1} parent=1 // loop_footer_branch
      %8 = sbr.rel target = $region3
    $region8: #{tpu_custom_call.1} parent=1 // loop_exit
      _

</llo_original>
